<compile_context>
chip_gen: v6e
topology: v6e:2x2x1
jax: 0.10.0
libtpu: 0.0.40
codegen_flags: <defaults>
</compile_context>

<pallas_src>
import functools
import math

import jax
import jax.numpy as jnp
from jax.experimental import pallas as pl
from jax.experimental.pallas import tpu as pltpu

LN_EPS = 1e-5
LANE = 128

PARAM_ORDER = (
    "ln1_w", "ln1_b",
    "wq", "bq", "wk", "bk", "wv", "bv",
    "wo", "bo",
    "ln2_w", "ln2_b",
    "w1", "b1", "w2", "b2",
    "alpha",
)


def _round_up(a, b):
    return (a + b - 1) // b * b


# ------------------------------ kernel helpers -------------------------------

def _layer_norm(x, w, b, f_real):
    """LayerNorm over the last dim.  Lanes >= f_real are zero by construction,
    so sums over the padded width equal the unpadded sums; mean/var just use
    the real feature count (no lane mask needed)."""
    inv_f = 1.0 / f_real
    mu = jnp.sum(x, axis=-1, keepdims=True) * inv_f
    ex2 = jnp.sum(x * x, axis=-1, keepdims=True) * inv_f
    var = ex2 - mu * mu
    return (x - mu) * jax.lax.rsqrt(var + LN_EPS) * w + b


def _erf_f32(x):
    # Abramowitz & Stegun 7.1.26, |err| < 1.5e-7.  Implemented with exp/VPU ops
    # only so the exact-GELU path never needs an erf primitive lowering.
    a1, a2, a3, a4, a5 = (0.254829592, -0.284496736, 1.421413741,
                          -1.453152027, 1.061405429)
    ax = jnp.abs(x)
    t = 1.0 / (1.0 + 0.3275911 * ax)
    poly = ((((a5 * t + a4) * t + a3) * t + a2) * t + a1) * t
    y = 1.0 - poly * jnp.exp(-ax * ax)
    return jnp.where(x < 0.0, -y, y)


def _gelu(x, exact):
    if exact:  # matches torch.nn.GELU() (erf form) to ~1e-7
        return 0.5 * x * (1.0 + _erf_f32(x * 0.7071067811865476))
    return jax.nn.gelu(x, approximate=True)  # cheaper tanh form (optional)


# ---------------------------------- kernel -----------------------------------

def encoder_kernel(n_heads, dh_pad, f_real, exact_gelu,
                   x_ref,
                   ln1w_ref, ln1b_ref,
                   wq_ref, bq_ref, wk_ref, bk_ref, wv_ref, bv_ref,
                   wo_ref, bo_ref,
                   ln2w_ref, ln2b_ref,
                   w1_ref, b1_ref, w2_ref, b2_ref,
                   alpha_ref,
                   out_ref,
                   y_ref):
    l = pl.program_id(1)
    n_layers = pl.num_programs(1)
    TB, L, Fp = x_ref.shape
    rows = TB * L

    # First layer of each batch tile: load the residual stream into the carried
    # f32 VMEM scratch as a lane-dense (rows, Fp) slab.
    @pl.when(l == 0)
    def _():
        y_ref[...] = x_ref[...].reshape(rows, Fp).astype(jnp.float32)

    y = y_ref[...]
    alpha = alpha_ref[l]  # rezero scalar from SMEM

    # ---------------- attention branch: y += alpha * MHA(LN1(y)) -------------
    y1 = _layer_norm(y, ln1w_ref[...], ln1b_ref[...], f_real).astype(jnp.bfloat16)
    # 1/sqrt(dh) is folded into wq / bq host-side.
    q = jnp.dot(y1, wq_ref[...], preferred_element_type=jnp.float32) + bq_ref[...]
    k = jnp.dot(y1, wk_ref[...], preferred_element_type=jnp.float32) + bk_ref[...]
    v = jnp.dot(y1, wv_ref[...], preferred_element_type=jnp.float32) + bv_ref[...]
    q3 = q.reshape(TB, L, Fp).astype(jnp.bfloat16)
    k3 = k.reshape(TB, L, Fp).astype(jnp.bfloat16)
    v3 = v.reshape(TB, L, Fp).astype(jnp.bfloat16)

    head_outs = []
    for h in range(n_heads):  # static unroll; each einsum is batched over TB
        sl = slice(h * dh_pad, (h + 1) * dh_pad)
        s = jnp.einsum("bqd,bkd->bqk", q3[:, :, sl], k3[:, :, sl],
                       preferred_element_type=jnp.float32)
        s = s - jnp.max(s, axis=-1, keepdims=True)
        p = jnp.exp(s)
        p = p * pl.reciprocal(jnp.sum(p, axis=-1, keepdims=True), approx=True)
        head_outs.append(jnp.einsum("bqk,bkd->bqd", p.astype(jnp.bfloat16),
                                    v3[:, :, sl],
                                    preferred_element_type=jnp.float32))
    # Pack heads back into one lane-dense slab and run a single K=Fp output
    # projection (no per-head K=dh dots, no serial accumulation chain).
    attn = jnp.concatenate(head_outs, axis=-1).reshape(rows, Fp).astype(jnp.bfloat16)
    attn = jnp.dot(attn, wo_ref[...], preferred_element_type=jnp.float32) + bo_ref[...]
    y = y + alpha * attn

    # ---------------- FFN branch: y += alpha * FFN(LN2(y)) -------------------
    y2 = _layer_norm(y, ln2w_ref[...], ln2b_ref[...], f_real).astype(jnp.bfloat16)
    hid = jnp.dot(y2, w1_ref[...], preferred_element_type=jnp.float32) + b1_ref[...]
    hid = _gelu(hid, exact_gelu).astype(jnp.bfloat16)
    ffn = jnp.dot(hid, w2_ref[...], preferred_element_type=jnp.float32) + b2_ref[...]
    y = y + alpha * ffn

    y_ref[...] = y

    @pl.when(l == n_layers - 1)
    def _():
        out_ref[...] = y.reshape(TB, L, Fp).astype(out_ref.dtype)


# ------------------------------ host-side packing ----------------------------

def _pad_sizes(F, ffn, n_heads):
    dh = F // n_heads
    step = LANE // math.gcd(n_heads, LANE)
    dh_pad = _round_up(dh, step)          # => Fp = H * dh_pad is a multiple of 128
    Fp = n_heads * dh_pad
    Np = _round_up(ffn, LANE)
    return dh, dh_pad, Fp, Np


def _pack_block(p, F, n_heads, dh, dh_pad, Fp, Np):
    """Zero-pad / head-repack one layer's params into lane-dense shapes.
    Matmul weights are stored as bf16; biases / LN params / alpha stay f32."""
    scale = 1.0 / math.sqrt(dh)

    def pad2(a, r, c):
        return jnp.pad(a, ((0, r - a.shape[0]), (0, c - a.shape[1])))

    def head_cols(w, b):
        # (F, F)/(1, F) -> (Fp, Fp)/(1, Fp); head h's dh output columns are
        # placed at lane offset h*dh_pad (padded head lanes stay zero).
        wp = jnp.zeros((Fp, Fp), jnp.float32)
        bp = jnp.zeros((1, Fp), jnp.float32)
        for h in range(n_heads):
            wp = wp.at[:F, h * dh_pad:h * dh_pad + dh].set(w[:, h * dh:(h + 1) * dh])
            bp = bp.at[:, h * dh_pad:h * dh_pad + dh].set(b[:, h * dh:(h + 1) * dh])
        return wp, bp

    def head_rows(w):
        # (F, F) -> (Fp, Fp); head h's dh input rows sit at row offset h*dh_pad.
        wp = jnp.zeros((Fp, Fp), jnp.float32)
        for h in range(n_heads):
            wp = wp.at[h * dh_pad:h * dh_pad + dh, :F].set(w[h * dh:(h + 1) * dh, :])
        return wp

    wq, bq = head_cols(p["wq"] * scale, p["bq"] * scale)  # fold 1/sqrt(dh) into q
    wk, bk = head_cols(p["wk"], p["bk"])
    wv, bv = head_cols(p["wv"], p["bv"])
    wo = head_rows(p["wo"])

    return {
        "ln1_w": pad2(p["ln1_w"], 1, Fp), "ln1_b": pad2(p["ln1_b"], 1, Fp),
        "wq": wq.astype(jnp.bfloat16), "bq": bq,
        "wk": wk.astype(jnp.bfloat16), "bk": bk,
        "wv": wv.astype(jnp.bfloat16), "bv": bv,
        "wo": wo.astype(jnp.bfloat16), "bo": pad2(p["bo"], 1, Fp),
        "ln2_w": pad2(p["ln2_w"], 1, Fp), "ln2_b": pad2(p["ln2_b"], 1, Fp),
        "w1": pad2(p["w1"], Fp, Np).astype(jnp.bfloat16), "b1": pad2(p["b1"], 1, Np),
        "w2": pad2(p["w2"], Np, Fp).astype(jnp.bfloat16), "b2": pad2(p["b2"], 1, Fp),
        "alpha": jnp.asarray(p["alpha"], jnp.float32).reshape(()),
    }


def _pick_batch_tile(B, L, target_rows=512, force_two_steps=False):
    """Batch elements per grid step.  Default: largest tile with ~target_rows
    rows (best for single-TensorCore v5e/v6e).  force_two_steps=True keeps >=2
    batch steps so the 'parallel' axis can split across the two v7x cores."""
    tb = max(1, min(B, max(1, target_rows // max(L, 1))))
    while B % tb:
        tb -= 1
    if force_two_steps and B >= 2 and B // tb < 2:
        tb = max(1, B // 2)
        while B % tb:
            tb -= 1
    return max(tb, 1)


def transformer_encoder(x, block_params_list, n_heads, *,
                        batch_tile=None, force_two_batch_steps=False,
                        exact_gelu=True):
    """Fused n_blocks-layer TransformerEncoder forward on (B, L, F)."""
    B, L, F = x.shape
    n_blocks = len(block_params_list)
    assert F % n_heads == 0, "n_heads must divide features"
    ffn = block_params_list[0]["w1"].shape[1]

    dh, dh_pad, Fp, Np = _pad_sizes(F, ffn, n_heads)
    packed = [_pack_block(p, F, n_heads, dh, dh_pad, Fp, Np)
              for p in block_params_list]
    stacked = {name: jnp.stack([blk[name] for blk in packed], axis=0)
               for name in PARAM_ORDER}
    x_p = jnp.pad(x, ((0, 0), (0, 0), (0, Fp - F)))

    TB = batch_tile if batch_tile is not None else _pick_batch_tile(
        B, L, force_two_steps=force_two_batch_steps)
    assert B % TB == 0
    grid = (B // TB, n_blocks)

    kernel = functools.partial(encoder_kernel, n_heads, dh_pad, float(F), exact_gelu)

    in_specs = [pl.BlockSpec((TB, L, Fp), lambda b, l: (b, 0, 0))]
    params = []
    for name in PARAM_ORDER:
        p = stacked[name]
        params.append(p)
        if name == "alpha":
            # (n_blocks,) rezero scalars live in SMEM (scalar path).
            in_specs.append(pl.BlockSpec(memory_space=pltpu.MemorySpace.SMEM))
        else:
            # One layer of this param per grid step (layer axis squeezed out),
            # so only the current/next layer's weights are VMEM resident.
            zeros = (0,) * (p.ndim - 1)
            in_specs.append(pl.BlockSpec((None,) + p.shape[1:],
                                         lambda b, l, _z=zeros: (l,) + _z))

    # VMEM budget: ~3x one streamed layer of weights (double buffer + slack) +
    # activation blocks + carried f32 scratch + intermediate headroom.
    per_layer_w = sum(stacked[n].size // n_blocks * stacked[n].dtype.itemsize
                      for n in PARAM_ORDER if n != "alpha")
    act_bytes = TB * L * Fp * 4
    vmem_est = 3 * per_layer_w + 5 * act_bytes + TB * L * max(Fp, Np) * 4 * 8
    vmem_limit = int(min(max(vmem_est, 32 * 1024 * 1024), 64 * 1024 * 1024))

    out = pl.pallas_call(
        kernel,
        out_shape=jax.ShapeDtypeStruct((B, L, Fp), x.dtype),
        grid=grid,
        in_specs=in_specs,
        out_specs=pl.BlockSpec((TB, L, Fp), lambda b, l: (b, 0, 0)),
        scratch_shapes=[pltpu.VMEM((TB * L, Fp), jnp.float32)],
        compiler_params=pltpu.CompilerParams(
            dimension_semantics=("parallel", "arbitrary"),
            vmem_limit_bytes=vmem_limit),
    )(x_p, *params)
    return out[:, :, :F]


# ------------------------------ pure-JAX reference ---------------------------

def _block_ref(x, p, n_heads):
    B, L, F = x.shape
    Dh = F // n_heads

    def ln(z, w, b):
        mu = z.mean(-1, keepdims=True)
        var = ((z - mu) ** 2).mean(-1, keepdims=True)
        return (z - mu) / jnp.sqrt(var + LN_EPS) * w + b

    alpha = p["alpha"]
    y1 = ln(x, p["ln1_w"], p["ln1_b"])
    q = y1 @ p["wq"] + p["bq"]
    k = y1 @ p["wk"] + p["bk"]
    v = y1 @ p["wv"] + p["bv"]
    qh = q.reshape(B, L, n_heads, Dh).transpose(0, 2, 1, 3)
    kh = k.reshape(B, L, n_heads, Dh).transpose(0, 2, 1, 3)
    vh = v.reshape(B, L, n_heads, Dh).transpose(0, 2, 1, 3)
    s = jnp.einsum("bhld,bhmd->bhlm", qh, kh) / jnp.sqrt(Dh)
    a = jax.nn.softmax(s, axis=-1)
    o = jnp.einsum("bhlm,bhmd->bhld", a, vh).transpose(0, 2, 1, 3).reshape(B, L, F)
    o = o @ p["wo"] + p["bo"]
    y = x + alpha * o
    y2 = ln(y, p["ln2_w"], p["ln2_b"])
    h = jax.nn.gelu(y2 @ p["w1"] + p["b1"], approximate=False)
    return y + alpha * (h @ p["w2"] + p["b2"])


def encoder_ref(x, block_params_list, n_heads):
    y = x
    for p in block_params_list:
        y = _block_ref(y, p, n_heads)
    return y


# --------------------------- deterministic param init ------------------------

def init_block_params(key, features, ffn_features):
    ks = jax.random.split(key, 12)
    n = lambda k, shape, s=0.1: s * jax.random.normal(k, shape, jnp.float32)
    return {
        "ln1_w": jnp.ones((1, features), jnp.float32),
        "ln1_b": jnp.zeros((1, features), jnp.float32),
        "wq": n(ks[0], (features, features)),
        "bq": n(ks[1], (1, features), 0.02),
        "wk": n(ks[2], (features, features)),
        "bk": n(ks[3], (1, features), 0.02),
        "wv": n(ks[4], (features, features)),
        "bv": n(ks[5], (1, features), 0.02),
        "wo": n(ks[6], (features, features)),
        "bo": n(ks[7], (1, features), 0.02),
        "ln2_w": jnp.ones((1, features), jnp.float32),
        "ln2_b": jnp.zeros((1, features), jnp.float32),
        "w1": n(ks[8], (features, ffn_features)),
        "b1": n(ks[9], (1, ffn_features), 0.02),
        "w2": n(ks[10], (ffn_features, features)),
        "b2": n(ks[11], (1, features), 0.02),
        # rezero: the module inits re_alpha = 0; nonzero here so the attention
        # and FFN paths are exercised numerically.
        "alpha": jnp.array(0.1, jnp.float32),
    }


if __name__ == "__main__":
    batch, seq, features = 2, 8, 32
    n_heads, ffn_features, n_blocks = 4, 64, 2

    key = jax.random.PRNGKey(0)
    kx, *kblocks = jax.random.split(key, n_blocks + 1)

    x = jax.random.normal(kx, (batch, seq, features), jnp.float32)
    block_params_list = [
        init_block_params(kb, features, ffn_features) for kb in kblocks
    ]

    out = transformer_encoder(x, block_params_list, n_heads)
    out = jax.block_until_ready(out)

    ref = encoder_ref(x, block_params_list, n_heads)
    assert out.shape == (batch, seq, features)
    max_err = float(jnp.max(jnp.abs(out - ref)))
    # bf16 matmul operands + approx softmax reciprocal -> relaxed tolerance.
    assert jnp.allclose(out, ref, atol=2e-2, rtol=2e-2), (
        f"mismatch vs JAX reference (max abs err {max_err:.3e})")

    print("KERNEL_OK")
</pallas_src>

<mosaic_0001>
module attributes {stable_mosaic.version = 11 : i64} {
  func.func @encoder_kernel(%arg0: i32, %arg1: i32, %arg2: memref<2x8x128xf32, #tpu.memory_space<vmem>>, %arg3: memref<1x1x128xf32, #tpu.memory_space<vmem>>, %arg4: memref<1x1x128xf32, #tpu.memory_space<vmem>>, %arg5: memref<1x128x128xbf16, #tpu.memory_space<vmem>>, %arg6: memref<1x1x128xf32, #tpu.memory_space<vmem>>, %arg7: memref<1x128x128xbf16, #tpu.memory_space<vmem>>, %arg8: memref<1x1x128xf32, #tpu.memory_space<vmem>>, %arg9: memref<1x128x128xbf16, #tpu.memory_space<vmem>>, %arg10: memref<1x1x128xf32, #tpu.memory_space<vmem>>, %arg11: memref<1x128x128xbf16, #tpu.memory_space<vmem>>, %arg12: memref<1x1x128xf32, #tpu.memory_space<vmem>>, %arg13: memref<1x1x128xf32, #tpu.memory_space<vmem>>, %arg14: memref<1x1x128xf32, #tpu.memory_space<vmem>>, %arg15: memref<1x128x128xbf16, #tpu.memory_space<vmem>>, %arg16: memref<1x1x128xf32, #tpu.memory_space<vmem>>, %arg17: memref<1x128x128xbf16, #tpu.memory_space<vmem>>, %arg18: memref<1x1x128xf32, #tpu.memory_space<vmem>>, %arg19: memref<2xf32, #tpu.memory_space<smem>>, %arg20: memref<2x8x128xf32, #tpu.memory_space<vmem>>, %arg21: memref<16x128xf32, #tpu.memory_space<vmem>>) attributes {dimension_semantics = [#tpu.dimension_semantics<parallel>, #tpu.dimension_semantics<arbitrary>], iteration_bounds = array<i64: 1, 2>, scalar_prefetch = 0 : i64, scratch_operands = 1 : i64, tpu.core_type = #tpu.core_type<tc>, window_params = [{transform_indices = @transform_0, window_bounds = array<i64: 2, 8, 128>}, {transform_indices = @transform_1, window_bounds = array<i64: 1, 1, 128>}, {transform_indices = @transform_2, window_bounds = array<i64: 1, 1, 128>}, {transform_indices = @transform_3, window_bounds = array<i64: 1, 128, 128>}, {transform_indices = @transform_4, window_bounds = array<i64: 1, 1, 128>}, {transform_indices = @transform_5, window_bounds = array<i64: 1, 128, 128>}, {transform_indices = @transform_6, window_bounds = array<i64: 1, 1, 128>}, {transform_indices = @transform_7, window_bounds = array<i64: 1, 128, 128>}, {transform_indices = @transform_8, window_bounds = array<i64: 1, 1, 128>}, {transform_indices = @transform_9, window_bounds = array<i64: 1, 128, 128>}, {transform_indices = @transform_10, window_bounds = array<i64: 1, 1, 128>}, {transform_indices = @transform_11, window_bounds = array<i64: 1, 1, 128>}, {transform_indices = @transform_12, window_bounds = array<i64: 1, 1, 128>}, {transform_indices = @transform_13, window_bounds = array<i64: 1, 128, 128>}, {transform_indices = @transform_14, window_bounds = array<i64: 1, 1, 128>}, {transform_indices = @transform_15, window_bounds = array<i64: 1, 128, 128>}, {transform_indices = @transform_16, window_bounds = array<i64: 1, 1, 128>}, {transform_indices = @transform_17, window_bounds = array<i64: 2>}, {transform_indices = @transform_18, window_bounds = array<i64: 2, 8, 128>}]} {
    %c0_i32 = arith.constant 0 : i32
    %0 = arith.cmpi eq, %arg1, %c0_i32 : i32
    %1 = arith.extui %0 : i1 to i32
    %c0_i32_0 = arith.constant 0 : i32
    %2 = arith.cmpi ne, %1, %c0_i32_0 : i32
    scf.if %2 {
      %c0_99 = arith.constant 0 : index
      %c0_100 = arith.constant 0 : index
      %c0_101 = arith.constant 0 : index
      %226 = vector.load %arg2[%c0_99, %c0_100, %c0_101] : memref<2x8x128xf32, #tpu.memory_space<vmem>>, vector<2x8x128xf32>
      %227 = vector.shape_cast %226 : vector<2x8x128xf32> to vector<16x128xf32>
      %c0_102 = arith.constant 0 : index
      %c0_103 = arith.constant 0 : index
      %228 = vector.load %arg21[%c0_102, %c0_103] : memref<16x128xf32, #tpu.memory_space<vmem>>, vector<16x128xf32>
      tpu.vector_store %arg21[%c0_102, %c0_103], %227 {strides = array<i32>} : memref<16x128xf32, #tpu.memory_space<vmem>>, vector<16x128xf32>,
    } else {
    }
    %c0 = arith.constant 0 : index
    %c0_1 = arith.constant 0 : index
    %3 = vector.load %arg21[%c0, %c0_1] : memref<16x128xf32, #tpu.memory_space<vmem>>, vector<16x128xf32>
    %4 = arith.index_cast %arg1 : i32 to index
    %5 = memref.load %arg19[%4] : memref<2xf32, #tpu.memory_space<smem>>
    %c0_2 = arith.constant 0 : index
    %c0_3 = arith.constant 0 : index
    %c0_4 = arith.constant 0 : index
    %6 = vector.load %arg3[%c0_2, %c0_3, %c0_4] : memref<1x1x128xf32, #tpu.memory_space<vmem>>, vector<1x1x128xf32>
    %7 = vector.shape_cast %6 : vector<1x1x128xf32> to vector<1x128xf32>
    %c0_5 = arith.constant 0 : index
    %c0_6 = arith.constant 0 : index
    %c0_7 = arith.constant 0 : index
    %8 = vector.load %arg4[%c0_5, %c0_6, %c0_7] : memref<1x1x128xf32, #tpu.memory_space<vmem>>, vector<1x1x128xf32>
    %9 = vector.shape_cast %8 : vector<1x1x128xf32> to vector<1x128xf32>
    %cst = arith.constant dense<0.000000e+00> : vector<16xf32>
    %10 = vector.multi_reduction <add>, %3, %cst [1] : vector<16x128xf32> to vector<16xf32>
    %11 = vector.shape_cast %10 : vector<16xf32> to vector<16x1xf32>
    %cst_8 = arith.constant 3.125000e-02 : f32
    %12 = vector.broadcast %cst_8 : f32 to vector<16x1xf32>
    %13 = arith.mulf %11, %12 : vector<16x1xf32>
    %14 = arith.mulf %3, %3 : vector<16x128xf32>
    %cst_9 = arith.constant dense<0.000000e+00> : vector<16xf32>
    %15 = vector.multi_reduction <add>, %14, %cst_9 [1] : vector<16x128xf32> to vector<16xf32>
    %16 = vector.shape_cast %15 : vector<16xf32> to vector<16x1xf32>
    %cst_10 = arith.constant 3.125000e-02 : f32
    %17 = vector.broadcast %cst_10 : f32 to vector<16x1xf32>
    %18 = arith.mulf %16, %17 : vector<16x1xf32>
    %19 = arith.mulf %13, %13 : vector<16x1xf32>
    %20 = arith.subf %18, %19 : vector<16x1xf32>
    %21 = vector.broadcast %13 : vector<16x1xf32> to vector<16x128xf32>
    %22 = arith.subf %3, %21 : vector<16x128xf32>
    %cst_11 = arith.constant 9.99999974E-6 : f32
    %23 = vector.broadcast %cst_11 : f32 to vector<16x1xf32>
    %24 = arith.addf %20, %23 : vector<16x1xf32>
    %25 = math.rsqrt %24 : vector<16x1xf32>
    %26 = vector.broadcast %25 : vector<16x1xf32> to vector<16x128xf32>
    %27 = arith.mulf %22, %26 : vector<16x128xf32>
    %28 = vector.broadcast %7 : vector<1x128xf32> to vector<16x128xf32>
    %29 = arith.mulf %27, %28 : vector<16x128xf32>
    %30 = vector.broadcast %9 : vector<1x128xf32> to vector<16x128xf32>
    %31 = arith.addf %29, %30 : vector<16x128xf32>
    %32 = arith.truncf %31 : vector<16x128xf32> to vector<16x128xbf16>
    %c0_12 = arith.constant 0 : index
    %c0_13 = arith.constant 0 : index
    %c0_14 = arith.constant 0 : index
    %33 = vector.load %arg5[%c0_12, %c0_13, %c0_14] : memref<1x128x128xbf16, #tpu.memory_space<vmem>>, vector<1x128x128xbf16>
    %34 = vector.shape_cast %33 : vector<1x128x128xbf16> to vector<128x128xbf16>
    %cst_15 = arith.constant dense<0.000000e+00> : vector<16x128xf32>
    %35 = tpu.matmul %32, %34, %cst_15 {dimension_numbers = #tpu.dot_dimension_numbers<[1], [0], [0], [1], [0, 0, 1, 1], [], []>} : vector<16x128xbf16>, vector<128x128xbf16>, vector<16x128xf32> -> vector<16x128xf32>
    %c0_16 = arith.constant 0 : index
    %c0_17 = arith.constant 0 : index
    %c0_18 = arith.constant 0 : index
    %36 = vector.load %arg6[%c0_16, %c0_17, %c0_18] : memref<1x1x128xf32, #tpu.memory_space<vmem>>, vector<1x1x128xf32>
    %37 = vector.shape_cast %36 : vector<1x1x128xf32> to vector<1x128xf32>
    %38 = vector.broadcast %37 : vector<1x128xf32> to vector<16x128xf32>
    %39 = arith.addf %35, %38 : vector<16x128xf32>
    %c0_19 = arith.constant 0 : index
    %c0_20 = arith.constant 0 : index
    %c0_21 = arith.constant 0 : index
    %40 = vector.load %arg7[%c0_19, %c0_20, %c0_21] : memref<1x128x128xbf16, #tpu.memory_space<vmem>>, vector<1x128x128xbf16>
    %41 = vector.shape_cast %40 : vector<1x128x128xbf16> to vector<128x128xbf16>
    %cst_22 = arith.constant dense<0.000000e+00> : vector<16x128xf32>
    %42 = tpu.matmul %32, %41, %cst_22 {dimension_numbers = #tpu.dot_dimension_numbers<[1], [0], [0], [1], [0, 0, 1, 1], [], []>} : vector<16x128xbf16>, vector<128x128xbf16>, vector<16x128xf32> -> vector<16x128xf32>
    %c0_23 = arith.constant 0 : index
    %c0_24 = arith.constant 0 : index
    %c0_25 = arith.constant 0 : index
    %43 = vector.load %arg8[%c0_23, %c0_24, %c0_25] : memref<1x1x128xf32, #tpu.memory_space<vmem>>, vector<1x1x128xf32>
    %44 = vector.shape_cast %43 : vector<1x1x128xf32> to vector<1x128xf32>
    %45 = vector.broadcast %44 : vector<1x128xf32> to vector<16x128xf32>
    %46 = arith.addf %42, %45 : vector<16x128xf32>
    %c0_26 = arith.constant 0 : index
    %c0_27 = arith.constant 0 : index
    %c0_28 = arith.constant 0 : index
    %47 = vector.load %arg9[%c0_26, %c0_27, %c0_28] : memref<1x128x128xbf16, #tpu.memory_space<vmem>>, vector<1x128x128xbf16>
    %48 = vector.shape_cast %47 : vector<1x128x128xbf16> to vector<128x128xbf16>
    %cst_29 = arith.constant dense<0.000000e+00> : vector<16x128xf32>
    %49 = tpu.matmul %32, %48, %cst_29 {dimension_numbers = #tpu.dot_dimension_numbers<[1], [0], [0], [1], [0, 0, 1, 1], [], []>} : vector<16x128xbf16>, vector<128x128xbf16>, vector<16x128xf32> -> vector<16x128xf32>
    %c0_30 = arith.constant 0 : index
    %c0_31 = arith.constant 0 : index
    %c0_32 = arith.constant 0 : index
    %50 = vector.load %arg10[%c0_30, %c0_31, %c0_32] : memref<1x1x128xf32, #tpu.memory_space<vmem>>, vector<1x1x128xf32>
    %51 = vector.shape_cast %50 : vector<1x1x128xf32> to vector<1x128xf32>
    %52 = vector.broadcast %51 : vector<1x128xf32> to vector<16x128xf32>
    %53 = arith.addf %49, %52 : vector<16x128xf32>
    %54 = vector.shape_cast %39 : vector<16x128xf32> to vector<2x8x128xf32>
    %55 = arith.truncf %54 : vector<2x8x128xf32> to vector<2x8x128xbf16>
    %56 = vector.shape_cast %46 : vector<16x128xf32> to vector<2x8x128xf32>
    %57 = arith.truncf %56 : vector<2x8x128xf32> to vector<2x8x128xbf16>
    %58 = vector.shape_cast %53 : vector<16x128xf32> to vector<2x8x128xf32>
    %59 = arith.truncf %58 : vector<2x8x128xf32> to vector<2x8x128xbf16>
    %60 = vector.extract_strided_slice %55 {offsets = [0, 0, 0], sizes = [2, 8, 32], strides = [1, 1, 1]} : vector<2x8x128xbf16> to vector<2x8x32xbf16>
    %61 = vector.extract_strided_slice %57 {offsets = [0, 0, 0], sizes = [2, 8, 32], strides = [1, 1, 1]} : vector<2x8x128xbf16> to vector<2x8x32xbf16>
    "tpu.trace_start"() <{level = 10 : i32, message = "bqd,bkd->bqk"}> : () -> ()
    %cst_33 = arith.constant dense<0.000000e+00> : vector<2x8x8xf32>
    %62 = tpu.matmul %60, %61, %cst_33 {dimension_numbers = #tpu.dot_dimension_numbers<[2], [2], [1], [1], [0, 0, 0, 1, 1, 1], [0], [0]>} : vector<2x8x32xbf16>, vector<2x8x32xbf16>, vector<2x8x8xf32> -> vector<2x8x8xf32>
    "tpu.trace_stop"() : () -> ()
    %cst_34 = arith.constant dense<0xFF800000> : vector<2x8xf32>
    %63 = vector.multi_reduction <maximumf>, %62, %cst_34 [2] : vector<2x8x8xf32> to vector<2x8xf32>
    %64 = vector.shape_cast %63 : vector<2x8xf32> to vector<2x8x1xf32>
    %65 = vector.broadcast %64 : vector<2x8x1xf32> to vector<2x8x8xf32>
    %66 = arith.subf %62, %65 : vector<2x8x8xf32>
    %67 = math.exp %66 : vector<2x8x8xf32>
    %cst_35 = arith.constant dense<0.000000e+00> : vector<2x8xf32>
    %68 = vector.multi_reduction <add>, %67, %cst_35 [2] : vector<2x8x8xf32> to vector<2x8xf32>
    %69 = vector.shape_cast %68 : vector<2x8xf32> to vector<2x8x1xf32>
    %70 = tpu.reciprocal %69 {approx = true} : vector<2x8x1xf32> -> vector<2x8x1xf32>
    %71 = vector.broadcast %70 : vector<2x8x1xf32> to vector<2x8x8xf32>
    %72 = arith.mulf %67, %71 : vector<2x8x8xf32>
    %73 = arith.truncf %72 : vector<2x8x8xf32> to vector<2x8x8xbf16>
    %74 = vector.extract_strided_slice %59 {offsets = [0, 0, 0], sizes = [2, 8, 32], strides = [1, 1, 1]} : vector<2x8x128xbf16> to vector<2x8x32xbf16>
    "tpu.trace_start"() <{level = 10 : i32, message = "bqk,bkd->bqd"}> : () -> ()
    %cst_36 = arith.constant dense<0.000000e+00> : vector<2x8x32xf32>
    %75 = tpu.matmul %73, %74, %cst_36 {dimension_numbers = #tpu.dot_dimension_numbers<[2], [1], [1], [2], [0, 0, 0, 1, 1, 2], [0], [0]>} : vector<2x8x8xbf16>, vector<2x8x32xbf16>, vector<2x8x32xf32> -> vector<2x8x32xf32>
    "tpu.trace_stop"() : () -> ()
    %76 = vector.extract_strided_slice %55 {offsets = [0, 0, 32], sizes = [2, 8, 32], strides = [1, 1, 1]} : vector<2x8x128xbf16> to vector<2x8x32xbf16>
    %77 = vector.extract_strided_slice %57 {offsets = [0, 0, 32], sizes = [2, 8, 32], strides = [1, 1, 1]} : vector<2x8x128xbf16> to vector<2x8x32xbf16>
    "tpu.trace_start"() <{level = 10 : i32, message = "bqd,bkd->bqk"}> : () -> ()
    %cst_37 = arith.constant dense<0.000000e+00> : vector<2x8x8xf32>
    %78 = tpu.matmul %76, %77, %cst_37 {dimension_numbers = #tpu.dot_dimension_numbers<[2], [2], [1], [1], [0, 0, 0, 1, 1, 1], [0], [0]>} : vector<2x8x32xbf16>, vector<2x8x32xbf16>, vector<2x8x8xf32> -> vector<2x8x8xf32>
    "tpu.trace_stop"() : () -> ()
    %cst_38 = arith.constant dense<0xFF800000> : vector<2x8xf32>
    %79 = vector.multi_reduction <maximumf>, %78, %cst_38 [2] : vector<2x8x8xf32> to vector<2x8xf32>
    %80 = vector.shape_cast %79 : vector<2x8xf32> to vector<2x8x1xf32>
    %81 = vector.broadcast %80 : vector<2x8x1xf32> to vector<2x8x8xf32>
    %82 = arith.subf %78, %81 : vector<2x8x8xf32>
    %83 = math.exp %82 : vector<2x8x8xf32>
    %cst_39 = arith.constant dense<0.000000e+00> : vector<2x8xf32>
    %84 = vector.multi_reduction <add>, %83, %cst_39 [2] : vector<2x8x8xf32> to vector<2x8xf32>
    %85 = vector.shape_cast %84 : vector<2x8xf32> to vector<2x8x1xf32>
    %86 = tpu.reciprocal %85 {approx = true} : vector<2x8x1xf32> -> vector<2x8x1xf32>
    %87 = vector.broadcast %86 : vector<2x8x1xf32> to vector<2x8x8xf32>
    %88 = arith.mulf %83, %87 : vector<2x8x8xf32>
    %89 = arith.truncf %88 : vector<2x8x8xf32> to vector<2x8x8xbf16>
    %90 = vector.extract_strided_slice %59 {offsets = [0, 0, 32], sizes = [2, 8, 32], strides = [1, 1, 1]} : vector<2x8x128xbf16> to vector<2x8x32xbf16>
    "tpu.trace_start"() <{level = 10 : i32, message = "bqk,bkd->bqd"}> : () -> ()
    %cst_40 = arith.constant dense<0.000000e+00> : vector<2x8x32xf32>
    %91 = tpu.matmul %89, %90, %cst_40 {dimension_numbers = #tpu.dot_dimension_numbers<[2], [1], [1], [2], [0, 0, 0, 1, 1, 2], [0], [0]>} : vector<2x8x8xbf16>, vector<2x8x32xbf16>, vector<2x8x32xf32> -> vector<2x8x32xf32>
    "tpu.trace_stop"() : () -> ()
    %92 = vector.extract_strided_slice %55 {offsets = [0, 0, 64], sizes = [2, 8, 32], strides = [1, 1, 1]} : vector<2x8x128xbf16> to vector<2x8x32xbf16>
    %93 = vector.extract_strided_slice %57 {offsets = [0, 0, 64], sizes = [2, 8, 32], strides = [1, 1, 1]} : vector<2x8x128xbf16> to vector<2x8x32xbf16>
    "tpu.trace_start"() <{level = 10 : i32, message = "bqd,bkd->bqk"}> : () -> ()
    %cst_41 = arith.constant dense<0.000000e+00> : vector<2x8x8xf32>
    %94 = tpu.matmul %92, %93, %cst_41 {dimension_numbers = #tpu.dot_dimension_numbers<[2], [2], [1], [1], [0, 0, 0, 1, 1, 1], [0], [0]>} : vector<2x8x32xbf16>, vector<2x8x32xbf16>, vector<2x8x8xf32> -> vector<2x8x8xf32>
    "tpu.trace_stop"() : () -> ()
    %cst_42 = arith.constant dense<0xFF800000> : vector<2x8xf32>
    %95 = vector.multi_reduction <maximumf>, %94, %cst_42 [2] : vector<2x8x8xf32> to vector<2x8xf32>
    %96 = vector.shape_cast %95 : vector<2x8xf32> to vector<2x8x1xf32>
    %97 = vector.broadcast %96 : vector<2x8x1xf32> to vector<2x8x8xf32>
    %98 = arith.subf %94, %97 : vector<2x8x8xf32>
    %99 = math.exp %98 : vector<2x8x8xf32>
    %cst_43 = arith.constant dense<0.000000e+00> : vector<2x8xf32>
    %100 = vector.multi_reduction <add>, %99, %cst_43 [2] : vector<2x8x8xf32> to vector<2x8xf32>
    %101 = vector.shape_cast %100 : vector<2x8xf32> to vector<2x8x1xf32>
    %102 = tpu.reciprocal %101 {approx = true} : vector<2x8x1xf32> -> vector<2x8x1xf32>
    %103 = vector.broadcast %102 : vector<2x8x1xf32> to vector<2x8x8xf32>
    %104 = arith.mulf %99, %103 : vector<2x8x8xf32>
    %105 = arith.truncf %104 : vector<2x8x8xf32> to vector<2x8x8xbf16>
    %106 = vector.extract_strided_slice %59 {offsets = [0, 0, 64], sizes = [2, 8, 32], strides = [1, 1, 1]} : vector<2x8x128xbf16> to vector<2x8x32xbf16>
    "tpu.trace_start"() <{level = 10 : i32, message = "bqk,bkd->bqd"}> : () -> ()
    %cst_44 = arith.constant dense<0.000000e+00> : vector<2x8x32xf32>
    %107 = tpu.matmul %105, %106, %cst_44 {dimension_numbers = #tpu.dot_dimension_numbers<[2], [1], [1], [2], [0, 0, 0, 1, 1, 2], [0], [0]>} : vector<2x8x8xbf16>, vector<2x8x32xbf16>, vector<2x8x32xf32> -> vector<2x8x32xf32>
    "tpu.trace_stop"() : () -> ()
    %108 = vector.extract_strided_slice %55 {offsets = [0, 0, 96], sizes = [2, 8, 32], strides = [1, 1, 1]} : vector<2x8x128xbf16> to vector<2x8x32xbf16>
    %109 = vector.extract_strided_slice %57 {offsets = [0, 0, 96], sizes = [2, 8, 32], strides = [1, 1, 1]} : vector<2x8x128xbf16> to vector<2x8x32xbf16>
    "tpu.trace_start"() <{level = 10 : i32, message = "bqd,bkd->bqk"}> : () -> ()
    %cst_45 = arith.constant dense<0.000000e+00> : vector<2x8x8xf32>
    %110 = tpu.matmul %108, %109, %cst_45 {dimension_numbers = #tpu.dot_dimension_numbers<[2], [2], [1], [1], [0, 0, 0, 1, 1, 1], [0], [0]>} : vector<2x8x32xbf16>, vector<2x8x32xbf16>, vector<2x8x8xf32> -> vector<2x8x8xf32>
    "tpu.trace_stop"() : () -> ()
    %cst_46 = arith.constant dense<0xFF800000> : vector<2x8xf32>
    %111 = vector.multi_reduction <maximumf>, %110, %cst_46 [2] : vector<2x8x8xf32> to vector<2x8xf32>
    %112 = vector.shape_cast %111 : vector<2x8xf32> to vector<2x8x1xf32>
    %113 = vector.broadcast %112 : vector<2x8x1xf32> to vector<2x8x8xf32>
    %114 = arith.subf %110, %113 : vector<2x8x8xf32>
    %115 = math.exp %114 : vector<2x8x8xf32>
    %cst_47 = arith.constant dense<0.000000e+00> : vector<2x8xf32>
    %116 = vector.multi_reduction <add>, %115, %cst_47 [2] : vector<2x8x8xf32> to vector<2x8xf32>
    %117 = vector.shape_cast %116 : vector<2x8xf32> to vector<2x8x1xf32>
    %118 = tpu.reciprocal %117 {approx = true} : vector<2x8x1xf32> -> vector<2x8x1xf32>
    %119 = vector.broadcast %118 : vector<2x8x1xf32> to vector<2x8x8xf32>
    %120 = arith.mulf %115, %119 : vector<2x8x8xf32>
    %121 = arith.truncf %120 : vector<2x8x8xf32> to vector<2x8x8xbf16>
    %122 = vector.extract_strided_slice %59 {offsets = [0, 0, 96], sizes = [2, 8, 32], strides = [1, 1, 1]} : vector<2x8x128xbf16> to vector<2x8x32xbf16>
    "tpu.trace_start"() <{level = 10 : i32, message = "bqk,bkd->bqd"}> : () -> ()
    %cst_48 = arith.constant dense<0.000000e+00> : vector<2x8x32xf32>
    %123 = tpu.matmul %121, %122, %cst_48 {dimension_numbers = #tpu.dot_dimension_numbers<[2], [1], [1], [2], [0, 0, 0, 1, 1, 2], [0], [0]>} : vector<2x8x8xbf16>, vector<2x8x32xbf16>, vector<2x8x32xf32> -> vector<2x8x32xf32>
    "tpu.trace_stop"() : () -> ()
    %124 = tpu.concatenate %75, %91, %107, %123 in 2 : vector<2x8x32xf32>, vector<2x8x32xf32>, vector<2x8x32xf32>, vector<2x8x32xf32> -> vector<2x8x128xf32>
    %125 = vector.shape_cast %124 : vector<2x8x128xf32> to vector<16x128xf32>
    %126 = arith.truncf %125 : vector<16x128xf32> to vector<16x128xbf16>
    %c0_49 = arith.constant 0 : index
    %c0_50 = arith.constant 0 : index
    %c0_51 = arith.constant 0 : index
    %127 = vector.load %arg11[%c0_49, %c0_50, %c0_51] : memref<1x128x128xbf16, #tpu.memory_space<vmem>>, vector<1x128x128xbf16>
    %128 = vector.shape_cast %127 : vector<1x128x128xbf16> to vector<128x128xbf16>
    %cst_52 = arith.constant dense<0.000000e+00> : vector<16x128xf32>
    %129 = tpu.matmul %126, %128, %cst_52 {dimension_numbers = #tpu.dot_dimension_numbers<[1], [0], [0], [1], [0, 0, 1, 1], [], []>} : vector<16x128xbf16>, vector<128x128xbf16>, vector<16x128xf32> -> vector<16x128xf32>
    %c0_53 = arith.constant 0 : index
    %c0_54 = arith.constant 0 : index
    %c0_55 = arith.constant 0 : index
    %130 = vector.load %arg12[%c0_53, %c0_54, %c0_55] : memref<1x1x128xf32, #tpu.memory_space<vmem>>, vector<1x1x128xf32>
    %131 = vector.shape_cast %130 : vector<1x1x128xf32> to vector<1x128xf32>
    %132 = vector.broadcast %131 : vector<1x128xf32> to vector<16x128xf32>
    %133 = arith.addf %129, %132 : vector<16x128xf32>
    %134 = vector.broadcast %5 : f32 to vector<16x128xf32>
    %135 = arith.mulf %134, %133 : vector<16x128xf32>
    %136 = arith.addf %3, %135 : vector<16x128xf32>
    %c0_56 = arith.constant 0 : index
    %c0_57 = arith.constant 0 : index
    %c0_58 = arith.constant 0 : index
    %137 = vector.load %arg13[%c0_56, %c0_57, %c0_58] : memref<1x1x128xf32, #tpu.memory_space<vmem>>, vector<1x1x128xf32>
    %138 = vector.shape_cast %137 : vector<1x1x128xf32> to vector<1x128xf32>
    %c0_59 = arith.constant 0 : index
    %c0_60 = arith.constant 0 : index
    %c0_61 = arith.constant 0 : index
    %139 = vector.load %arg14[%c0_59, %c0_60, %c0_61] : memref<1x1x128xf32, #tpu.memory_space<vmem>>, vector<1x1x128xf32>
    %140 = vector.shape_cast %139 : vector<1x1x128xf32> to vector<1x128xf32>
    %cst_62 = arith.constant dense<0.000000e+00> : vector<16xf32>
    %141 = vector.multi_reduction <add>, %136, %cst_62 [1] : vector<16x128xf32> to vector<16xf32>
    %142 = vector.shape_cast %141 : vector<16xf32> to vector<16x1xf32>
    %cst_63 = arith.constant 3.125000e-02 : f32
    %143 = vector.broadcast %cst_63 : f32 to vector<16x1xf32>
    %144 = arith.mulf %142, %143 : vector<16x1xf32>
    %145 = arith.mulf %136, %136 : vector<16x128xf32>
    %cst_64 = arith.constant dense<0.000000e+00> : vector<16xf32>
    %146 = vector.multi_reduction <add>, %145, %cst_64 [1] : vector<16x128xf32> to vector<16xf32>
    %147 = vector.shape_cast %146 : vector<16xf32> to vector<16x1xf32>
    %cst_65 = arith.constant 3.125000e-02 : f32
    %148 = vector.broadcast %cst_65 : f32 to vector<16x1xf32>
    %149 = arith.mulf %147, %148 : vector<16x1xf32>
    %150 = arith.mulf %144, %144 : vector<16x1xf32>
    %151 = arith.subf %149, %150 : vector<16x1xf32>
    %152 = vector.broadcast %144 : vector<16x1xf32> to vector<16x128xf32>
    %153 = arith.subf %136, %152 : vector<16x128xf32>
    %cst_66 = arith.constant 9.99999974E-6 : f32
    %154 = vector.broadcast %cst_66 : f32 to vector<16x1xf32>
    %155 = arith.addf %151, %154 : vector<16x1xf32>
    %156 = math.rsqrt %155 : vector<16x1xf32>
    %157 = vector.broadcast %156 : vector<16x1xf32> to vector<16x128xf32>
    %158 = arith.mulf %153, %157 : vector<16x128xf32>
    %159 = vector.broadcast %138 : vector<1x128xf32> to vector<16x128xf32>
    %160 = arith.mulf %158, %159 : vector<16x128xf32>
    %161 = vector.broadcast %140 : vector<1x128xf32> to vector<16x128xf32>
    %162 = arith.addf %160, %161 : vector<16x128xf32>
    %163 = arith.truncf %162 : vector<16x128xf32> to vector<16x128xbf16>
    %c0_67 = arith.constant 0 : index
    %c0_68 = arith.constant 0 : index
    %c0_69 = arith.constant 0 : index
    %164 = vector.load %arg15[%c0_67, %c0_68, %c0_69] : memref<1x128x128xbf16, #tpu.memory_space<vmem>>, vector<1x128x128xbf16>
    %165 = vector.shape_cast %164 : vector<1x128x128xbf16> to vector<128x128xbf16>
    %cst_70 = arith.constant dense<0.000000e+00> : vector<16x128xf32>
    %166 = tpu.matmul %163, %165, %cst_70 {dimension_numbers = #tpu.dot_dimension_numbers<[1], [0], [0], [1], [0, 0, 1, 1], [], []>} : vector<16x128xbf16>, vector<128x128xbf16>, vector<16x128xf32> -> vector<16x128xf32>
    %c0_71 = arith.constant 0 : index
    %c0_72 = arith.constant 0 : index
    %c0_73 = arith.constant 0 : index
    %167 = vector.load %arg16[%c0_71, %c0_72, %c0_73] : memref<1x1x128xf32, #tpu.memory_space<vmem>>, vector<1x1x128xf32>
    %168 = vector.shape_cast %167 : vector<1x1x128xf32> to vector<1x128xf32>
    %169 = vector.broadcast %168 : vector<1x128xf32> to vector<16x128xf32>
    %170 = arith.addf %166, %169 : vector<16x128xf32>
    %cst_74 = arith.constant 5.000000e-01 : f32
    %171 = vector.broadcast %cst_74 : f32 to vector<16x128xf32>
    %172 = arith.mulf %171, %170 : vector<16x128xf32>
    %cst_75 = arith.constant 0.707106769 : f32
    %173 = vector.broadcast %cst_75 : f32 to vector<16x128xf32>
    %174 = arith.mulf %170, %173 : vector<16x128xf32>
    %175 = math.absf %174 : vector<16x128xf32>
    %cst_76 = arith.constant 0.327591091 : f32
    %176 = vector.broadcast %cst_76 : f32 to vector<16x128xf32>
    %177 = arith.mulf %176, %175 : vector<16x128xf32>
    %cst_77 = arith.constant 1.000000e+00 : f32
    %178 = vector.broadcast %cst_77 : f32 to vector<16x128xf32>
    %179 = arith.addf %178, %177 : vector<16x128xf32>
    %cst_78 = arith.constant 1.000000e+00 : f32
    %180 = vector.broadcast %cst_78 : f32 to vector<16x128xf32>
    %181 = arith.divf %180, %179 : vector<16x128xf32>
    %cst_79 = arith.constant 1.06140542 : f32
    %182 = vector.broadcast %cst_79 : f32 to vector<16x128xf32>
    %183 = arith.mulf %182, %181 : vector<16x128xf32>
    %cst_80 = arith.constant -1.45315206 : f32
    %184 = vector.broadcast %cst_80 : f32 to vector<16x128xf32>
    %185 = arith.addf %183, %184 : vector<16x128xf32>
    %186 = arith.mulf %185, %181 : vector<16x128xf32>
    %cst_81 = arith.constant 1.42141378 : f32
    %187 = vector.broadcast %cst_81 : f32 to vector<16x128xf32>
    %188 = arith.addf %186, %187 : vector<16x128xf32>
    %189 = arith.mulf %188, %181 : vector<16x128xf32>
    %cst_82 = arith.constant -0.284496725 : f32
    %190 = vector.broadcast %cst_82 : f32 to vector<16x128xf32>
    %191 = arith.addf %189, %190 : vector<16x128xf32>
    %192 = arith.mulf %191, %181 : vector<16x128xf32>
    %cst_83 = arith.constant 0.254829586 : f32
    %193 = vector.broadcast %cst_83 : f32 to vector<16x128xf32>
    %194 = arith.addf %192, %193 : vector<16x128xf32>
    %195 = arith.mulf %194, %181 : vector<16x128xf32>
    %cst_84 = arith.constant 0.000000e+00 : f32
    %196 = vector.broadcast %cst_84 : f32 to vector<16x128xf32>
    %197 = arith.subf %196, %175 : vector<16x128xf32>
    %198 = arith.mulf %197, %175 : vector<16x128xf32>
    %199 = math.exp %198 : vector<16x128xf32>
    %200 = arith.mulf %195, %199 : vector<16x128xf32>
    %cst_85 = arith.constant 1.000000e+00 : f32
    %201 = vector.broadcast %cst_85 : f32 to vector<16x128xf32>
    %202 = arith.subf %201, %200 : vector<16x128xf32>
    %cst_86 = arith.constant 0.000000e+00 : f32
    %203 = vector.broadcast %cst_86 : f32 to vector<16x128xf32>
    %204 = arith.cmpf olt, %174, %203 : vector<16x128xf32>
    %cst_87 = arith.constant 0.000000e+00 : f32
    %205 = vector.broadcast %cst_87 : f32 to vector<16x128xf32>
    %206 = arith.subf %205, %202 : vector<16x128xf32>
    %207 = arith.select %204, %206, %202 : vector<16x128xi1>, vector<16x128xf32>
    %cst_88 = arith.constant 1.000000e+00 : f32
    %208 = vector.broadcast %cst_88 : f32 to vector<16x128xf32>
    %209 = arith.addf %208, %207 : vector<16x128xf32>
    %210 = arith.mulf %172, %209 : vector<16x128xf32>
    %211 = arith.truncf %210 : vector<16x128xf32> to vector<16x128xbf16>
    %c0_89 = arith.constant 0 : index
    %c0_90 = arith.constant 0 : index
    %c0_91 = arith.constant 0 : index
    %212 = vector.load %arg17[%c0_89, %c0_90, %c0_91] : memref<1x128x128xbf16, #tpu.memory_space<vmem>>, vector<1x128x128xbf16>
    %213 = vector.shape_cast %212 : vector<1x128x128xbf16> to vector<128x128xbf16>
    %cst_92 = arith.constant dense<0.000000e+00> : vector<16x128xf32>
    %214 = tpu.matmul %211, %213, %cst_92 {dimension_numbers = #tpu.dot_dimension_numbers<[1], [0], [0], [1], [0, 0, 1, 1], [], []>} : vector<16x128xbf16>, vector<128x128xbf16>, vector<16x128xf32> -> vector<16x128xf32>
    %c0_93 = arith.constant 0 : index
    %c0_94 = arith.constant 0 : index
    %c0_95 = arith.constant 0 : index
    %215 = vector.load %arg18[%c0_93, %c0_94, %c0_95] : memref<1x1x128xf32, #tpu.memory_space<vmem>>, vector<1x1x128xf32>
    %216 = vector.shape_cast %215 : vector<1x1x128xf32> to vector<1x128xf32>
    %217 = vector.broadcast %216 : vector<1x128xf32> to vector<16x128xf32>
    %218 = arith.addf %214, %217 : vector<16x128xf32>
    %219 = vector.broadcast %5 : f32 to vector<16x128xf32>
    %220 = arith.mulf %219, %218 : vector<16x128xf32>
    %221 = arith.addf %136, %220 : vector<16x128xf32>
    %c0_96 = arith.constant 0 : index
    %c0_97 = arith.constant 0 : index
    %222 = vector.load %arg21[%c0_96, %c0_97] : memref<16x128xf32, #tpu.memory_space<vmem>>, vector<16x128xf32>
    tpu.vector_store %arg21[%c0_96, %c0_97], %221 {strides = array<i32>} : memref<16x128xf32, #tpu.memory_space<vmem>>, vector<16x128xf32>,
    %c1_i32 = arith.constant 1 : i32
    %223 = arith.cmpi eq, %arg1, %c1_i32 : i32
    %224 = arith.extui %223 : i1 to i32
    %c0_i32_98 = arith.constant 0 : i32
    %225 = arith.cmpi ne, %224, %c0_i32_98 : i32
    scf.if %225 {
      %226 = vector.shape_cast %221 : vector<16x128xf32> to vector<2x8x128xf32>
      %c0_99 = arith.constant 0 : index
      %c0_100 = arith.constant 0 : index
      %c0_101 = arith.constant 0 : index
      %227 = vector.load %arg20[%c0_99, %c0_100, %c0_101] : memref<2x8x128xf32, #tpu.memory_space<vmem>>, vector<2x8x128xf32>
      tpu.vector_store %arg20[%c0_99, %c0_100, %c0_101], %226 {strides = array<i32>} : memref<2x8x128xf32, #tpu.memory_space<vmem>>, vector<2x8x128xf32>,
    } else {
    }
    return
  }
  func.func @transform_0(%arg0: i32, %arg1: i32) -> (i32, i32, i32) {
    %c0_i32 = arith.constant 0 : i32
    %c0_i32_0 = arith.constant 0 : i32
    %c0_i32_1 = arith.constant 0 : i32
    return %arg0, %c0_i32, %c0_i32_0 : i32, i32, i32
  }
  func.func @transform_1(%arg0: i32, %arg1: i32) -> (i32, i32, i32) {
    %c0_i32 = arith.constant 0 : i32
    %c0_i32_0 = arith.constant 0 : i32
    %c0_i32_1 = arith.constant 0 : i32
    return %arg1, %c0_i32, %c0_i32_0 : i32, i32, i32
  }
  func.func @transform_2(%arg0: i32, %arg1: i32) -> (i32, i32, i32) {
    %c0_i32 = arith.constant 0 : i32
    %c0_i32_0 = arith.constant 0 : i32
    %c0_i32_1 = arith.constant 0 : i32
    return %arg1, %c0_i32, %c0_i32_0 : i32, i32, i32
  }
  func.func @transform_3(%arg0: i32, %arg1: i32) -> (i32, i32, i32) {
    %c0_i32 = arith.constant 0 : i32
    %c0_i32_0 = arith.constant 0 : i32
    %c0_i32_1 = arith.constant 0 : i32
    return %arg1, %c0_i32, %c0_i32_0 : i32, i32, i32
  }
  func.func @transform_4(%arg0: i32, %arg1: i32) -> (i32, i32, i32) {
    %c0_i32 = arith.constant 0 : i32
    %c0_i32_0 = arith.constant 0 : i32
    %c0_i32_1 = arith.constant 0 : i32
    return %arg1, %c0_i32, %c0_i32_0 : i32, i32, i32
  }
  func.func @transform_5(%arg0: i32, %arg1: i32) -> (i32, i32, i32) {
    %c0_i32 = arith.constant 0 : i32
    %c0_i32_0 = arith.constant 0 : i32
    %c0_i32_1 = arith.constant 0 : i32
    return %arg1, %c0_i32, %c0_i32_0 : i32, i32, i32
  }
  func.func @transform_6(%arg0: i32, %arg1: i32) -> (i32, i32, i32) {
    %c0_i32 = arith.constant 0 : i32
    %c0_i32_0 = arith.constant 0 : i32
    %c0_i32_1 = arith.constant 0 : i32
    return %arg1, %c0_i32, %c0_i32_0 : i32, i32, i32
  }
  func.func @transform_7(%arg0: i32, %arg1: i32) -> (i32, i32, i32) {
    %c0_i32 = arith.constant 0 : i32
    %c0_i32_0 = arith.constant 0 : i32
    %c0_i32_1 = arith.constant 0 : i32
    return %arg1, %c0_i32, %c0_i32_0 : i32, i32, i32
  }
  func.func @transform_8(%arg0: i32, %arg1: i32) -> (i32, i32, i32) {
    %c0_i32 = arith.constant 0 : i32
    %c0_i32_0 = arith.constant 0 : i32
    %c0_i32_1 = arith.constant 0 : i32
    return %arg1, %c0_i32, %c0_i32_0 : i32, i32, i32
  }
  func.func @transform_9(%arg0: i32, %arg1: i32) -> (i32, i32, i32) {
    %c0_i32 = arith.constant 0 : i32
    %c0_i32_0 = arith.constant 0 : i32
    %c0_i32_1 = arith.constant 0 : i32
    return %arg1, %c0_i32, %c0_i32_0 : i32, i32, i32
  }
  func.func @transform_10(%arg0: i32, %arg1: i32) -> (i32, i32, i32) {
    %c0_i32 = arith.constant 0 : i32
    %c0_i32_0 = arith.constant 0 : i32
    %c0_i32_1 = arith.constant 0 : i32
    return %arg1, %c0_i32, %c0_i32_0 : i32, i32, i32
  }
  func.func @transform_11(%arg0: i32, %arg1: i32) -> (i32, i32, i32) {
    %c0_i32 = arith.constant 0 : i32
    %c0_i32_0 = arith.constant 0 : i32
    %c0_i32_1 = arith.constant 0 : i32
    return %arg1, %c0_i32, %c0_i32_0 : i32, i32, i32
  }
  func.func @transform_12(%arg0: i32, %arg1: i32) -> (i32, i32, i32) {
    %c0_i32 = arith.constant 0 : i32
    %c0_i32_0 = arith.constant 0 : i32
    %c0_i32_1 = arith.constant 0 : i32
    return %arg1, %c0_i32, %c0_i32_0 : i32, i32, i32
  }
  func.func @transform_13(%arg0: i32, %arg1: i32) -> (i32, i32, i32) {
    %c0_i32 = arith.constant 0 : i32
    %c0_i32_0 = arith.constant 0 : i32
    %c0_i32_1 = arith.constant 0 : i32
    return %arg1, %c0_i32, %c0_i32_0 : i32, i32, i32
  }
  func.func @transform_14(%arg0: i32, %arg1: i32) -> (i32, i32, i32) {
    %c0_i32 = arith.constant 0 : i32
    %c0_i32_0 = arith.constant 0 : i32
    %c0_i32_1 = arith.constant 0 : i32
    return %arg1, %c0_i32, %c0_i32_0 : i32, i32, i32
  }
  func.func @transform_15(%arg0: i32, %arg1: i32) -> (i32, i32, i32) {
    %c0_i32 = arith.constant 0 : i32
    %c0_i32_0 = arith.constant 0 : i32
    %c0_i32_1 = arith.constant 0 : i32
    return %arg1, %c0_i32, %c0_i32_0 : i32, i32, i32
  }
  func.func @transform_16(%arg0: i32, %arg1: i32) -> (i32, i32, i32) {
    %c0_i32 = arith.constant 0 : i32
    %c0_i32_0 = arith.constant 0 : i32
    %c0_i32_1 = arith.constant 0 : i32
    return %arg1, %c0_i32, %c0_i32_0 : i32, i32, i32
  }
  func.func @transform_17(%arg0: i32, %arg1: i32) -> i32 {
    %c0_i32 = arith.constant 0 : i32
    %c0_i32_0 = arith.constant 0 : i32
    return %c0_i32 : i32
  }
  func.func @transform_18(%arg0: i32, %arg1: i32) -> (i32, i32, i32) {
    %c0_i32 = arith.constant 0 : i32
    %c0_i32_0 = arith.constant 0 : i32
    %c0_i32_1 = arith.constant 0 : i32
    return %arg0, %c0_i32, %c0_i32_0 : i32, i32, i32
  }
}

</mosaic_0001>

<llo_original>
// kernel: tpu_custom_call.1
$region0: #{tpu_custom_call.1}
  #allocation0 [shape = 'u32[]', space=smem, size = 0x4, offset = 0x4, fixed_abs, tag = 'smem constant byte address 0x4 - core index']
  #allocation1 [shape = 'u32[144,128]{1,0:T(1,128)}', space=vmem, size = 0x12000, scoped, tag = 'internal scratch']
  #allocation2 [shape = 'f32[16,128]{1,0:T(8,128)}', space=vmem, size = 0x2000, scoped, tag = 'scratch operand']
  %s0 = inlined_call_operand.hbm [shape: f32[2,8,128], index: 0, kind: input, shape index: {}]
  %s1 = inlined_call_operand.hbm [shape: f32[2,1,128], index: 1, kind: input, shape index: {}]
  %s2 = inlined_call_operand.vmem [shape: f32[2,1,128], index: 2, kind: input, shape index: {}]
  %s3 = inlined_call_operand.hbm [shape: bf16[2,128,128], index: 3, kind: input, shape index: {}]
  %s4 = inlined_call_operand.vmem [shape: f32[2,1,128], index: 4, kind: input, shape index: {}]
  %s5 = inlined_call_operand.hbm [shape: bf16[2,128,128], index: 5, kind: input, shape index: {}]
  %s6 = inlined_call_operand.vmem [shape: f32[2,1,128], index: 6, kind: input, shape index: {}]
  %s7 = inlined_call_operand.hbm [shape: bf16[2,128,128], index: 7, kind: input, shape index: {}]
  %s8 = inlined_call_operand.vmem [shape: f32[2,1,128], index: 8, kind: input, shape index: {}]
  %s9 = inlined_call_operand.hbm [shape: bf16[2,128,128], index: 9, kind: input, shape index: {}]
  %s10 = inlined_call_operand.vmem [shape: f32[2,1,128], index: 10, kind: input, shape index: {}]
  %s11 = inlined_call_operand.vmem [shape: f32[2,1,128], index: 11, kind: input, shape index: {}]
  %s12 = inlined_call_operand.vmem [shape: f32[2,1,128], index: 12, kind: input, shape index: {}]
  %s13 = inlined_call_operand.hbm [shape: bf16[2,128,128], index: 13, kind: input, shape index: {}]
  %s14 = inlined_call_operand.vmem [shape: f32[2,1,128], index: 14, kind: input, shape index: {}]
  %s15 = inlined_call_operand.hbm [shape: bf16[2,128,128], index: 15, kind: input, shape index: {}]
  %s16 = inlined_call_operand.vmem [shape: f32[2,1,128], index: 16, kind: input, shape index: {}]
  %s17 = inlined_call_operand.vmem [shape: f32[2], index: 17, kind: input, shape index: {}]
  %s18 = inlined_call_operand.hbm [shape: f32[2,8,128], index: 18, kind: output, shape index: {}]
  %s19 = sld [smem:[#allocation0]]
  $region149: #{tpu_custom_call.1} parent=0
    _
  %s21 = ssub.s32 1, %s19
  %s22 = scalar_select 0, %s21, %s19
  $region1: #{tpu_custom_call.1} parent=0
    #allocation3 [shape = 'u8[8192]{0}', space=vmem, size = 0x2000, scoped, tag = 'input window, operand 0, single buffered']
    #allocation4 [shape = 's32[2]{0}', space=sflag, size = 0x8, scoped, tag = 'scoped memory for tpu_custom_call.1']
    #allocation5 [shape = 's32[2]{0}', space=sflag, size = 0x8, scoped, tag = 'scoped memory for tpu_custom_call.1']
    #allocation6 [shape = 's32[2]{0}', space=sflag, size = 0x8, scoped, tag = 'scoped memory for tpu_custom_call.1']
    #allocation7 [shape = 'u8[1024]{0}', space=vmem, size = 0x400, scoped, tag = 'input window, operand 1']
    #allocation8 [shape = 's32[2]{0}', space=sflag, size = 0x8, scoped, tag = 'scoped memory for tpu_custom_call.1']
    #allocation9 [shape = 'u8[65536]{0}', space=vmem, size = 0x10000, scoped, tag = 'input window, operand 3']
    #allocation10 [shape = 'u8[65536]{0}', space=vmem, size = 0x10000, scoped, tag = 'input window, operand 5']
    #allocation11 [shape = 's32[2]{0}', space=sflag, size = 0x8, scoped, tag = 'scoped memory for tpu_custom_call.1']
    #allocation12 [shape = 'u8[65536]{0}', space=vmem, size = 0x10000, scoped, tag = 'input window, operand 7']
    #allocation13 [shape = 'u8[65536]{0}', space=vmem, size = 0x10000, scoped, tag = 'input window, operand 9']
    #allocation14 [shape = 's32[2]{0}', space=sflag, size = 0x8, scoped, tag = 'scoped memory for tpu_custom_call.1']
    #allocation15 [shape = 'u8[65536]{0}', space=vmem, size = 0x10000, scoped, tag = 'input window, operand 13']
    #allocation16 [shape = 'u8[65536]{0}', space=vmem, size = 0x10000, scoped, tag = 'input window, operand 15']
    #allocation17 [shape = 's32[2]{0}', space=sflag, size = 0x8, scoped, tag = 'scoped memory for tpu_custom_call.1']
    #allocation18 [shape = 'u8[512]{0}', space=smem, size = 0x200, scoped, tag = 'input window, operand 17, single buffered']
    #allocation19 [shape = 'u8[8192]{0}', space=vmem, size = 0x2000, scoped, tag = 'output window, operand 0, single buffered']
    %23 = vsyncpa [#allocation4], 0
    %24 = vsyncpa [#allocation8], 0
    %s25 = scalar_lea.sflag [#allocation8], 1
    %26 = vsyncpa %s25, 0
    %27 = vsyncpa [#allocation11], 0
    %s28 = scalar_lea.sflag [#allocation11], 1
    %29 = vsyncpa %s28, 0
    %30 = vsyncpa [#allocation14], 0
    %s31 = scalar_lea.sflag [#allocation14], 1
    %32 = vsyncpa %s31, 0
    %33 = vsyncpa [#allocation17], 0
    %s34 = scalar_lea.sflag [#allocation17], 1
    %35 = vsyncpa %s34, 0
    %36 = vsyncpa [#allocation6], 0
    %37 = vsyncpa [#allocation5], 0
    loop: start=0, step=1, limit=4
    $region2: #{tpu_custom_call.1} parent=1 // loop_pre_header
      _
    $region3: #{tpu_custom_call.1} parent=1 // loop_header
      %s39 = sphi 0, %s43
      %p40 = scmp.ge.s32.totalorder %s39, 4
      %s46 = sphi 0, %s58
      %s47 = sphi 0, %s54
      %s48 = sphi 0, %s46
      %s49 = sphi 0, %s47
      %s50 = sphi 0, %s48
      %s51 = sphi 0, %s49
      %s61 = sphi 0, %s63
      %s64 = sphi 0, %s61
      %s65 = sphi 0, %s64
      %s81 = sphi 0, %s65
      %s87 = sphi 0, %s89
      %s90 = sphi 0, %s87
      %s91 = sphi 0, %s90
      %s107 = sphi 0, %s91
      %s113 = sphi 0, %s115
      %s116 = sphi 0, %s113
      %s117 = sphi 0, %s116
      %s133 = sphi 0, %s117
      %s139 = sphi 0, %s141
      %s142 = sphi 0, %s139
      %s143 = sphi 0, %s142
      %s159 = sphi 0, %s143
      %s165 = sphi 0, %s167
      %s168 = sphi 0, %s165
      %s169 = sphi 0, %s168
      %s185 = sphi 0, %s169
      %s191 = sphi 0, %s193
      %s194 = sphi 0, %s191
      %s195 = sphi 0, %s194
      %s211 = sphi 0, %s195
      %s217 = sphi 0, %s219
      %s220 = sphi 0, %s217
      %s221 = sphi 0, %s220
      %s237 = sphi 0, %s221
      %s243 = sphi 0, %s245
      %s246 = sphi 0, %s243
      %s247 = sphi 0, %s246
      %s263 = sphi 0, %s247
      %s269 = sphi 0, %s271
      %s272 = sphi 0, %s269
      %s273 = sphi 0, %s272
      %s289 = sphi 0, %s273
      %s295 = sphi 0, %s297
      %s298 = sphi 0, %s295
      %s299 = sphi 0, %s298
      %s315 = sphi 0, %s299
      %s321 = sphi 0, %s323
      %s324 = sphi 0, %s321
      %s325 = sphi 0, %s324
      %s341 = sphi 0, %s325
      %s347 = sphi 0, %s349
      %s350 = sphi 0, %s347
      %s351 = sphi 0, %s350
      %s367 = sphi 0, %s351
      %s373 = sphi 0, %s375
      %s376 = sphi 0, %s373
      %s377 = sphi 0, %s376
      %s393 = sphi 0, %s377
      %s399 = sphi 0, %s401
      %s402 = sphi 0, %s399
      %s403 = sphi 0, %s402
      %s419 = sphi 0, %s403
      %s425 = sphi 0, %s427
      %s428 = sphi 0, %s425
      %s429 = sphi 0, %s428
      %s445 = sphi 0, %s429
      %s451 = sphi 0, %s453
      %s454 = sphi 0, %s451
      %s455 = sphi 0, %s454
      %s471 = sphi 0, %s455
      %s477 = sphi 0, %s479
      %s480 = sphi 0, %s477
      %s481 = sphi 0, %s480
      %s497 = sphi 0, %s481
      %s501 = sphi 0, %s501
      %s503 = sphi 0, %s501
      %s504 = sphi 0, %s503
      %s518 = sphi 0, %s504
      %s524 = sphi 0, %s526
      %s527 = sphi 0, %s524
      %s528 = sphi 0, %s527
      %s544 = sphi 0, %s528
    $region4: #{tpu_custom_call.1} parent=1 // loop_header_branch
      %42 = sbr.rel (%p40) target = $region8
    $region5: #{tpu_custom_call.1} parent=1 // loop_body
      %s44 = ssub.s32 %s39, 1
      %s45 = ssub.s32 %s39, 2
      %s52 = sadd.s32 1, %s47
      %p53 = scmp.ge.s32.totalorder %s52, 2
      %s54 = scalar_select %p53, 0, %s52
      %s55 = sadd.s32 1, %s46
      %s56 = scalar_select %p53, %s55, %s46
      %p57 = scmp.ge.s32.totalorder %s56, 1
      %s58 = scalar_select %p57, 0, %s56
      %s59 = ssub.s32 %s46, %s58
      %p60 = scmp.eq.s32.totalorder %s59, 0
      %s62 = sadd.s32 %s61, 1
      %s63 = scalar_select %p60, %s61, %s62
      %p66 = pneg %p60
      %p67 = scmp.eq.s32.totalorder %s39, 1
      %p68 = por %p66, %p67
      %p69 = scmp.ne.s32.totalorder %s61, %s64
      %p70 = scmp.eq.s32.totalorder %s39, 0
      %p71 = por %p69, %p70
      %p72 = scmp.ne.s32.totalorder %s61, %s64
      %p73 = scmp.eq.s32.totalorder %s44, 1
      %p74 = por %p72, %p73
      %p75 = scmp.ne.s32.totalorder %s64, %s65
      %p76 = scmp.eq.s32.totalorder %s44, 0
      %p77 = por %p75, %p76
      %p78 = scmp.ne.s32.totalorder %s64, %s65
      %p79 = scmp.eq.s32.totalorder %s45, 1
      %p80 = por %p78, %p79
      %p82 = scmp.ne.s32.totalorder %s65, %s81
      %p83 = scmp.eq.s32.totalorder %s45, 0
      %p84 = por %p82, %p83
      %s85 = ssub.s32 %s47, %s54
      %p86 = scmp.eq.s32.totalorder %s85, 0
      %s88 = sadd.s32 %s87, 1
      %s89 = scalar_select %p86, %s87, %s88
      %p92 = pneg %p86
      %p93 = scmp.eq.s32.totalorder %s39, 1
      %p94 = por %p92, %p93
      %p95 = scmp.ne.s32.totalorder %s87, %s90
      %p96 = scmp.eq.s32.totalorder %s39, 0
      %p97 = por %p95, %p96
      %p98 = scmp.ne.s32.totalorder %s87, %s90
      %p99 = scmp.eq.s32.totalorder %s44, 1
      %p100 = por %p98, %p99
      %p101 = scmp.ne.s32.totalorder %s90, %s91
      %p102 = scmp.eq.s32.totalorder %s44, 0
      %p103 = por %p101, %p102
      %p104 = scmp.ne.s32.totalorder %s90, %s91
      %p105 = scmp.eq.s32.totalorder %s45, 1
      %p106 = por %p104, %p105
      %p108 = scmp.ne.s32.totalorder %s91, %s107
      %p109 = scmp.eq.s32.totalorder %s45, 0
      %p110 = por %p108, %p109
      %s111 = ssub.s32 %s47, %s54
      %p112 = scmp.eq.s32.totalorder %s111, 0
      %s114 = sadd.s32 %s113, 1
      %s115 = scalar_select %p112, %s113, %s114
      %p118 = pneg %p112
      %p119 = scmp.eq.s32.totalorder %s39, 1
      %p120 = por %p118, %p119
      %p121 = scmp.ne.s32.totalorder %s113, %s116
      %p122 = scmp.eq.s32.totalorder %s39, 0
      %p123 = por %p121, %p122
      %p124 = scmp.ne.s32.totalorder %s113, %s116
      %p125 = scmp.eq.s32.totalorder %s44, 1
      %p126 = por %p124, %p125
      %p127 = scmp.ne.s32.totalorder %s116, %s117
      %p128 = scmp.eq.s32.totalorder %s44, 0
      %p129 = por %p127, %p128
      %p130 = scmp.ne.s32.totalorder %s116, %s117
      %p131 = scmp.eq.s32.totalorder %s45, 1
      %p132 = por %p130, %p131
      %p134 = scmp.ne.s32.totalorder %s117, %s133
      %p135 = scmp.eq.s32.totalorder %s45, 0
      %p136 = por %p134, %p135
      %s137 = ssub.s32 %s47, %s54
      %p138 = scmp.eq.s32.totalorder %s137, 0
      %s140 = sadd.s32 %s139, 1
      %s141 = scalar_select %p138, %s139, %s140
      %p144 = pneg %p138
      %p145 = scmp.eq.s32.totalorder %s39, 1
      %p146 = por %p144, %p145
      %p147 = scmp.ne.s32.totalorder %s139, %s142
      %p148 = scmp.eq.s32.totalorder %s39, 0
      %p149 = por %p147, %p148
      %p150 = scmp.ne.s32.totalorder %s139, %s142
      %p151 = scmp.eq.s32.totalorder %s44, 1
      %p152 = por %p150, %p151
      %p153 = scmp.ne.s32.totalorder %s142, %s143
      %p154 = scmp.eq.s32.totalorder %s44, 0
      %p155 = por %p153, %p154
      %p156 = scmp.ne.s32.totalorder %s142, %s143
      %p157 = scmp.eq.s32.totalorder %s45, 1
      %p158 = por %p156, %p157
      %p160 = scmp.ne.s32.totalorder %s143, %s159
      %p161 = scmp.eq.s32.totalorder %s45, 0
      %p162 = por %p160, %p161
      %s163 = ssub.s32 %s47, %s54
      %p164 = scmp.eq.s32.totalorder %s163, 0
      %s166 = sadd.s32 %s165, 1
      %s167 = scalar_select %p164, %s165, %s166
      %p170 = pneg %p164
      %p171 = scmp.eq.s32.totalorder %s39, 1
      %p172 = por %p170, %p171
      %p173 = scmp.ne.s32.totalorder %s165, %s168
      %p174 = scmp.eq.s32.totalorder %s39, 0
      %p175 = por %p173, %p174
      %p176 = scmp.ne.s32.totalorder %s165, %s168
      %p177 = scmp.eq.s32.totalorder %s44, 1
      %p178 = por %p176, %p177
      %p179 = scmp.ne.s32.totalorder %s168, %s169
      %p180 = scmp.eq.s32.totalorder %s44, 0
      %p181 = por %p179, %p180
      %p182 = scmp.ne.s32.totalorder %s168, %s169
      %p183 = scmp.eq.s32.totalorder %s45, 1
      %p184 = por %p182, %p183
      %p186 = scmp.ne.s32.totalorder %s169, %s185
      %p187 = scmp.eq.s32.totalorder %s45, 0
      %p188 = por %p186, %p187
      %s189 = ssub.s32 %s47, %s54
      %p190 = scmp.eq.s32.totalorder %s189, 0
      %s192 = sadd.s32 %s191, 1
      %s193 = scalar_select %p190, %s191, %s192
      %p196 = pneg %p190
      %p197 = scmp.eq.s32.totalorder %s39, 1
      %p198 = por %p196, %p197
      %p199 = scmp.ne.s32.totalorder %s191, %s194
      %p200 = scmp.eq.s32.totalorder %s39, 0
      %p201 = por %p199, %p200
      %p202 = scmp.ne.s32.totalorder %s191, %s194
      %p203 = scmp.eq.s32.totalorder %s44, 1
      %p204 = por %p202, %p203
      %p205 = scmp.ne.s32.totalorder %s194, %s195
      %p206 = scmp.eq.s32.totalorder %s44, 0
      %p207 = por %p205, %p206
      %p208 = scmp.ne.s32.totalorder %s194, %s195
      %p209 = scmp.eq.s32.totalorder %s45, 1
      %p210 = por %p208, %p209
      %p212 = scmp.ne.s32.totalorder %s195, %s211
      %p213 = scmp.eq.s32.totalorder %s45, 0
      %p214 = por %p212, %p213
      %s215 = ssub.s32 %s47, %s54
      %p216 = scmp.eq.s32.totalorder %s215, 0
      %s218 = sadd.s32 %s217, 1
      %s219 = scalar_select %p216, %s217, %s218
      %p222 = pneg %p216
      %p223 = scmp.eq.s32.totalorder %s39, 1
      %p224 = por %p222, %p223
      %p225 = scmp.ne.s32.totalorder %s217, %s220
      %p226 = scmp.eq.s32.totalorder %s39, 0
      %p227 = por %p225, %p226
      %p228 = scmp.ne.s32.totalorder %s217, %s220
      %p229 = scmp.eq.s32.totalorder %s44, 1
      %p230 = por %p228, %p229
      %p231 = scmp.ne.s32.totalorder %s220, %s221
      %p232 = scmp.eq.s32.totalorder %s44, 0
      %p233 = por %p231, %p232
      %p234 = scmp.ne.s32.totalorder %s220, %s221
      %p235 = scmp.eq.s32.totalorder %s45, 1
      %p236 = por %p234, %p235
      %p238 = scmp.ne.s32.totalorder %s221, %s237
      %p239 = scmp.eq.s32.totalorder %s45, 0
      %p240 = por %p238, %p239
      %s241 = ssub.s32 %s47, %s54
      %p242 = scmp.eq.s32.totalorder %s241, 0
      %s244 = sadd.s32 %s243, 1
      %s245 = scalar_select %p242, %s243, %s244
      %p248 = pneg %p242
      %p249 = scmp.eq.s32.totalorder %s39, 1
      %p250 = por %p248, %p249
      %p251 = scmp.ne.s32.totalorder %s243, %s246
      %p252 = scmp.eq.s32.totalorder %s39, 0
      %p253 = por %p251, %p252
      %p254 = scmp.ne.s32.totalorder %s243, %s246
      %p255 = scmp.eq.s32.totalorder %s44, 1
      %p256 = por %p254, %p255
      %p257 = scmp.ne.s32.totalorder %s246, %s247
      %p258 = scmp.eq.s32.totalorder %s44, 0
      %p259 = por %p257, %p258
      %p260 = scmp.ne.s32.totalorder %s246, %s247
      %p261 = scmp.eq.s32.totalorder %s45, 1
      %p262 = por %p260, %p261
      %p264 = scmp.ne.s32.totalorder %s247, %s263
      %p265 = scmp.eq.s32.totalorder %s45, 0
      %p266 = por %p264, %p265
      %s267 = ssub.s32 %s47, %s54
      %p268 = scmp.eq.s32.totalorder %s267, 0
      %s270 = sadd.s32 %s269, 1
      %s271 = scalar_select %p268, %s269, %s270
      %p274 = pneg %p268
      %p275 = scmp.eq.s32.totalorder %s39, 1
      %p276 = por %p274, %p275
      %p277 = scmp.ne.s32.totalorder %s269, %s272
      %p278 = scmp.eq.s32.totalorder %s39, 0
      %p279 = por %p277, %p278
      %p280 = scmp.ne.s32.totalorder %s269, %s272
      %p281 = scmp.eq.s32.totalorder %s44, 1
      %p282 = por %p280, %p281
      %p283 = scmp.ne.s32.totalorder %s272, %s273
      %p284 = scmp.eq.s32.totalorder %s44, 0
      %p285 = por %p283, %p284
      %p286 = scmp.ne.s32.totalorder %s272, %s273
      %p287 = scmp.eq.s32.totalorder %s45, 1
      %p288 = por %p286, %p287
      %p290 = scmp.ne.s32.totalorder %s273, %s289
      %p291 = scmp.eq.s32.totalorder %s45, 0
      %p292 = por %p290, %p291
      %s293 = ssub.s32 %s47, %s54
      %p294 = scmp.eq.s32.totalorder %s293, 0
      %s296 = sadd.s32 %s295, 1
      %s297 = scalar_select %p294, %s295, %s296
      %p300 = pneg %p294
      %p301 = scmp.eq.s32.totalorder %s39, 1
      %p302 = por %p300, %p301
      %p303 = scmp.ne.s32.totalorder %s295, %s298
      %p304 = scmp.eq.s32.totalorder %s39, 0
      %p305 = por %p303, %p304
      %p306 = scmp.ne.s32.totalorder %s295, %s298
      %p307 = scmp.eq.s32.totalorder %s44, 1
      %p308 = por %p306, %p307
      %p309 = scmp.ne.s32.totalorder %s298, %s299
      %p310 = scmp.eq.s32.totalorder %s44, 0
      %p311 = por %p309, %p310
      %p312 = scmp.ne.s32.totalorder %s298, %s299
      %p313 = scmp.eq.s32.totalorder %s45, 1
      %p314 = por %p312, %p313
      %p316 = scmp.ne.s32.totalorder %s299, %s315
      %p317 = scmp.eq.s32.totalorder %s45, 0
      %p318 = por %p316, %p317
      %s319 = ssub.s32 %s47, %s54
      %p320 = scmp.eq.s32.totalorder %s319, 0
      %s322 = sadd.s32 %s321, 1
      %s323 = scalar_select %p320, %s321, %s322
      %p326 = pneg %p320
      %p327 = scmp.eq.s32.totalorder %s39, 1
      %p328 = por %p326, %p327
      %p329 = scmp.ne.s32.totalorder %s321, %s324
      %p330 = scmp.eq.s32.totalorder %s39, 0
      %p331 = por %p329, %p330
      %p332 = scmp.ne.s32.totalorder %s321, %s324
      %p333 = scmp.eq.s32.totalorder %s44, 1
      %p334 = por %p332, %p333
      %p335 = scmp.ne.s32.totalorder %s324, %s325
      %p336 = scmp.eq.s32.totalorder %s44, 0
      %p337 = por %p335, %p336
      %p338 = scmp.ne.s32.totalorder %s324, %s325
      %p339 = scmp.eq.s32.totalorder %s45, 1
      %p340 = por %p338, %p339
      %p342 = scmp.ne.s32.totalorder %s325, %s341
      %p343 = scmp.eq.s32.totalorder %s45, 0
      %p344 = por %p342, %p343
      %s345 = ssub.s32 %s47, %s54
      %p346 = scmp.eq.s32.totalorder %s345, 0
      %s348 = sadd.s32 %s347, 1
      %s349 = scalar_select %p346, %s347, %s348
      %p352 = pneg %p346
      %p353 = scmp.eq.s32.totalorder %s39, 1
      %p354 = por %p352, %p353
      %p355 = scmp.ne.s32.totalorder %s347, %s350
      %p356 = scmp.eq.s32.totalorder %s39, 0
      %p357 = por %p355, %p356
      %p358 = scmp.ne.s32.totalorder %s347, %s350
      %p359 = scmp.eq.s32.totalorder %s44, 1
      %p360 = por %p358, %p359
      %p361 = scmp.ne.s32.totalorder %s350, %s351
      %p362 = scmp.eq.s32.totalorder %s44, 0
      %p363 = por %p361, %p362
      %p364 = scmp.ne.s32.totalorder %s350, %s351
      %p365 = scmp.eq.s32.totalorder %s45, 1
      %p366 = por %p364, %p365
      %p368 = scmp.ne.s32.totalorder %s351, %s367
      %p369 = scmp.eq.s32.totalorder %s45, 0
      %p370 = por %p368, %p369
      %s371 = ssub.s32 %s47, %s54
      %p372 = scmp.eq.s32.totalorder %s371, 0
      %s374 = sadd.s32 %s373, 1
      %s375 = scalar_select %p372, %s373, %s374
      %p378 = pneg %p372
      %p379 = scmp.eq.s32.totalorder %s39, 1
      %p380 = por %p378, %p379
      %p381 = scmp.ne.s32.totalorder %s373, %s376
      %p382 = scmp.eq.s32.totalorder %s39, 0
      %p383 = por %p381, %p382
      %p384 = scmp.ne.s32.totalorder %s373, %s376
      %p385 = scmp.eq.s32.totalorder %s44, 1
      %p386 = por %p384, %p385
      %p387 = scmp.ne.s32.totalorder %s376, %s377
      %p388 = scmp.eq.s32.totalorder %s44, 0
      %p389 = por %p387, %p388
      %p390 = scmp.ne.s32.totalorder %s376, %s377
      %p391 = scmp.eq.s32.totalorder %s45, 1
      %p392 = por %p390, %p391
      %p394 = scmp.ne.s32.totalorder %s377, %s393
      %p395 = scmp.eq.s32.totalorder %s45, 0
      %p396 = por %p394, %p395
      %s397 = ssub.s32 %s47, %s54
      %p398 = scmp.eq.s32.totalorder %s397, 0
      %s400 = sadd.s32 %s399, 1
      %s401 = scalar_select %p398, %s399, %s400
      %p404 = pneg %p398
      %p405 = scmp.eq.s32.totalorder %s39, 1
      %p406 = por %p404, %p405
      %p407 = scmp.ne.s32.totalorder %s399, %s402
      %p408 = scmp.eq.s32.totalorder %s39, 0
      %p409 = por %p407, %p408
      %p410 = scmp.ne.s32.totalorder %s399, %s402
      %p411 = scmp.eq.s32.totalorder %s44, 1
      %p412 = por %p410, %p411
      %p413 = scmp.ne.s32.totalorder %s402, %s403
      %p414 = scmp.eq.s32.totalorder %s44, 0
      %p415 = por %p413, %p414
      %p416 = scmp.ne.s32.totalorder %s402, %s403
      %p417 = scmp.eq.s32.totalorder %s45, 1
      %p418 = por %p416, %p417
      %p420 = scmp.ne.s32.totalorder %s403, %s419
      %p421 = scmp.eq.s32.totalorder %s45, 0
      %p422 = por %p420, %p421
      %s423 = ssub.s32 %s47, %s54
      %p424 = scmp.eq.s32.totalorder %s423, 0
      %s426 = sadd.s32 %s425, 1
      %s427 = scalar_select %p424, %s425, %s426
      %p430 = pneg %p424
      %p431 = scmp.eq.s32.totalorder %s39, 1
      %p432 = por %p430, %p431
      %p433 = scmp.ne.s32.totalorder %s425, %s428
      %p434 = scmp.eq.s32.totalorder %s39, 0
      %p435 = por %p433, %p434
      %p436 = scmp.ne.s32.totalorder %s425, %s428
      %p437 = scmp.eq.s32.totalorder %s44, 1
      %p438 = por %p436, %p437
      %p439 = scmp.ne.s32.totalorder %s428, %s429
      %p440 = scmp.eq.s32.totalorder %s44, 0
      %p441 = por %p439, %p440
      %p442 = scmp.ne.s32.totalorder %s428, %s429
      %p443 = scmp.eq.s32.totalorder %s45, 1
      %p444 = por %p442, %p443
      %p446 = scmp.ne.s32.totalorder %s429, %s445
      %p447 = scmp.eq.s32.totalorder %s45, 0
      %p448 = por %p446, %p447
      %s449 = ssub.s32 %s47, %s54
      %p450 = scmp.eq.s32.totalorder %s449, 0
      %s452 = sadd.s32 %s451, 1
      %s453 = scalar_select %p450, %s451, %s452
      %p456 = pneg %p450
      %p457 = scmp.eq.s32.totalorder %s39, 1
      %p458 = por %p456, %p457
      %p459 = scmp.ne.s32.totalorder %s451, %s454
      %p460 = scmp.eq.s32.totalorder %s39, 0
      %p461 = por %p459, %p460
      %p462 = scmp.ne.s32.totalorder %s451, %s454
      %p463 = scmp.eq.s32.totalorder %s44, 1
      %p464 = por %p462, %p463
      %p465 = scmp.ne.s32.totalorder %s454, %s455
      %p466 = scmp.eq.s32.totalorder %s44, 0
      %p467 = por %p465, %p466
      %p468 = scmp.ne.s32.totalorder %s454, %s455
      %p469 = scmp.eq.s32.totalorder %s45, 1
      %p470 = por %p468, %p469
      %p472 = scmp.ne.s32.totalorder %s455, %s471
      %p473 = scmp.eq.s32.totalorder %s45, 0
      %p474 = por %p472, %p473
      %s475 = ssub.s32 %s47, %s54
      %p476 = scmp.eq.s32.totalorder %s475, 0
      %s478 = sadd.s32 %s477, 1
      %s479 = scalar_select %p476, %s477, %s478
      %p482 = pneg %p476
      %p483 = scmp.eq.s32.totalorder %s39, 1
      %p484 = por %p482, %p483
      %p485 = scmp.ne.s32.totalorder %s477, %s480
      %p486 = scmp.eq.s32.totalorder %s39, 0
      %p487 = por %p485, %p486
      %p488 = scmp.ne.s32.totalorder %s477, %s480
      %p489 = scmp.eq.s32.totalorder %s44, 1
      %p490 = por %p488, %p489
      %p491 = scmp.ne.s32.totalorder %s480, %s481
      %p492 = scmp.eq.s32.totalorder %s44, 0
      %p493 = por %p491, %p492
      %p494 = scmp.ne.s32.totalorder %s480, %s481
      %p495 = scmp.eq.s32.totalorder %s45, 1
      %p496 = por %p494, %p495
      %p498 = scmp.ne.s32.totalorder %s481, %s497
      %p499 = scmp.eq.s32.totalorder %s45, 0
      %p500 = por %p498, %p499
      %s502 = sadd.s32 %s501, 1
      %p505 = scmp.eq.s32.totalorder %s39, 1
      %p506 = scmp.ne.s32.totalorder %s501, %s503
      %p507 = scmp.eq.s32.totalorder %s39, 0
      %p508 = por %p506, %p507
      %p509 = scmp.ne.s32.totalorder %s501, %s503
      %p510 = scmp.eq.s32.totalorder %s44, 1
      %p511 = por %p509, %p510
      %p512 = scmp.ne.s32.totalorder %s503, %s504
      %p513 = scmp.eq.s32.totalorder %s44, 0
      %p514 = por %p512, %p513
      %p515 = scmp.ne.s32.totalorder %s503, %s504
      %p516 = scmp.eq.s32.totalorder %s45, 1
      %p517 = por %p515, %p516
      %p519 = scmp.ne.s32.totalorder %s504, %s518
      %p520 = scmp.eq.s32.totalorder %s45, 0
      %p521 = por %p519, %p520
      %s522 = ssub.s32 %s46, %s58
      %p523 = scmp.eq.s32.totalorder %s522, 0
      %s525 = sadd.s32 %s524, 1
      %s526 = scalar_select %p523, %s524, %s525
      %p529 = pneg %p523
      %p530 = scmp.eq.s32.totalorder %s39, 1
      %p531 = por %p529, %p530
      %p532 = scmp.ne.s32.totalorder %s524, %s527
      %p533 = scmp.eq.s32.totalorder %s39, 0
      %p534 = por %p532, %p533
      %p535 = scmp.ne.s32.totalorder %s524, %s527
      %p536 = scmp.eq.s32.totalorder %s44, 1
      %p537 = por %p535, %p536
      %p538 = scmp.ne.s32.totalorder %s527, %s528
      %p539 = scmp.eq.s32.totalorder %s44, 0
      %p540 = por %p538, %p539
      %p541 = scmp.ne.s32.totalorder %s527, %s528
      %p542 = scmp.eq.s32.totalorder %s45, 1
      %p543 = por %p541, %p542
      %p545 = scmp.ne.s32.totalorder %s528, %s544
      %p546 = scmp.eq.s32.totalorder %s45, 0
      %p547 = por %p545, %p546
      %p548 = scmp.le.s32.totalorder 1, %s39
      %p549 = scmp.lt.s32.totalorder %s39, 3
      %p550 = pnand %p548, %p549
      %p551 = pneg %p550
      // Predicated region
      $region9: #{tpu_custom_call.1} parent=5 // pred_check
        _
      $region10: #{tpu_custom_call.1} parent=5 // pred_check_branch
        %553 = sbr.rel (%p550) target = $region12
      $region11: #{tpu_custom_call.1} parent=5 // pred_region
        %s554 = ssub.s32 %s39, 1
        // Predicated region
        $region13: #{tpu_custom_call.1} parent=11 // pred_check
          %p555 = pneg %p77
        $region14: #{tpu_custom_call.1} parent=11 // pred_check_branch
          %557 = sbr.rel (%p555) target = $region16
        $region15: #{tpu_custom_call.1} parent=11 // pred_region
          %s558 = smul.u32 2, %s48
          %s560 = ssub.s32 256, 256
          %561 = vsyncadd [#allocation4], %s560
          %s562 = smul.addr %s558, 128
          %s563 = scalar_lea.hbm %s0, %s562
          %s564 = sshll.u32 [#allocation3], 4
          %s565 = int_to_ptr.vmem [resolvable:$true] %s564
          %570 = dma.hbm_to_vmem [thread:$0]  %s563, 256, %s565, [#allocation4], 128, 128, 8
        $region16: #{tpu_custom_call.1} parent=11 // pred_fallthru
          _
        // Predicated region
        $region17: #{tpu_custom_call.1} parent=11 // pred_check
          %p571 = pneg %p514
        $region18: #{tpu_custom_call.1} parent=11 // pred_check_branch
          %573 = sbr.rel (%p571) target = $region20
        $region19: #{tpu_custom_call.1} parent=11 // pred_region
          %s575 = ssub.s32 16, 16
          %576 = vsyncadd [#allocation6], %s575
          %s578 = sshll.u32 %s17, 4
          %s579 = int_to_ptr.vmem [resolvable:$true] %s578
          %581 = dma.vmem_to_smem %s579, 16, [#allocation18], [#allocation6]
        $region20: #{tpu_custom_call.1} parent=11 // pred_fallthru
          _
      $region12: #{tpu_custom_call.1} parent=5 // pred_fallthru
        _
      %p582 = scmp.lt.s32.totalorder %s39, 2
      // Predicated region
      $region21: #{tpu_custom_call.1} parent=5 // pred_check
        %p583 = pneg %p582
      $region22: #{tpu_custom_call.1} parent=5 // pred_check_branch
        %585 = sbr.rel (%p583) target = $region24
      $region23: #{tpu_custom_call.1} parent=5 // pred_region
        // Predicated region
        $region25: #{tpu_custom_call.1} parent=23 // pred_check
          %p586 = pneg %p97
        $region26: #{tpu_custom_call.1} parent=23 // pred_check_branch
          %588 = sbr.rel (%p586) target = $region28
        $region27: #{tpu_custom_call.1} parent=23 // pred_region
          %s589 = sand.u32 %s39, 1
          %s590 = scalar_lea.sflag [#allocation8], %s589
          %s591 = sand.u32 %s87, 1
          %s592 = scalar_lea.vmem [#allocation7], %s591
          %s594 = ssub.s32 16, 16
          %595 = vsyncadd %s590, %s594
          %s596 = smul.addr %s47, 16
          %s597 = scalar_lea.hbm %s1, %s596
          %s599 = sshll.u32 %s592, 4
          %s600 = int_to_ptr.vmem [resolvable:$true] %s599
          %602 = dma.hbm_to_vmem [thread:$0]  %s597, 16, %s600, %s590
        $region28: #{tpu_custom_call.1} parent=23 // pred_fallthru
          _
        // Predicated region
        $region29: #{tpu_custom_call.1} parent=23 // pred_check
          %p603 = pneg %p123
        $region30: #{tpu_custom_call.1} parent=23 // pred_check_branch
          %605 = sbr.rel (%p603) target = $region32
        $region31: #{tpu_custom_call.1} parent=23 // pred_region
          %p606 = scmp.lt.s32.totalorder %s47, 1
          %s607 = scalar_select %p606, %s47, 1
          %s608 = scalar_lea.vmem %s2, %s607
        $region32: #{tpu_custom_call.1} parent=23 // pred_fallthru
          _
        // Predicated region
        $region33: #{tpu_custom_call.1} parent=23 // pred_check
          %p609 = pneg %p149
        $region34: #{tpu_custom_call.1} parent=23 // pred_check_branch
          %611 = sbr.rel (%p609) target = $region36
        $region35: #{tpu_custom_call.1} parent=23 // pred_region
          %s612 = sand.u32 %s39, 1
          %s613 = scalar_lea.sflag [#allocation8], %s612
          %s614 = sand.u32 %s139, 1
          %s615 = smul.addr %s614, 64
          %s616 = scalar_lea.vmem [#allocation9], %s615
          %s618 = ssub.s32 1024, 1024
          %619 = vsyncadd %s613, %s618
          %s620 = smul.addr %s47, 16
          %s621 = smul.addr %s620, 64
          %s622 = scalar_lea.hbm %s3, %s621
          %s623 = sshll.u32 %s616, 4
          %s624 = int_to_ptr.vmem [resolvable:$true] %s623
          %629 = dma.hbm_to_vmem [thread:$0]  %s622, 1024, %s624, %s613, 64, 64, 4
        $region36: #{tpu_custom_call.1} parent=23 // pred_fallthru
          _
        // Predicated region
        $region37: #{tpu_custom_call.1} parent=23 // pred_check
          %p630 = pneg %p175
        $region38: #{tpu_custom_call.1} parent=23 // pred_check_branch
          %632 = sbr.rel (%p630) target = $region40
        $region39: #{tpu_custom_call.1} parent=23 // pred_region
          %p633 = scmp.lt.s32.totalorder %s47, 1
          %s634 = scalar_select %p633, %s47, 1
          %s635 = scalar_lea.vmem %s4, %s634
        $region40: #{tpu_custom_call.1} parent=23 // pred_fallthru
          _
        // Predicated region
        $region41: #{tpu_custom_call.1} parent=23 // pred_check
          %p636 = pneg %p201
        $region42: #{tpu_custom_call.1} parent=23 // pred_check_branch
          %638 = sbr.rel (%p636) target = $region44
        $region43: #{tpu_custom_call.1} parent=23 // pred_region
          %s639 = sand.u32 %s39, 1
          %s640 = scalar_lea.sflag [#allocation11], %s639
          %s641 = sand.u32 %s191, 1
          %s642 = smul.addr %s641, 64
          %s643 = scalar_lea.vmem [#allocation10], %s642
          %s645 = ssub.s32 1024, 1024
          %646 = vsyncadd %s640, %s645
          %s647 = smul.addr %s47, 16
          %s648 = smul.addr %s647, 64
          %s649 = scalar_lea.hbm %s5, %s648
          %s650 = sshll.u32 %s643, 4
          %s651 = int_to_ptr.vmem [resolvable:$true] %s650
          %656 = dma.hbm_to_vmem [thread:$0]  %s649, 1024, %s651, %s640, 64, 64, 4
        $region44: #{tpu_custom_call.1} parent=23 // pred_fallthru
          _
        // Predicated region
        $region45: #{tpu_custom_call.1} parent=23 // pred_check
          %p657 = pneg %p227
        $region46: #{tpu_custom_call.1} parent=23 // pred_check_branch
          %659 = sbr.rel (%p657) target = $region48
        $region47: #{tpu_custom_call.1} parent=23 // pred_region
          %p660 = scmp.lt.s32.totalorder %s47, 1
          %s661 = scalar_select %p660, %s47, 1
          %s662 = scalar_lea.vmem %s6, %s661
        $region48: #{tpu_custom_call.1} parent=23 // pred_fallthru
          _
        // Predicated region
        $region49: #{tpu_custom_call.1} parent=23 // pred_check
          %p663 = pneg %p253
        $region50: #{tpu_custom_call.1} parent=23 // pred_check_branch
          %665 = sbr.rel (%p663) target = $region52
        $region51: #{tpu_custom_call.1} parent=23 // pred_region
          %s666 = sand.u32 %s39, 1
          %s667 = scalar_lea.sflag [#allocation11], %s666
          %s668 = sand.u32 %s243, 1
          %s669 = smul.addr %s668, 64
          %s670 = scalar_lea.vmem [#allocation12], %s669
          %s672 = ssub.s32 1024, 1024
          %673 = vsyncadd %s667, %s672
          %s674 = smul.addr %s47, 16
          %s675 = smul.addr %s674, 64
          %s676 = scalar_lea.hbm %s7, %s675
          %s677 = sshll.u32 %s670, 4
          %s678 = int_to_ptr.vmem [resolvable:$true] %s677
          %683 = dma.hbm_to_vmem [thread:$0]  %s676, 1024, %s678, %s667, 64, 64, 4
        $region52: #{tpu_custom_call.1} parent=23 // pred_fallthru
          _
        // Predicated region
        $region53: #{tpu_custom_call.1} parent=23 // pred_check
          %p684 = pneg %p279
        $region54: #{tpu_custom_call.1} parent=23 // pred_check_branch
          %686 = sbr.rel (%p684) target = $region56
        $region55: #{tpu_custom_call.1} parent=23 // pred_region
          %p687 = scmp.lt.s32.totalorder %s47, 1
          %s688 = scalar_select %p687, %s47, 1
          %s689 = scalar_lea.vmem %s8, %s688
        $region56: #{tpu_custom_call.1} parent=23 // pred_fallthru
          _
        // Predicated region
        $region57: #{tpu_custom_call.1} parent=23 // pred_check
          %p690 = pneg %p305
        $region58: #{tpu_custom_call.1} parent=23 // pred_check_branch
          %692 = sbr.rel (%p690) target = $region60
        $region59: #{tpu_custom_call.1} parent=23 // pred_region
          %s693 = sand.u32 %s39, 1
          %s694 = scalar_lea.sflag [#allocation14], %s693
          %s695 = sand.u32 %s295, 1
          %s696 = smul.addr %s695, 64
          %s697 = scalar_lea.vmem [#allocation13], %s696
          %s699 = ssub.s32 1024, 1024
          %700 = vsyncadd %s694, %s699
          %s701 = smul.addr %s47, 16
          %s702 = smul.addr %s701, 64
          %s703 = scalar_lea.hbm %s9, %s702
          %s704 = sshll.u32 %s697, 4
          %s705 = int_to_ptr.vmem [resolvable:$true] %s704
          %710 = dma.hbm_to_vmem [thread:$0]  %s703, 1024, %s705, %s694, 64, 64, 4
        $region60: #{tpu_custom_call.1} parent=23 // pred_fallthru
          _
        // Predicated region
        $region61: #{tpu_custom_call.1} parent=23 // pred_check
          %p711 = pneg %p331
        $region62: #{tpu_custom_call.1} parent=23 // pred_check_branch
          %713 = sbr.rel (%p711) target = $region64
        $region63: #{tpu_custom_call.1} parent=23 // pred_region
          %p714 = scmp.lt.s32.totalorder %s47, 1
          %s715 = scalar_select %p714, %s47, 1
          %s716 = scalar_lea.vmem %s10, %s715
        $region64: #{tpu_custom_call.1} parent=23 // pred_fallthru
          _
        // Predicated region
        $region65: #{tpu_custom_call.1} parent=23 // pred_check
          %p717 = pneg %p357
        $region66: #{tpu_custom_call.1} parent=23 // pred_check_branch
          %719 = sbr.rel (%p717) target = $region68
        $region67: #{tpu_custom_call.1} parent=23 // pred_region
          %p720 = scmp.lt.s32.totalorder %s47, 1
          %s721 = scalar_select %p720, %s47, 1
          %s722 = scalar_lea.vmem %s11, %s721
        $region68: #{tpu_custom_call.1} parent=23 // pred_fallthru
          _
        // Predicated region
        $region69: #{tpu_custom_call.1} parent=23 // pred_check
          %p723 = pneg %p383
        $region70: #{tpu_custom_call.1} parent=23 // pred_check_branch
          %725 = sbr.rel (%p723) target = $region72
        $region71: #{tpu_custom_call.1} parent=23 // pred_region
          %p726 = scmp.lt.s32.totalorder %s47, 1
          %s727 = scalar_select %p726, %s47, 1
          %s728 = scalar_lea.vmem %s12, %s727
        $region72: #{tpu_custom_call.1} parent=23 // pred_fallthru
          _
        // Predicated region
        $region73: #{tpu_custom_call.1} parent=23 // pred_check
          %p729 = pneg %p409
        $region74: #{tpu_custom_call.1} parent=23 // pred_check_branch
          %731 = sbr.rel (%p729) target = $region76
        $region75: #{tpu_custom_call.1} parent=23 // pred_region
          %s732 = sand.u32 %s39, 1
          %s733 = scalar_lea.sflag [#allocation14], %s732
          %s734 = sand.u32 %s399, 1
          %s735 = smul.addr %s734, 64
          %s736 = scalar_lea.vmem [#allocation15], %s735
          %s738 = ssub.s32 1024, 1024
          %739 = vsyncadd %s733, %s738
          %s740 = smul.addr %s47, 16
          %s741 = smul.addr %s740, 64
          %s742 = scalar_lea.hbm %s13, %s741
          %s743 = sshll.u32 %s736, 4
          %s744 = int_to_ptr.vmem [resolvable:$true] %s743
          %749 = dma.hbm_to_vmem [thread:$0]  %s742, 1024, %s744, %s733, 64, 64, 4
        $region76: #{tpu_custom_call.1} parent=23 // pred_fallthru
          _
        // Predicated region
        $region77: #{tpu_custom_call.1} parent=23 // pred_check
          %p750 = pneg %p435
        $region78: #{tpu_custom_call.1} parent=23 // pred_check_branch
          %752 = sbr.rel (%p750) target = $region80
        $region79: #{tpu_custom_call.1} parent=23 // pred_region
          %p753 = scmp.lt.s32.totalorder %s47, 1
          %s754 = scalar_select %p753, %s47, 1
          %s755 = scalar_lea.vmem %s14, %s754
        $region80: #{tpu_custom_call.1} parent=23 // pred_fallthru
          _
        // Predicated region
        $region81: #{tpu_custom_call.1} parent=23 // pred_check
          %p756 = pneg %p461
        $region82: #{tpu_custom_call.1} parent=23 // pred_check_branch
          %758 = sbr.rel (%p756) target = $region84
        $region83: #{tpu_custom_call.1} parent=23 // pred_region
          %s759 = sand.u32 %s451, 1
          %s760 = scalar_lea.sflag [#allocation17], %s759
          %s761 = sand.u32 %s451, 1
          %s762 = smul.addr %s761, 64
          %s763 = scalar_lea.vmem [#allocation16], %s762
          %s765 = ssub.s32 1024, 1024
          %766 = vsyncadd %s760, %s765
          %s767 = smul.addr %s47, 16
          %s768 = smul.addr %s767, 64
          %s769 = scalar_lea.hbm %s15, %s768
          %s770 = sshll.u32 %s763, 4
          %s771 = int_to_ptr.vmem [resolvable:$true] %s770
          %776 = dma.hbm_to_vmem [thread:$0]  %s769, 1024, %s771, %s760, 64, 64, 4
        $region84: #{tpu_custom_call.1} parent=23 // pred_fallthru
          _
        // Predicated region
        $region85: #{tpu_custom_call.1} parent=23 // pred_check
          %p777 = pneg %p487
        $region86: #{tpu_custom_call.1} parent=23 // pred_check_branch
          %779 = sbr.rel (%p777) target = $region88
        $region87: #{tpu_custom_call.1} parent=23 // pred_region
          %p780 = scmp.lt.s32.totalorder %s47, 1
          %s781 = scalar_select %p780, %s47, 1
          %s782 = scalar_lea.vmem %s16, %s781
        $region88: #{tpu_custom_call.1} parent=23 // pred_fallthru
          _
      $region24: #{tpu_custom_call.1} parent=5 // pred_fallthru
        _
      %p783 = scmp.le.s32.totalorder 1, %s39
      %p784 = scmp.lt.s32.totalorder %s39, 3
      %p785 = pnand %p783, %p784
      %p786 = pneg %p785
      // Predicated region
      $region89: #{tpu_custom_call.1} parent=5 // pred_check
        _
      $region90: #{tpu_custom_call.1} parent=5 // pred_check_branch
        %788 = sbr.rel (%p785) target = $region92
      $region91: #{tpu_custom_call.1} parent=5 // pred_region
        %s789 = ssub.s32 %s39, 1
        // Predicated region
        $region93: #{tpu_custom_call.1} parent=91 // pred_check
          %p790 = pneg %p77
        $region94: #{tpu_custom_call.1} parent=91 // pred_check_branch
          %792 = sbr.rel (%p790) target = $region96
        $region95: #{tpu_custom_call.1} parent=91 // pred_region
          %793 = dma.done [#allocation4], 256
        $region96: #{tpu_custom_call.1} parent=91 // pred_fallthru
          _
        %s794 = sand.u32 %s44, 1
        %s795 = scalar_lea.sflag [#allocation8], %s794
        %s796 = sand.u32 %s90, 1
        %s797 = scalar_lea.vmem [#allocation7], %s796
        // Predicated region
        $region97: #{tpu_custom_call.1} parent=91 // pred_check
          %p798 = pneg %p103
        $region98: #{tpu_custom_call.1} parent=91 // pred_check_branch
          %800 = sbr.rel (%p798) target = $region100
        $region99: #{tpu_custom_call.1} parent=91 // pred_region
          %801 = dma.done %s795, 16
        $region100: #{tpu_custom_call.1} parent=91 // pred_fallthru
          _
        %s802 = sand.u32 %s44, 1
        %s803 = scalar_lea.sflag [#allocation8], %s802
        %s804 = sand.u32 %s142, 1
        %s805 = smul.addr %s804, 64
        %s806 = scalar_lea.vmem [#allocation9], %s805
        // Predicated region
        $region101: #{tpu_custom_call.1} parent=91 // pred_check
          %p807 = pneg %p155
        $region102: #{tpu_custom_call.1} parent=91 // pred_check_branch
          %809 = sbr.rel (%p807) target = $region104
        $region103: #{tpu_custom_call.1} parent=91 // pred_region
          %810 = dma.done %s803, 1024
        $region104: #{tpu_custom_call.1} parent=91 // pred_fallthru
          _
        %s811 = sand.u32 %s44, 1
        %s812 = scalar_lea.sflag [#allocation11], %s811
        %s813 = sand.u32 %s194, 1
        %s814 = smul.addr %s813, 64
        %s815 = scalar_lea.vmem [#allocation10], %s814
        // Predicated region
        $region105: #{tpu_custom_call.1} parent=91 // pred_check
          %p816 = pneg %p207
        $region106: #{tpu_custom_call.1} parent=91 // pred_check_branch
          %818 = sbr.rel (%p816) target = $region108
        $region107: #{tpu_custom_call.1} parent=91 // pred_region
          %819 = dma.done %s812, 1024
        $region108: #{tpu_custom_call.1} parent=91 // pred_fallthru
          _
        %s820 = sand.u32 %s44, 1
        %s821 = scalar_lea.sflag [#allocation11], %s820
        %s822 = sand.u32 %s246, 1
        %s823 = smul.addr %s822, 64
        %s824 = scalar_lea.vmem [#allocation12], %s823
        // Predicated region
        $region109: #{tpu_custom_call.1} parent=91 // pred_check
          %p825 = pneg %p259
        $region110: #{tpu_custom_call.1} parent=91 // pred_check_branch
          %827 = sbr.rel (%p825) target = $region112
        $region111: #{tpu_custom_call.1} parent=91 // pred_region
          %828 = dma.done %s821, 1024
        $region112: #{tpu_custom_call.1} parent=91 // pred_fallthru
          _
        %s829 = sand.u32 %s44, 1
        %s830 = scalar_lea.sflag [#allocation14], %s829
        %s831 = sand.u32 %s298, 1
        %s832 = smul.addr %s831, 64
        %s833 = scalar_lea.vmem [#allocation13], %s832
        // Predicated region
        $region113: #{tpu_custom_call.1} parent=91 // pred_check
          %p834 = pneg %p311
        $region114: #{tpu_custom_call.1} parent=91 // pred_check_branch
          %836 = sbr.rel (%p834) target = $region116
        $region115: #{tpu_custom_call.1} parent=91 // pred_region
          %837 = dma.done %s830, 1024
        $region116: #{tpu_custom_call.1} parent=91 // pred_fallthru
          _
        %s838 = sand.u32 %s44, 1
        %s839 = scalar_lea.sflag [#allocation14], %s838
        %s840 = sand.u32 %s402, 1
        %s841 = smul.addr %s840, 64
        %s842 = scalar_lea.vmem [#allocation15], %s841
        // Predicated region
        $region117: #{tpu_custom_call.1} parent=91 // pred_check
          %p843 = pneg %p415
        $region118: #{tpu_custom_call.1} parent=91 // pred_check_branch
          %845 = sbr.rel (%p843) target = $region120
        $region119: #{tpu_custom_call.1} parent=91 // pred_region
          %846 = dma.done %s839, 1024
        $region120: #{tpu_custom_call.1} parent=91 // pred_fallthru
          _
        %s847 = sand.u32 %s454, 1
        %s848 = scalar_lea.sflag [#allocation17], %s847
        %s849 = sand.u32 %s454, 1
        %s850 = smul.addr %s849, 64
        %s851 = scalar_lea.vmem [#allocation16], %s850
        // Predicated region
        $region121: #{tpu_custom_call.1} parent=91 // pred_check
          %p852 = pneg %p467
        $region122: #{tpu_custom_call.1} parent=91 // pred_check_branch
          %854 = sbr.rel (%p852) target = $region124
        $region123: #{tpu_custom_call.1} parent=91 // pred_region
          %855 = dma.done %s848, 1024
        $region124: #{tpu_custom_call.1} parent=91 // pred_fallthru
          _
        // Predicated region
        $region125: #{tpu_custom_call.1} parent=91 // pred_check
          %p856 = pneg %p514
        $region126: #{tpu_custom_call.1} parent=91 // pred_check_branch
          %858 = sbr.rel (%p856) target = $region128
        $region127: #{tpu_custom_call.1} parent=91 // pred_region
          %859 = dma.done [#allocation6], 16
        $region128: #{tpu_custom_call.1} parent=91 // pred_fallthru
          _
        %860 = sfence
        %p861 = pneg %p77
        %p862 = pneg %p74
        %s863 = sand.u32 %s44, 1
        %s864 = scalar_lea.sflag [#allocation8], %s863
        %s865 = sand.u32 %s90, 1
        %s866 = scalar_lea.vmem [#allocation7], %s865
        %p867 = pneg %p103
        %p868 = pneg %p100
        %p869 = scmp.lt.s32.totalorder %s49, 1
        %s870 = scalar_select %p869, %s49, 1
        %s871 = scalar_lea.vmem %s2, %s870
        %p872 = pneg %p129
        %p873 = pneg %p126
        %s874 = sand.u32 %s44, 1
        %s875 = scalar_lea.sflag [#allocation8], %s874
        %s876 = sand.u32 %s142, 1
        %s877 = smul.addr %s876, 64
        %s878 = scalar_lea.vmem [#allocation9], %s877
        %p879 = pneg %p155
        %p880 = pneg %p152
        %p881 = scmp.lt.s32.totalorder %s49, 1
        %s882 = scalar_select %p881, %s49, 1
        %s883 = scalar_lea.vmem %s4, %s882
        %p884 = pneg %p181
        %p885 = pneg %p178
        %s886 = sand.u32 %s44, 1
        %s887 = scalar_lea.sflag [#allocation11], %s886
        %s888 = sand.u32 %s194, 1
        %s889 = smul.addr %s888, 64
        %s890 = scalar_lea.vmem [#allocation10], %s889
        %p891 = pneg %p207
        %p892 = pneg %p204
        %p893 = scmp.lt.s32.totalorder %s49, 1
        %s894 = scalar_select %p893, %s49, 1
        %s895 = scalar_lea.vmem %s6, %s894
        %p896 = pneg %p233
        %p897 = pneg %p230
        %s898 = sand.u32 %s44, 1
        %s899 = scalar_lea.sflag [#allocation11], %s898
        %s900 = sand.u32 %s246, 1
        %s901 = smul.addr %s900, 64
        %s902 = scalar_lea.vmem [#allocation12], %s901
        %p903 = pneg %p259
        %p904 = pneg %p256
        %p905 = scmp.lt.s32.totalorder %s49, 1
        %s906 = scalar_select %p905, %s49, 1
        %s907 = scalar_lea.vmem %s8, %s906
        %p908 = pneg %p285
        %p909 = pneg %p282
        %s910 = sand.u32 %s44, 1
        %s911 = scalar_lea.sflag [#allocation14], %s910
        %s912 = sand.u32 %s298, 1
        %s913 = smul.addr %s912, 64
        %s914 = scalar_lea.vmem [#allocation13], %s913
        %p915 = pneg %p311
        %p916 = pneg %p308
        %p917 = scmp.lt.s32.totalorder %s49, 1
        %s918 = scalar_select %p917, %s49, 1
        %s919 = scalar_lea.vmem %s10, %s918
        %p920 = pneg %p337
        %p921 = pneg %p334
        %p922 = scmp.lt.s32.totalorder %s49, 1
        %s923 = scalar_select %p922, %s49, 1
        %s924 = scalar_lea.vmem %s11, %s923
        %p925 = pneg %p363
        %p926 = pneg %p360
        %p927 = scmp.lt.s32.totalorder %s49, 1
        %s928 = scalar_select %p927, %s49, 1
        %s929 = scalar_lea.vmem %s12, %s928
        %p930 = pneg %p389
        %p931 = pneg %p386
        %s932 = sand.u32 %s44, 1
        %s933 = scalar_lea.sflag [#allocation14], %s932
        %s934 = sand.u32 %s402, 1
        %s935 = smul.addr %s934, 64
        %s936 = scalar_lea.vmem [#allocation15], %s935
        %p937 = pneg %p415
        %p938 = pneg %p412
        %p939 = scmp.lt.s32.totalorder %s49, 1
        %s940 = scalar_select %p939, %s49, 1
        %s941 = scalar_lea.vmem %s14, %s940
        %p942 = pneg %p441
        %p943 = pneg %p438
        %s944 = sand.u32 %s454, 1
        %s945 = scalar_lea.sflag [#allocation17], %s944
        %s946 = sand.u32 %s454, 1
        %s947 = smul.addr %s946, 64
        %s948 = scalar_lea.vmem [#allocation16], %s947
        %p949 = pneg %p467
        %p950 = pneg %p464
        %p951 = scmp.lt.s32.totalorder %s49, 1
        %s952 = scalar_select %p951, %s49, 1
        %s953 = scalar_lea.vmem %s16, %s952
        %p954 = pneg %p493
        %p955 = pneg %p490
        %p956 = pneg %p514
        %p957 = pneg %p511
        %p958 = pneg %p540
        %p959 = pneg %p537
        %s960 = smul.u32 2, %s48
        %p961 = scmp.lt.s32.totalorder %s49, 1
        %s962 = scalar_select %p961, %s49, 1
        %s963 = scalar_lea.vmem %s2, %s962
        %p964 = scmp.lt.s32.totalorder %s49, 1
        %s965 = scalar_select %p964, %s49, 1
        %s966 = scalar_lea.vmem %s4, %s965
        %p967 = scmp.lt.s32.totalorder %s49, 1
        %s968 = scalar_select %p967, %s49, 1
        %s969 = scalar_lea.vmem %s6, %s968
        %p970 = scmp.lt.s32.totalorder %s49, 1
        %s971 = scalar_select %p970, %s49, 1
        %s972 = scalar_lea.vmem %s8, %s971
        %p973 = scmp.lt.s32.totalorder %s49, 1
        %s974 = scalar_select %p973, %s49, 1
        %s975 = scalar_lea.vmem %s10, %s974
        %p976 = scmp.lt.s32.totalorder %s49, 1
        %s977 = scalar_select %p976, %s49, 1
        %s978 = scalar_lea.vmem %s11, %s977
        %p979 = scmp.lt.s32.totalorder %s49, 1
        %s980 = scalar_select %p979, %s49, 1
        %s981 = scalar_lea.vmem %s12, %s980
        %p982 = scmp.lt.s32.totalorder %s49, 1
        %s983 = scalar_select %p982, %s49, 1
        %s984 = scalar_lea.vmem %s14, %s983
        %p985 = scmp.lt.s32.totalorder %s49, 1
        %s986 = scalar_select %p985, %s49, 1
        %s987 = scalar_lea.vmem %s16, %s986
        %s988 = smul.u32 2, %s48
        %p990 = scmp.eq.s32.totalorder %s49, 0
        // Predicated region
        $region129: #{tpu_custom_call.1} parent=91 // pred_check
          %p991 = pneg %p990
        $region130: #{tpu_custom_call.1} parent=91 // pred_check_branch
          %993 = sbr.rel (%p991) target = $region132
        $region131: #{tpu_custom_call.1} parent=91 // pred_region
          %v994 = vld [vmem:[#allocation3] sm:$0xff]
          %v995 = vld [vmem:[#allocation3 + $0x8] sm:$0xff]
          %996 = vst [vmem:[#allocation2] sm:$0xff] %v994
          %997 = vst [vmem:[#allocation2 + $0x8] sm:$0xff] %v995
        $region132: #{tpu_custom_call.1} parent=91 // pred_fallthru
          _
        %v998 = vld [vmem:[#allocation2] sm:$0xff]
        %v999 = vld [vmem:[#allocation2 + $0x8] sm:$0xff]
        %s1000 = sld [smem:[#allocation18 + %s49]]
        %v1001 = vld [vmem:[%s797] sm:$0x1]
        %v1002 = vld [vmem:[%s963] sm:$0x1]
        %1003 = vadd.xlane.f32.xlu0 %v998
        %v1004 = vpop.xlane.xlu0 %1003
        %1005 = vadd.xlane.f32.xlu0 %v999
        %v1006 = vpop.xlane.xlu0 %1005
        %v1007 = vmul.f32 %v1004, 0.03125
        %v1008 = vmul.f32 %v1006, 0.03125
        %v1009 = vmul.f32 %v998, %v998
        %v1010 = vmul.f32 %v999, %v999
        %1011 = vadd.xlane.f32.xlu0 %v1009
        %v1012 = vpop.xlane.xlu0 %1011
        %1013 = vadd.xlane.f32.xlu0 %v1010
        %v1014 = vpop.xlane.xlu0 %1013
        %v1015 = vmul.f32 %v1012, 0.03125
        %v1016 = vmul.f32 %v1014, 0.03125
        %v1017 = vmul.f32 %v1007, %v1007
        %v1018 = vmul.f32 %v1008, %v1008
        %v1019 = vsub.f32 %v1015, %v1017
        %v1020 = vsub.f32 %v1016, %v1018
        %v1021 = vsub.f32 %v998, %v1007
        %v1022 = vsub.f32 %v999, %v1008
        %v1023 = vadd.f32 %v1019, 1e-05
        %v1024 = vadd.f32 %v1020, 1e-05
        %v1025 = vrsqrt.pop %v1023
        %v1026 = vrsqrt.pop %v1024
        %v1027 = vmul.f32 %v1021, %v1025
        %v1028 = vmul.f32 %v1022, %v1026
        %v1030 = vlaneseq
        %v1031 = vshrl.u32 %v1030, 7
        %v1032 = vsub.s32 0, %v1031
        %v1033 = vrot.slane %v1001, %v1032
        %v1035 = vmul.f32 %v1027, %v1033
        %v1036 = vmul.f32 %v1028, %v1033
        %v1038 = vlaneseq
        %v1039 = vshrl.u32 %v1038, 7
        %v1040 = vsub.s32 0, %v1039
        %v1041 = vrot.slane %v1002, %v1040
        %v1043 = vadd.f32 %v1035, %v1041
        %v1044 = vadd.f32 %v1036, %v1041
        %v1045 = vpack.c.bf16 %v1044, %v1043
        %v1046 = vld [vmem:[%s806] sm:$0xf]
        %v1047 = vld [vmem:[%s806 + $0x4] sm:$0xf]
        %v1048 = vld [vmem:[%s806 + $0x8] sm:$0xf]
        %v1049 = vld [vmem:[%s806 + $0xc] sm:$0xf]
        %v1050 = vld [vmem:[%s806 + $0x10] sm:$0xf]
        %v1051 = vld [vmem:[%s806 + $0x14] sm:$0xf]
        %v1052 = vld [vmem:[%s806 + $0x18] sm:$0xf]
        %v1053 = vld [vmem:[%s806 + $0x1c] sm:$0xf]
        %v1054 = vld [vmem:[%s806 + $0x20] sm:$0xf]
        %v1055 = vld [vmem:[%s806 + $0x24] sm:$0xf]
        %v1056 = vld [vmem:[%s806 + $0x28] sm:$0xf]
        %v1057 = vld [vmem:[%s806 + $0x2c] sm:$0xf]
        %v1058 = vld [vmem:[%s806 + $0x30] sm:$0xf]
        %v1059 = vld [vmem:[%s806 + $0x34] sm:$0xf]
        %v1060 = vld [vmem:[%s806 + $0x38] sm:$0xf]
        %v1061 = vld [vmem:[%s806 + $0x3c] sm:$0xf]
        %v1062 = vld [vmem:[%s966] sm:$0x1]
        %v1064 = vlaneseq
        %v1065 = vshrl.u32 %v1064, 7
        %v1066 = vsub.s32 0, %v1065
        %v1067 = vrot.slane %v1062, %v1066
        %v1085 = vunpack.c.l.b16 %v1046
        %v1086 = vunpack.c.l.b16 %v1047
        %v1087 = vunpack.c.l.b16 %v1048
        %v1088 = vunpack.c.l.b16 %v1049
        %v1089 = vunpack.c.l.b16 %v1050
        %v1090 = vunpack.c.l.b16 %v1051
        %v1091 = vunpack.c.l.b16 %v1052
        %v1092 = vunpack.c.l.b16 %v1053
        %v1093 = vunpack.c.l.b16 %v1054
        %v1094 = vunpack.c.l.b16 %v1055
        %v1095 = vunpack.c.l.b16 %v1056
        %v1096 = vunpack.c.l.b16 %v1057
        %v1097 = vunpack.c.l.b16 %v1058
        %v1098 = vunpack.c.l.b16 %v1059
        %v1099 = vunpack.c.l.b16 %v1060
        %v1100 = vunpack.c.l.b16 %v1061
        %v1101 = vpack.c.b16 %v1086, %v1085
        %v1102 = vpack.c.b16 %v1088, %v1087
        %v1103 = vpack.c.b16 %v1090, %v1089
        %v1104 = vpack.c.b16 %v1092, %v1091
        %v1105 = vpack.c.b16 %v1094, %v1093
        %v1106 = vpack.c.b16 %v1096, %v1095
        %v1107 = vpack.c.b16 %v1098, %v1097
        %v1108 = vpack.c.b16 %v1100, %v1099
        %1117 = vmatprep.subr.bf16.mxu0 0
        %1118 = vmatpush1.bf16.msra.mxu0 %v1108
        %1119 = vmatprep.subr.bf16.mxu0 0
        %1120 = vmatpush1.bf16.msra.mxu0 %v1107
        %1121 = vmatprep.subr.bf16.mxu0 0
        %1122 = vmatpush1.bf16.msra.mxu0 %v1106
        %1123 = vmatprep.subr.bf16.mxu0 0
        %1124 = vmatpush1.bf16.msra.mxu0 %v1105
        %1125 = vmatprep.subr.bf16.mxu0 0
        %1126 = vmatpush1.bf16.msra.mxu0 %v1104
        %1127 = vmatprep.subr.bf16.mxu0 0
        %1128 = vmatpush1.bf16.msra.mxu0 %v1103
        %1129 = vmatprep.subr.bf16.mxu0 0
        %1130 = vmatpush1.bf16.msra.mxu0 %v1102
        %1131 = vmatprep.subr.bf16.mxu0 0
        %1132 = vmatpush1.bf16.msra.mxu0 %v1101
        %1133 = vmatprep.subr.bf16.mxu0 0
        %1134 = vmatpush2.bf16.msra.mxu0 0
        %1135 = vmatprep.subr.bf16.mxu0 0
        %1136 = vmatpush2.bf16.msra.mxu0 0
        %1137 = vmatprep.subr.bf16.mxu0 0
        %1138 = vmatpush2.bf16.msra.mxu0 0
        %1139 = vmatprep.subr.bf16.mxu0 0
        %1140 = vmatpush2.bf16.msra.mxu0 0
        %1141 = vmatprep.subr.bf16.mxu0 0
        %1142 = vmatpush2.bf16.msra.mxu0 0
        %1143 = vmatprep.subr.bf16.mxu0 0
        %1144 = vmatpush2.bf16.msra.mxu0 0
        %1145 = vmatprep.subr.bf16.mxu0 0
        %1146 = vmatpush2.bf16.msra.mxu0 0
        %1147 = vmatprep.subr.bf16.mxu0 0
        %1148 = vmatpush2.bf16.msra.mxu0 0
        %1149 = vmatprep.mubr.bf16.mxu0 0
        %1150 = vmatmul.mubr.bf16.gmra.mxu0 %v1045
        %v1151 = vpop.f32.mrf.mxu0
        %v1152 = vadd.f32 %v1067, %v1151
        %v1153 = vpop.f32.mrf.mxu0
        %v1154 = vpop.f32.mrf.mxu0
        %v1155 = vadd.f32 %v1067, %v1154
        %v1156 = vpop.f32.mrf.mxu0
        %1157 = vdwg.mxu0
        %v1158 = vld [vmem:[%s815] sm:$0xf]
        %v1159 = vld [vmem:[%s815 + $0x4] sm:$0xf]
        %v1160 = vld [vmem:[%s815 + $0x8] sm:$0xf]
        %v1161 = vld [vmem:[%s815 + $0xc] sm:$0xf]
        %v1162 = vld [vmem:[%s815 + $0x10] sm:$0xf]
        %v1163 = vld [vmem:[%s815 + $0x14] sm:$0xf]
        %v1164 = vld [vmem:[%s815 + $0x18] sm:$0xf]
        %v1165 = vld [vmem:[%s815 + $0x1c] sm:$0xf]
        %v1166 = vld [vmem:[%s815 + $0x20] sm:$0xf]
        %v1167 = vld [vmem:[%s815 + $0x24] sm:$0xf]
        %v1168 = vld [vmem:[%s815 + $0x28] sm:$0xf]
        %v1169 = vld [vmem:[%s815 + $0x2c] sm:$0xf]
        %v1170 = vld [vmem:[%s815 + $0x30] sm:$0xf]
        %v1171 = vld [vmem:[%s815 + $0x34] sm:$0xf]
        %v1172 = vld [vmem:[%s815 + $0x38] sm:$0xf]
        %v1173 = vld [vmem:[%s815 + $0x3c] sm:$0xf]
        %v1174 = vld [vmem:[%s969] sm:$0x1]
        %v1176 = vlaneseq
        %v1177 = vshrl.u32 %v1176, 7
        %v1178 = vsub.s32 0, %v1177
        %v1179 = vrot.slane %v1174, %v1178
        %v1197 = vunpack.c.l.b16 %v1158
        %v1198 = vunpack.c.l.b16 %v1159
        %v1199 = vunpack.c.l.b16 %v1160
        %v1200 = vunpack.c.l.b16 %v1161
        %v1201 = vunpack.c.l.b16 %v1162
        %v1202 = vunpack.c.l.b16 %v1163
        %v1203 = vunpack.c.l.b16 %v1164
        %v1204 = vunpack.c.l.b16 %v1165
        %v1205 = vunpack.c.l.b16 %v1166
        %v1206 = vunpack.c.l.b16 %v1167
        %v1207 = vunpack.c.l.b16 %v1168
        %v1208 = vunpack.c.l.b16 %v1169
        %v1209 = vunpack.c.l.b16 %v1170
        %v1210 = vunpack.c.l.b16 %v1171
        %v1211 = vunpack.c.l.b16 %v1172
        %v1212 = vunpack.c.l.b16 %v1173
        %v1213 = vpack.c.b16 %v1198, %v1197
        %v1214 = vpack.c.b16 %v1200, %v1199
        %v1215 = vpack.c.b16 %v1202, %v1201
        %v1216 = vpack.c.b16 %v1204, %v1203
        %v1217 = vpack.c.b16 %v1206, %v1205
        %v1218 = vpack.c.b16 %v1208, %v1207
        %v1219 = vpack.c.b16 %v1210, %v1209
        %v1220 = vpack.c.b16 %v1212, %v1211
        %1229 = vmatprep.subr.bf16.mxu0 0
        %1230 = vmatpush1.bf16.msra.mxu0 %v1220
        %1231 = vmatprep.subr.bf16.mxu0 0
        %1232 = vmatpush1.bf16.msra.mxu0 %v1219
        %1233 = vmatprep.subr.bf16.mxu0 0
        %1234 = vmatpush1.bf16.msra.mxu0 %v1218
        %1235 = vmatprep.subr.bf16.mxu0 0
        %1236 = vmatpush1.bf16.msra.mxu0 %v1217
        %1237 = vmatprep.subr.bf16.mxu0 0
        %1238 = vmatpush1.bf16.msra.mxu0 %v1216
        %1239 = vmatprep.subr.bf16.mxu0 0
        %1240 = vmatpush1.bf16.msra.mxu0 %v1215
        %1241 = vmatprep.subr.bf16.mxu0 0
        %1242 = vmatpush1.bf16.msra.mxu0 %v1214
        %1243 = vmatprep.subr.bf16.mxu0 0
        %1244 = vmatpush1.bf16.msra.mxu0 %v1213
        %1245 = vmatprep.subr.bf16.mxu0 0
        %1246 = vmatpush2.bf16.msra.mxu0 0
        %1247 = vmatprep.subr.bf16.mxu0 0
        %1248 = vmatpush2.bf16.msra.mxu0 0
        %1249 = vmatprep.subr.bf16.mxu0 0
        %1250 = vmatpush2.bf16.msra.mxu0 0
        %1251 = vmatprep.subr.bf16.mxu0 0
        %1252 = vmatpush2.bf16.msra.mxu0 0
        %1253 = vmatprep.subr.bf16.mxu0 0
        %1254 = vmatpush2.bf16.msra.mxu0 0
        %1255 = vmatprep.subr.bf16.mxu0 0
        %1256 = vmatpush2.bf16.msra.mxu0 0
        %1257 = vmatprep.subr.bf16.mxu0 0
        %1258 = vmatpush2.bf16.msra.mxu0 0
        %1259 = vmatprep.subr.bf16.mxu0 0
        %1260 = vmatpush2.bf16.msra.mxu0 0
        %1261 = vmatprep.mubr.bf16.mxu0 0
        %1262 = vmatmul.mubr.bf16.gmra.mxu0 %v1045
        %v1263 = vpop.f32.mrf.mxu0
        %v1264 = vadd.f32 %v1179, %v1263
        %v1265 = vpop.f32.mrf.mxu0
        %v1266 = vpop.f32.mrf.mxu0
        %v1267 = vadd.f32 %v1179, %v1266
        %v1268 = vpop.f32.mrf.mxu0
        %1269 = vdwg.mxu0
        %v1270 = vld [vmem:[%s824] sm:$0xf]
        %v1271 = vld [vmem:[%s824 + $0x4] sm:$0xf]
        %v1272 = vld [vmem:[%s824 + $0x8] sm:$0xf]
        %v1273 = vld [vmem:[%s824 + $0xc] sm:$0xf]
        %v1274 = vld [vmem:[%s824 + $0x10] sm:$0xf]
        %v1275 = vld [vmem:[%s824 + $0x14] sm:$0xf]
        %v1276 = vld [vmem:[%s824 + $0x18] sm:$0xf]
        %v1277 = vld [vmem:[%s824 + $0x1c] sm:$0xf]
        %v1278 = vld [vmem:[%s824 + $0x20] sm:$0xf]
        %v1279 = vld [vmem:[%s824 + $0x24] sm:$0xf]
        %v1280 = vld [vmem:[%s824 + $0x28] sm:$0xf]
        %v1281 = vld [vmem:[%s824 + $0x2c] sm:$0xf]
        %v1282 = vld [vmem:[%s824 + $0x30] sm:$0xf]
        %v1283 = vld [vmem:[%s824 + $0x34] sm:$0xf]
        %v1284 = vld [vmem:[%s824 + $0x38] sm:$0xf]
        %v1285 = vld [vmem:[%s824 + $0x3c] sm:$0xf]
        %v1286 = vld [vmem:[%s972] sm:$0x1]
        %v1288 = vlaneseq
        %v1289 = vshrl.u32 %v1288, 7
        %v1290 = vsub.s32 0, %v1289
        %v1291 = vrot.slane %v1286, %v1290
        %v1309 = vunpack.c.l.b16 %v1270
        %v1310 = vunpack.c.l.b16 %v1271
        %v1311 = vunpack.c.l.b16 %v1272
        %v1312 = vunpack.c.l.b16 %v1273
        %v1313 = vunpack.c.l.b16 %v1274
        %v1314 = vunpack.c.l.b16 %v1275
        %v1315 = vunpack.c.l.b16 %v1276
        %v1316 = vunpack.c.l.b16 %v1277
        %v1317 = vunpack.c.l.b16 %v1278
        %v1318 = vunpack.c.l.b16 %v1279
        %v1319 = vunpack.c.l.b16 %v1280
        %v1320 = vunpack.c.l.b16 %v1281
        %v1321 = vunpack.c.l.b16 %v1282
        %v1322 = vunpack.c.l.b16 %v1283
        %v1323 = vunpack.c.l.b16 %v1284
        %v1324 = vunpack.c.l.b16 %v1285
        %v1325 = vpack.c.b16 %v1310, %v1309
        %v1326 = vpack.c.b16 %v1312, %v1311
        %v1327 = vpack.c.b16 %v1314, %v1313
        %v1328 = vpack.c.b16 %v1316, %v1315
        %v1329 = vpack.c.b16 %v1318, %v1317
        %v1330 = vpack.c.b16 %v1320, %v1319
        %v1331 = vpack.c.b16 %v1322, %v1321
        %v1332 = vpack.c.b16 %v1324, %v1323
        %1341 = vmatprep.subr.bf16.mxu0 0
        %1342 = vmatpush1.bf16.msra.mxu0 %v1332
        %1343 = vmatprep.subr.bf16.mxu0 0
        %1344 = vmatpush1.bf16.msra.mxu0 %v1331
        %1345 = vmatprep.subr.bf16.mxu0 0
        %1346 = vmatpush1.bf16.msra.mxu0 %v1330
        %1347 = vmatprep.subr.bf16.mxu0 0
        %1348 = vmatpush1.bf16.msra.mxu0 %v1329
        %1349 = vmatprep.subr.bf16.mxu0 0
        %1350 = vmatpush1.bf16.msra.mxu0 %v1328
        %1351 = vmatprep.subr.bf16.mxu0 0
        %1352 = vmatpush1.bf16.msra.mxu0 %v1327
        %1353 = vmatprep.subr.bf16.mxu0 0
        %1354 = vmatpush1.bf16.msra.mxu0 %v1326
        %1355 = vmatprep.subr.bf16.mxu0 0
        %1356 = vmatpush1.bf16.msra.mxu0 %v1325
        %1357 = vmatprep.subr.bf16.mxu0 0
        %1358 = vmatpush2.bf16.msra.mxu0 0
        %1359 = vmatprep.subr.bf16.mxu0 0
        %1360 = vmatpush2.bf16.msra.mxu0 0
        %1361 = vmatprep.subr.bf16.mxu0 0
        %1362 = vmatpush2.bf16.msra.mxu0 0
        %1363 = vmatprep.subr.bf16.mxu0 0
        %1364 = vmatpush2.bf16.msra.mxu0 0
        %1365 = vmatprep.subr.bf16.mxu0 0
        %1366 = vmatpush2.bf16.msra.mxu0 0
        %1367 = vmatprep.subr.bf16.mxu0 0
        %1368 = vmatpush2.bf16.msra.mxu0 0
        %1369 = vmatprep.subr.bf16.mxu0 0
        %1370 = vmatpush2.bf16.msra.mxu0 0
        %1371 = vmatprep.subr.bf16.mxu0 0
        %1372 = vmatpush2.bf16.msra.mxu0 0
        %1373 = vmatprep.mubr.bf16.mxu0 0
        %1374 = vmatmul.mubr.bf16.gmra.mxu0 %v1045
        %v1375 = vpop.f32.mrf.mxu0
        %v1376 = vadd.f32 %v1291, %v1375
        %v1377 = vpop.f32.mrf.mxu0
        %v1378 = vpop.f32.mrf.mxu0
        %v1379 = vadd.f32 %v1291, %v1378
        %v1380 = vpop.f32.mrf.mxu0
        %1381 = vdwg.mxu0
        %v1382 = vpack.c.bf16 %v1152, %v1152
        %v1383 = vpack.c.bf16 %v1155, %v1155
        %v1384 = vpack.c.bf16 %v1264, %v1264
        %v1385 = vpack.c.bf16 %v1267, %v1267
        %v1386 = vpack.c.bf16 %v1376, %v1376
        %v1387 = vpack.c.bf16 %v1379, %v1379
        %vm1388 = vcmask 261120
        %v1390 = vsel %vm1388, %v1382, 0
        %v1393 = vsel %vm1388, %v1384, 0
        %1395 = vmatprep.subr.bf16.mxu0 0
        %1396 = vmatpush1.bf16.xpose.msra.mxu0 0
        %1397 = vmatprep.subr.bf16.mxu0 0
        %1398 = vmatpush1.bf16.xpose.msra.mxu0 0
        %1399 = vmatprep.subr.bf16.mxu0 0
        %1400 = vmatpush1.bf16.xpose.msra.mxu0 0
        %1401 = vmatprep.subr.bf16.mxu0 0
        %1402 = vmatpush1.bf16.xpose.msra.mxu0 0
        %1403 = vmatprep.subr.bf16.mxu0 0
        %1404 = vmatpush1.bf16.xpose.msra.mxu0 0
        %1405 = vmatprep.subr.bf16.mxu0 0
        %1406 = vmatpush1.bf16.xpose.msra.mxu0 0
        %1407 = vmatprep.subr.bf16.mxu0 0
        %1408 = vmatpush1.bf16.xpose.msra.mxu0 0
        %1409 = vmatprep.subr.bf16.mxu0 0
        %1410 = vmatpush1.bf16.xpose.msra.mxu0 %v1393
        %1411 = vmatprep.subr.bf16.mxu0 0
        %1412 = vmatpush2.bf16.xpose.msra.mxu0 0
        %1413 = vmatprep.subr.bf16.mxu0 0
        %1414 = vmatpush2.bf16.xpose.msra.mxu0 0
        %1415 = vmatprep.subr.bf16.mxu0 0
        %1416 = vmatpush2.bf16.xpose.msra.mxu0 0
        %1417 = vmatprep.subr.bf16.mxu0 0
        %1418 = vmatpush2.bf16.xpose.msra.mxu0 0
        %1419 = vmatprep.subr.bf16.mxu0 0
        %1420 = vmatpush2.bf16.xpose.msra.mxu0 0
        %1421 = vmatprep.subr.bf16.mxu0 0
        %1422 = vmatpush2.bf16.xpose.msra.mxu0 0
        %1423 = vmatprep.subr.bf16.mxu0 0
        %1424 = vmatpush2.bf16.xpose.msra.mxu0 0
        %1425 = vmatprep.subr.bf16.mxu0 0
        %1426 = vmatpush2.bf16.xpose.msra.mxu0 0
        %1427 = vmatprep.mubr.bf16.mxu0 0
        %1428 = vmatmul.mubr.bf16.gmra.mxu0 %v1390
        %v1429 = vpop.f32.mrf.mxu0
        %v1430 = vadd.f32 0.0, %v1429
        %v1431 = vpop.f32.mrf.mxu0
        %v1432 = vpop.f32.mrf.mxu0
        %v1433 = vpop.f32.mrf.mxu0
        %1434 = vdwg.mxu0
        %v1436 = vsel %vm1388, %v1383, 0
        %v1439 = vsel %vm1388, %v1385, 0
        %1441 = vmatprep.subr.bf16.mxu0 0
        %1442 = vmatpush1.bf16.xpose.msra.mxu0 0
        %1443 = vmatprep.subr.bf16.mxu0 0
        %1444 = vmatpush1.bf16.xpose.msra.mxu0 0
        %1445 = vmatprep.subr.bf16.mxu0 0
        %1446 = vmatpush1.bf16.xpose.msra.mxu0 0
        %1447 = vmatprep.subr.bf16.mxu0 0
        %1448 = vmatpush1.bf16.xpose.msra.mxu0 0
        %1449 = vmatprep.subr.bf16.mxu0 0
        %1450 = vmatpush1.bf16.xpose.msra.mxu0 0
        %1451 = vmatprep.subr.bf16.mxu0 0
        %1452 = vmatpush1.bf16.xpose.msra.mxu0 0
        %1453 = vmatprep.subr.bf16.mxu0 0
        %1454 = vmatpush1.bf16.xpose.msra.mxu0 0
        %1455 = vmatprep.subr.bf16.mxu0 0
        %1456 = vmatpush1.bf16.xpose.msra.mxu0 %v1439
        %1457 = vmatprep.subr.bf16.mxu0 0
        %1458 = vmatpush2.bf16.xpose.msra.mxu0 0
        %1459 = vmatprep.subr.bf16.mxu0 0
        %1460 = vmatpush2.bf16.xpose.msra.mxu0 0
        %1461 = vmatprep.subr.bf16.mxu0 0
        %1462 = vmatpush2.bf16.xpose.msra.mxu0 0
        %1463 = vmatprep.subr.bf16.mxu0 0
        %1464 = vmatpush2.bf16.xpose.msra.mxu0 0
        %1465 = vmatprep.subr.bf16.mxu0 0
        %1466 = vmatpush2.bf16.xpose.msra.mxu0 0
        %1467 = vmatprep.subr.bf16.mxu0 0
        %1468 = vmatpush2.bf16.xpose.msra.mxu0 0
        %1469 = vmatprep.subr.bf16.mxu0 0
        %1470 = vmatpush2.bf16.xpose.msra.mxu0 0
        %1471 = vmatprep.subr.bf16.mxu0 0
        %1472 = vmatpush2.bf16.xpose.msra.mxu0 0
        %1473 = vmatprep.mubr.bf16.mxu0 0
        %1474 = vmatmul.mubr.bf16.gmra.mxu0 %v1436
        %v1475 = vpop.f32.mrf.mxu0
        %v1476 = vadd.f32 0.0, %v1475
        %v1477 = vpop.f32.mrf.mxu0
        %v1478 = vpop.f32.mrf.mxu0
        %v1479 = vpop.f32.mrf.mxu0
        %1480 = vdwg.mxu0
        %vm1481 = vcmask 64512
        %v1482 = vsel %vm1481, %v1430, -inf
        %1483 = vmax.xlane.f32.xlu0 %v1482
        %v1484 = vpop.xlane.xlu0 %1483
        %v1485 = vsel %vm1481, %v1476, -inf
        %1486 = vmax.xlane.f32.xlu0 %v1485
        %v1487 = vpop.xlane.xlu0 %1486
        %v1488 = vsub.f32 %v1430, %v1484
        %v1489 = vsub.f32 %v1476, %v1487
        %v1490 = vmul.f32 %v1488, 1.442695
        %v1491 = vpow.pop %v1490
        %v1492 = vmul.f32 %v1489, 1.442695
        %v1493 = vpow.pop %v1492
        %v1494 = vsel %vm1481, %v1491, 0.0
        %1495 = vadd.xlane.f32.xlu0 %v1494
        %v1496 = vpop.xlane.xlu0 %1495
        %v1497 = vsel %vm1481, %v1493, 0.0
        %1498 = vadd.xlane.f32.xlu0 %v1497
        %v1499 = vpop.xlane.xlu0 %1498
        %v1500 = vrcp.pop %v1496
        %v1501 = vrcp.pop %v1499
        %v1502 = vmul.f32 %v1491, %v1500
        %v1503 = vmul.f32 %v1493, %v1501
        %v1504 = vpack.c.bf16 %v1502, %v1502
        %v1505 = vpack.c.bf16 %v1503, %v1503
        %v1507 = vsel %vm1481, %v1504, 0
        %vm1509 = vcmask 1043456
        %v1511 = vsel %vm1509, %v1386, 0
        %1513 = vmatprep.subr.bf16.mxu0 0
        %1514 = vmatpush1.bf16.msra.mxu0 0
        %1515 = vmatprep.subr.bf16.mxu0 0
        %1516 = vmatpush1.bf16.msra.mxu0 0
        %1517 = vmatprep.subr.bf16.mxu0 0
        %1518 = vmatpush1.bf16.msra.mxu0 0
        %1519 = vmatprep.subr.bf16.mxu0 0
        %1520 = vmatpush1.bf16.msra.mxu0 0
        %1521 = vmatprep.subr.bf16.mxu0 0
        %1522 = vmatpush1.bf16.msra.mxu0 0
        %1523 = vmatprep.subr.bf16.mxu0 0
        %1524 = vmatpush1.bf16.msra.mxu0 0
        %1525 = vmatprep.subr.bf16.mxu0 0
        %1526 = vmatpush1.bf16.msra.mxu0 0
        %1527 = vmatprep.subr.bf16.mxu0 0
        %1528 = vmatpush1.bf16.msra.mxu0 %v1511
        %1529 = vmatprep.subr.bf16.mxu0 0
        %1530 = vmatpush2.bf16.msra.mxu0 0
        %1531 = vmatprep.subr.bf16.mxu0 0
        %1532 = vmatpush2.bf16.msra.mxu0 0
        %1533 = vmatprep.subr.bf16.mxu0 0
        %1534 = vmatpush2.bf16.msra.mxu0 0
        %1535 = vmatprep.subr.bf16.mxu0 0
        %1536 = vmatpush2.bf16.msra.mxu0 0
        %1537 = vmatprep.subr.bf16.mxu0 0
        %1538 = vmatpush2.bf16.msra.mxu0 0
        %1539 = vmatprep.subr.bf16.mxu0 0
        %1540 = vmatpush2.bf16.msra.mxu0 0
        %1541 = vmatprep.subr.bf16.mxu0 0
        %1542 = vmatpush2.bf16.msra.mxu0 0
        %1543 = vmatprep.subr.bf16.mxu0 0
        %1544 = vmatpush2.bf16.msra.mxu0 0
        %1545 = vmatprep.mubr.bf16.mxu0 0
        %1546 = vmatmul.mubr.bf16.gmra.mxu0 %v1507
        %v1547 = vpop.f32.mrf.mxu0
        %v1548 = vadd.f32 0.0, %v1547
        %v1549 = vpop.f32.mrf.mxu0
        %v1550 = vpop.f32.mrf.mxu0
        %v1551 = vpop.f32.mrf.mxu0
        %1552 = vdwg.mxu0
        %v1554 = vsel %vm1481, %v1505, 0
        %v1557 = vsel %vm1509, %v1387, 0
        %1559 = vmatprep.subr.bf16.mxu0 0
        %1560 = vmatpush1.bf16.msra.mxu0 0
        %1561 = vmatprep.subr.bf16.mxu0 0
        %1562 = vmatpush1.bf16.msra.mxu0 0
        %1563 = vmatprep.subr.bf16.mxu0 0
        %1564 = vmatpush1.bf16.msra.mxu0 0
        %1565 = vmatprep.subr.bf16.mxu0 0
        %1566 = vmatpush1.bf16.msra.mxu0 0
        %1567 = vmatprep.subr.bf16.mxu0 0
        %1568 = vmatpush1.bf16.msra.mxu0 0
        %1569 = vmatprep.subr.bf16.mxu0 0
        %1570 = vmatpush1.bf16.msra.mxu0 0
        %1571 = vmatprep.subr.bf16.mxu0 0
        %1572 = vmatpush1.bf16.msra.mxu0 0
        %1573 = vmatprep.subr.bf16.mxu0 0
        %1574 = vmatpush1.bf16.msra.mxu0 %v1557
        %1575 = vmatprep.subr.bf16.mxu0 0
        %1576 = vmatpush2.bf16.msra.mxu0 0
        %1577 = vmatprep.subr.bf16.mxu0 0
        %1578 = vmatpush2.bf16.msra.mxu0 0
        %1579 = vmatprep.subr.bf16.mxu0 0
        %1580 = vmatpush2.bf16.msra.mxu0 0
        %1581 = vmatprep.subr.bf16.mxu0 0
        %1582 = vmatpush2.bf16.msra.mxu0 0
        %1583 = vmatprep.subr.bf16.mxu0 0
        %1584 = vmatpush2.bf16.msra.mxu0 0
        %1585 = vmatprep.subr.bf16.mxu0 0
        %1586 = vmatpush2.bf16.msra.mxu0 0
        %1587 = vmatprep.subr.bf16.mxu0 0
        %1588 = vmatpush2.bf16.msra.mxu0 0
        %1589 = vmatprep.subr.bf16.mxu0 0
        %1590 = vmatpush2.bf16.msra.mxu0 0
        %1591 = vmatprep.mubr.bf16.mxu0 0
        %1592 = vmatmul.mubr.bf16.gmra.mxu0 %v1554
        %v1593 = vpop.f32.mrf.mxu0
        %v1594 = vadd.f32 0.0, %v1593
        %v1595 = vpop.f32.mrf.mxu0
        %v1596 = vpop.f32.mrf.mxu0
        %v1597 = vpop.f32.mrf.mxu0
        %1598 = vdwg.mxu0
        %1600 = vrot.lane.b32.xlu0 %v1382, 96
        %v1601 = vpop.permute.xlu0 %1600
        %1603 = vrot.lane.b32.xlu0 %v1384, 96
        %v1604 = vpop.permute.xlu0 %1603
        %v1606 = vsel %vm1388, %v1601, 0
        %v1609 = vsel %vm1388, %v1604, 0
        %1611 = vmatprep.subr.bf16.mxu0 0
        %1612 = vmatpush1.bf16.xpose.msra.mxu0 0
        %1613 = vmatprep.subr.bf16.mxu0 0
        %1614 = vmatpush1.bf16.xpose.msra.mxu0 0
        %1615 = vmatprep.subr.bf16.mxu0 0
        %1616 = vmatpush1.bf16.xpose.msra.mxu0 0
        %1617 = vmatprep.subr.bf16.mxu0 0
        %1618 = vmatpush1.bf16.xpose.msra.mxu0 0
        %1619 = vmatprep.subr.bf16.mxu0 0
        %1620 = vmatpush1.bf16.xpose.msra.mxu0 0
        %1621 = vmatprep.subr.bf16.mxu0 0
        %1622 = vmatpush1.bf16.xpose.msra.mxu0 0
        %1623 = vmatprep.subr.bf16.mxu0 0
        %1624 = vmatpush1.bf16.xpose.msra.mxu0 0
        %1625 = vmatprep.subr.bf16.mxu0 0
        %1626 = vmatpush1.bf16.xpose.msra.mxu0 %v1609
        %1627 = vmatprep.subr.bf16.mxu0 0
        %1628 = vmatpush2.bf16.xpose.msra.mxu0 0
        %1629 = vmatprep.subr.bf16.mxu0 0
        %1630 = vmatpush2.bf16.xpose.msra.mxu0 0
        %1631 = vmatprep.subr.bf16.mxu0 0
        %1632 = vmatpush2.bf16.xpose.msra.mxu0 0
        %1633 = vmatprep.subr.bf16.mxu0 0
        %1634 = vmatpush2.bf16.xpose.msra.mxu0 0
        %1635 = vmatprep.subr.bf16.mxu0 0
        %1636 = vmatpush2.bf16.xpose.msra.mxu0 0
        %1637 = vmatprep.subr.bf16.mxu0 0
        %1638 = vmatpush2.bf16.xpose.msra.mxu0 0
        %1639 = vmatprep.subr.bf16.mxu0 0
        %1640 = vmatpush2.bf16.xpose.msra.mxu0 0
        %1641 = vmatprep.subr.bf16.mxu0 0
        %1642 = vmatpush2.bf16.xpose.msra.mxu0 0
        %1643 = vmatprep.mubr.bf16.mxu0 0
        %1644 = vmatmul.mubr.bf16.gmra.mxu0 %v1606
        %v1645 = vpop.f32.mrf.mxu0
        %v1646 = vadd.f32 0.0, %v1645
        %v1647 = vpop.f32.mrf.mxu0
        %v1648 = vpop.f32.mrf.mxu0
        %v1649 = vpop.f32.mrf.mxu0
        %1650 = vdwg.mxu0
        %1652 = vrot.lane.b32.xlu0 %v1383, 96
        %v1653 = vpop.permute.xlu0 %1652
        %1655 = vrot.lane.b32.xlu0 %v1385, 96
        %v1656 = vpop.permute.xlu0 %1655
        %v1658 = vsel %vm1388, %v1653, 0
        %v1661 = vsel %vm1388, %v1656, 0
        %1663 = vmatprep.subr.bf16.mxu0 0
        %1664 = vmatpush1.bf16.xpose.msra.mxu0 0
        %1665 = vmatprep.subr.bf16.mxu0 0
        %1666 = vmatpush1.bf16.xpose.msra.mxu0 0
        %1667 = vmatprep.subr.bf16.mxu0 0
        %1668 = vmatpush1.bf16.xpose.msra.mxu0 0
        %1669 = vmatprep.subr.bf16.mxu0 0
        %1670 = vmatpush1.bf16.xpose.msra.mxu0 0
        %1671 = vmatprep.subr.bf16.mxu0 0
        %1672 = vmatpush1.bf16.xpose.msra.mxu0 0
        %1673 = vmatprep.subr.bf16.mxu0 0
        %1674 = vmatpush1.bf16.xpose.msra.mxu0 0
        %1675 = vmatprep.subr.bf16.mxu0 0
        %1676 = vmatpush1.bf16.xpose.msra.mxu0 0
        %1677 = vmatprep.subr.bf16.mxu0 0
        %1678 = vmatpush1.bf16.xpose.msra.mxu0 %v1661
        %1679 = vmatprep.subr.bf16.mxu0 0
        %1680 = vmatpush2.bf16.xpose.msra.mxu0 0
        %1681 = vmatprep.subr.bf16.mxu0 0
        %1682 = vmatpush2.bf16.xpose.msra.mxu0 0
        %1683 = vmatprep.subr.bf16.mxu0 0
        %1684 = vmatpush2.bf16.xpose.msra.mxu0 0
        %1685 = vmatprep.subr.bf16.mxu0 0
        %1686 = vmatpush2.bf16.xpose.msra.mxu0 0
        %1687 = vmatprep.subr.bf16.mxu0 0
        %1688 = vmatpush2.bf16.xpose.msra.mxu0 0
        %1689 = vmatprep.subr.bf16.mxu0 0
        %1690 = vmatpush2.bf16.xpose.msra.mxu0 0
        %1691 = vmatprep.subr.bf16.mxu0 0
        %1692 = vmatpush2.bf16.xpose.msra.mxu0 0
        %1693 = vmatprep.subr.bf16.mxu0 0
        %1694 = vmatpush2.bf16.xpose.msra.mxu0 0
        %1695 = vmatprep.mubr.bf16.mxu0 0
        %1696 = vmatmul.mubr.bf16.gmra.mxu0 %v1658
        %v1697 = vpop.f32.mrf.mxu0
        %v1698 = vadd.f32 0.0, %v1697
        %v1699 = vpop.f32.mrf.mxu0
        %v1700 = vpop.f32.mrf.mxu0
        %v1701 = vpop.f32.mrf.mxu0
        %1702 = vdwg.mxu0
        %v1703 = vsel %vm1481, %v1646, -inf
        %1704 = vmax.xlane.f32.xlu0 %v1703
        %v1705 = vpop.xlane.xlu0 %1704
        %v1706 = vsel %vm1481, %v1698, -inf
        %1707 = vmax.xlane.f32.xlu0 %v1706
        %v1708 = vpop.xlane.xlu0 %1707
        %v1709 = vsub.f32 %v1646, %v1705
        %v1710 = vsub.f32 %v1698, %v1708
        %v1711 = vmul.f32 %v1709, 1.442695
        %v1712 = vpow.pop %v1711
        %v1713 = vmul.f32 %v1710, 1.442695
        %v1714 = vpow.pop %v1713
        %v1715 = vsel %vm1481, %v1712, 0.0
        %1716 = vadd.xlane.f32.xlu0 %v1715
        %v1717 = vpop.xlane.xlu0 %1716
        %v1718 = vsel %vm1481, %v1714, 0.0
        %1719 = vadd.xlane.f32.xlu0 %v1718
        %v1720 = vpop.xlane.xlu0 %1719
        %v1721 = vrcp.pop %v1717
        %v1722 = vrcp.pop %v1720
        %v1723 = vmul.f32 %v1712, %v1721
        %v1724 = vmul.f32 %v1714, %v1722
        %v1725 = vpack.c.bf16 %v1723, %v1723
        %v1726 = vpack.c.bf16 %v1724, %v1724
        %1728 = vrot.lane.b32.xlu0 %v1386, 96
        %v1729 = vpop.permute.xlu0 %1728
        %v1731 = vsel %vm1481, %v1725, 0
        %v1734 = vsel %vm1509, %v1729, 0
        %1736 = vmatprep.subr.bf16.mxu0 0
        %1737 = vmatpush1.bf16.msra.mxu0 0
        %1738 = vmatprep.subr.bf16.mxu0 0
        %1739 = vmatpush1.bf16.msra.mxu0 0
        %1740 = vmatprep.subr.bf16.mxu0 0
        %1741 = vmatpush1.bf16.msra.mxu0 0
        %1742 = vmatprep.subr.bf16.mxu0 0
        %1743 = vmatpush1.bf16.msra.mxu0 0
        %1744 = vmatprep.subr.bf16.mxu0 0
        %1745 = vmatpush1.bf16.msra.mxu0 0
        %1746 = vmatprep.subr.bf16.mxu0 0
        %1747 = vmatpush1.bf16.msra.mxu0 0
        %1748 = vmatprep.subr.bf16.mxu0 0
        %1749 = vmatpush1.bf16.msra.mxu0 0
        %1750 = vmatprep.subr.bf16.mxu0 0
        %1751 = vmatpush1.bf16.msra.mxu0 %v1734
        %1752 = vmatprep.subr.bf16.mxu0 0
        %1753 = vmatpush2.bf16.msra.mxu0 0
        %1754 = vmatprep.subr.bf16.mxu0 0
        %1755 = vmatpush2.bf16.msra.mxu0 0
        %1756 = vmatprep.subr.bf16.mxu0 0
        %1757 = vmatpush2.bf16.msra.mxu0 0
        %1758 = vmatprep.subr.bf16.mxu0 0
        %1759 = vmatpush2.bf16.msra.mxu0 0
        %1760 = vmatprep.subr.bf16.mxu0 0
        %1761 = vmatpush2.bf16.msra.mxu0 0
        %1762 = vmatprep.subr.bf16.mxu0 0
        %1763 = vmatpush2.bf16.msra.mxu0 0
        %1764 = vmatprep.subr.bf16.mxu0 0
        %1765 = vmatpush2.bf16.msra.mxu0 0
        %1766 = vmatprep.subr.bf16.mxu0 0
        %1767 = vmatpush2.bf16.msra.mxu0 0
        %1768 = vmatprep.mubr.bf16.mxu0 0
        %1769 = vmatmul.mubr.bf16.gmra.mxu0 %v1731
        %v1770 = vpop.f32.mrf.mxu0
        %v1771 = vadd.f32 0.0, %v1770
        %v1772 = vpop.f32.mrf.mxu0
        %v1773 = vpop.f32.mrf.mxu0
        %v1774 = vpop.f32.mrf.mxu0
        %1775 = vdwg.mxu0
        %1777 = vrot.lane.b32.xlu0 %v1387, 96
        %v1778 = vpop.permute.xlu0 %1777
        %v1780 = vsel %vm1481, %v1726, 0
        %v1783 = vsel %vm1509, %v1778, 0
        %1785 = vmatprep.subr.bf16.mxu0 0
        %1786 = vmatpush1.bf16.msra.mxu0 0
        %1787 = vmatprep.subr.bf16.mxu0 0
        %1788 = vmatpush1.bf16.msra.mxu0 0
        %1789 = vmatprep.subr.bf16.mxu0 0
        %1790 = vmatpush1.bf16.msra.mxu0 0
        %1791 = vmatprep.subr.bf16.mxu0 0
        %1792 = vmatpush1.bf16.msra.mxu0 0
        %1793 = vmatprep.subr.bf16.mxu0 0
        %1794 = vmatpush1.bf16.msra.mxu0 0
        %1795 = vmatprep.subr.bf16.mxu0 0
        %1796 = vmatpush1.bf16.msra.mxu0 0
        %1797 = vmatprep.subr.bf16.mxu0 0
        %1798 = vmatpush1.bf16.msra.mxu0 0
        %1799 = vmatprep.subr.bf16.mxu0 0
        %1800 = vmatpush1.bf16.msra.mxu0 %v1783
        %1801 = vmatprep.subr.bf16.mxu0 0
        %1802 = vmatpush2.bf16.msra.mxu0 0
        %1803 = vmatprep.subr.bf16.mxu0 0
        %1804 = vmatpush2.bf16.msra.mxu0 0
        %1805 = vmatprep.subr.bf16.mxu0 0
        %1806 = vmatpush2.bf16.msra.mxu0 0
        %1807 = vmatprep.subr.bf16.mxu0 0
        %1808 = vmatpush2.bf16.msra.mxu0 0
        %1809 = vmatprep.subr.bf16.mxu0 0
        %1810 = vmatpush2.bf16.msra.mxu0 0
        %1811 = vmatprep.subr.bf16.mxu0 0
        %1812 = vmatpush2.bf16.msra.mxu0 0
        %1813 = vmatprep.subr.bf16.mxu0 0
        %1814 = vmatpush2.bf16.msra.mxu0 0
        %1815 = vmatprep.subr.bf16.mxu0 0
        %1816 = vmatpush2.bf16.msra.mxu0 0
        %1817 = vmatprep.mubr.bf16.mxu0 0
        %1818 = vmatmul.mubr.bf16.gmra.mxu0 %v1780
        %v1819 = vpop.f32.mrf.mxu0
        %v1820 = vadd.f32 0.0, %v1819
        %v1821 = vpop.f32.mrf.mxu0
        %v1822 = vpop.f32.mrf.mxu0
        %v1823 = vpop.f32.mrf.mxu0
        %1824 = vdwg.mxu0
        %1825 = vrot.lane.b32.xlu0 %v1382, 64
        %v1826 = vpop.permute.xlu0 %1825
        %1827 = vrot.lane.b32.xlu0 %v1384, 64
        %v1828 = vpop.permute.xlu0 %1827
        %v1830 = vsel %vm1388, %v1826, 0
        %v1833 = vsel %vm1388, %v1828, 0
        %1835 = vmatprep.subr.bf16.mxu0 0
        %1836 = vmatpush1.bf16.xpose.msra.mxu0 0
        %1837 = vmatprep.subr.bf16.mxu0 0
        %1838 = vmatpush1.bf16.xpose.msra.mxu0 0
        %1839 = vmatprep.subr.bf16.mxu0 0
        %1840 = vmatpush1.bf16.xpose.msra.mxu0 0
        %1841 = vmatprep.subr.bf16.mxu0 0
        %1842 = vmatpush1.bf16.xpose.msra.mxu0 0
        %1843 = vmatprep.subr.bf16.mxu0 0
        %1844 = vmatpush1.bf16.xpose.msra.mxu0 0
        %1845 = vmatprep.subr.bf16.mxu0 0
        %1846 = vmatpush1.bf16.xpose.msra.mxu0 0
        %1847 = vmatprep.subr.bf16.mxu0 0
        %1848 = vmatpush1.bf16.xpose.msra.mxu0 0
        %1849 = vmatprep.subr.bf16.mxu0 0
        %1850 = vmatpush1.bf16.xpose.msra.mxu0 %v1833
        %1851 = vmatprep.subr.bf16.mxu0 0
        %1852 = vmatpush2.bf16.xpose.msra.mxu0 0
        %1853 = vmatprep.subr.bf16.mxu0 0
        %1854 = vmatpush2.bf16.xpose.msra.mxu0 0
        %1855 = vmatprep.subr.bf16.mxu0 0
        %1856 = vmatpush2.bf16.xpose.msra.mxu0 0
        %1857 = vmatprep.subr.bf16.mxu0 0
        %1858 = vmatpush2.bf16.xpose.msra.mxu0 0
        %1859 = vmatprep.subr.bf16.mxu0 0
        %1860 = vmatpush2.bf16.xpose.msra.mxu0 0
        %1861 = vmatprep.subr.bf16.mxu0 0
        %1862 = vmatpush2.bf16.xpose.msra.mxu0 0
        %1863 = vmatprep.subr.bf16.mxu0 0
        %1864 = vmatpush2.bf16.xpose.msra.mxu0 0
        %1865 = vmatprep.subr.bf16.mxu0 0
        %1866 = vmatpush2.bf16.xpose.msra.mxu0 0
        %1867 = vmatprep.mubr.bf16.mxu0 0
        %1868 = vmatmul.mubr.bf16.gmra.mxu0 %v1830
        %v1869 = vpop.f32.mrf.mxu0
        %v1870 = vadd.f32 0.0, %v1869
        %v1871 = vpop.f32.mrf.mxu0
        %v1872 = vpop.f32.mrf.mxu0
        %v1873 = vpop.f32.mrf.mxu0
        %1874 = vdwg.mxu0
        %1875 = vrot.lane.b32.xlu0 %v1383, 64
        %v1876 = vpop.permute.xlu0 %1875
        %1877 = vrot.lane.b32.xlu0 %v1385, 64
        %v1878 = vpop.permute.xlu0 %1877
        %v1880 = vsel %vm1388, %v1876, 0
        %v1883 = vsel %vm1388, %v1878, 0
        %1885 = vmatprep.subr.bf16.mxu0 0
        %1886 = vmatpush1.bf16.xpose.msra.mxu0 0
        %1887 = vmatprep.subr.bf16.mxu0 0
        %1888 = vmatpush1.bf16.xpose.msra.mxu0 0
        %1889 = vmatprep.subr.bf16.mxu0 0
        %1890 = vmatpush1.bf16.xpose.msra.mxu0 0
        %1891 = vmatprep.subr.bf16.mxu0 0
        %1892 = vmatpush1.bf16.xpose.msra.mxu0 0
        %1893 = vmatprep.subr.bf16.mxu0 0
        %1894 = vmatpush1.bf16.xpose.msra.mxu0 0
        %1895 = vmatprep.subr.bf16.mxu0 0
        %1896 = vmatpush1.bf16.xpose.msra.mxu0 0
        %1897 = vmatprep.subr.bf16.mxu0 0
        %1898 = vmatpush1.bf16.xpose.msra.mxu0 0
        %1899 = vmatprep.subr.bf16.mxu0 0
        %1900 = vmatpush1.bf16.xpose.msra.mxu0 %v1883
        %1901 = vmatprep.subr.bf16.mxu0 0
        %1902 = vmatpush2.bf16.xpose.msra.mxu0 0
        %1903 = vmatprep.subr.bf16.mxu0 0
        %1904 = vmatpush2.bf16.xpose.msra.mxu0 0
        %1905 = vmatprep.subr.bf16.mxu0 0
        %1906 = vmatpush2.bf16.xpose.msra.mxu0 0
        %1907 = vmatprep.subr.bf16.mxu0 0
        %1908 = vmatpush2.bf16.xpose.msra.mxu0 0
        %1909 = vmatprep.subr.bf16.mxu0 0
        %1910 = vmatpush2.bf16.xpose.msra.mxu0 0
        %1911 = vmatprep.subr.bf16.mxu0 0
        %1912 = vmatpush2.bf16.xpose.msra.mxu0 0
        %1913 = vmatprep.subr.bf16.mxu0 0
        %1914 = vmatpush2.bf16.xpose.msra.mxu0 0
        %1915 = vmatprep.subr.bf16.mxu0 0
        %1916 = vmatpush2.bf16.xpose.msra.mxu0 0
        %1917 = vmatprep.mubr.bf16.mxu0 0
        %1918 = vmatmul.mubr.bf16.gmra.mxu0 %v1880
        %v1919 = vpop.f32.mrf.mxu0
        %v1920 = vadd.f32 0.0, %v1919
        %v1921 = vpop.f32.mrf.mxu0
        %v1922 = vpop.f32.mrf.mxu0
        %v1923 = vpop.f32.mrf.mxu0
        %1924 = vdwg.mxu0
        %v1925 = vsel %vm1481, %v1870, -inf
        %1926 = vmax.xlane.f32.xlu0 %v1925
        %v1927 = vpop.xlane.xlu0 %1926
        %v1928 = vsel %vm1481, %v1920, -inf
        %1929 = vmax.xlane.f32.xlu0 %v1928
        %v1930 = vpop.xlane.xlu0 %1929
        %v1931 = vsub.f32 %v1870, %v1927
        %v1932 = vsub.f32 %v1920, %v1930
        %v1933 = vmul.f32 %v1931, 1.442695
        %v1934 = vpow.pop %v1933
        %v1935 = vmul.f32 %v1932, 1.442695
        %v1936 = vpow.pop %v1935
        %v1937 = vsel %vm1481, %v1934, 0.0
        %1938 = vadd.xlane.f32.xlu0 %v1937
        %v1939 = vpop.xlane.xlu0 %1938
        %v1940 = vsel %vm1481, %v1936, 0.0
        %1941 = vadd.xlane.f32.xlu0 %v1940
        %v1942 = vpop.xlane.xlu0 %1941
        %v1943 = vrcp.pop %v1939
        %v1944 = vrcp.pop %v1942
        %v1945 = vmul.f32 %v1934, %v1943
        %v1946 = vmul.f32 %v1936, %v1944
        %v1947 = vpack.c.bf16 %v1945, %v1945
        %v1948 = vpack.c.bf16 %v1946, %v1946
        %1949 = vrot.lane.b32.xlu0 %v1386, 64
        %v1950 = vpop.permute.xlu0 %1949
        %v1952 = vsel %vm1481, %v1947, 0
        %v1955 = vsel %vm1509, %v1950, 0
        %1957 = vmatprep.subr.bf16.mxu0 0
        %1958 = vmatpush1.bf16.msra.mxu0 0
        %1959 = vmatprep.subr.bf16.mxu0 0
        %1960 = vmatpush1.bf16.msra.mxu0 0
        %1961 = vmatprep.subr.bf16.mxu0 0
        %1962 = vmatpush1.bf16.msra.mxu0 0
        %1963 = vmatprep.subr.bf16.mxu0 0
        %1964 = vmatpush1.bf16.msra.mxu0 0
        %1965 = vmatprep.subr.bf16.mxu0 0
        %1966 = vmatpush1.bf16.msra.mxu0 0
        %1967 = vmatprep.subr.bf16.mxu0 0
        %1968 = vmatpush1.bf16.msra.mxu0 0
        %1969 = vmatprep.subr.bf16.mxu0 0
        %1970 = vmatpush1.bf16.msra.mxu0 0
        %1971 = vmatprep.subr.bf16.mxu0 0
        %1972 = vmatpush1.bf16.msra.mxu0 %v1955
        %1973 = vmatprep.subr.bf16.mxu0 0
        %1974 = vmatpush2.bf16.msra.mxu0 0
        %1975 = vmatprep.subr.bf16.mxu0 0
        %1976 = vmatpush2.bf16.msra.mxu0 0
        %1977 = vmatprep.subr.bf16.mxu0 0
        %1978 = vmatpush2.bf16.msra.mxu0 0
        %1979 = vmatprep.subr.bf16.mxu0 0
        %1980 = vmatpush2.bf16.msra.mxu0 0
        %1981 = vmatprep.subr.bf16.mxu0 0
        %1982 = vmatpush2.bf16.msra.mxu0 0
        %1983 = vmatprep.subr.bf16.mxu0 0
        %1984 = vmatpush2.bf16.msra.mxu0 0
        %1985 = vmatprep.subr.bf16.mxu0 0
        %1986 = vmatpush2.bf16.msra.mxu0 0
        %1987 = vmatprep.subr.bf16.mxu0 0
        %1988 = vmatpush2.bf16.msra.mxu0 0
        %1989 = vmatprep.mubr.bf16.mxu0 0
        %1990 = vmatmul.mubr.bf16.gmra.mxu0 %v1952
        %v1991 = vpop.f32.mrf.mxu0
        %v1992 = vadd.f32 0.0, %v1991
        %v1993 = vpop.f32.mrf.mxu0
        %v1994 = vpop.f32.mrf.mxu0
        %v1995 = vpop.f32.mrf.mxu0
        %1996 = vdwg.mxu0
        %1997 = vrot.lane.b32.xlu0 %v1387, 64
        %v1998 = vpop.permute.xlu0 %1997
        %v2000 = vsel %vm1481, %v1948, 0
        %v2003 = vsel %vm1509, %v1998, 0
        %2005 = vmatprep.subr.bf16.mxu0 0
        %2006 = vmatpush1.bf16.msra.mxu0 0
        %2007 = vmatprep.subr.bf16.mxu0 0
        %2008 = vmatpush1.bf16.msra.mxu0 0
        %2009 = vmatprep.subr.bf16.mxu0 0
        %2010 = vmatpush1.bf16.msra.mxu0 0
        %2011 = vmatprep.subr.bf16.mxu0 0
        %2012 = vmatpush1.bf16.msra.mxu0 0
        %2013 = vmatprep.subr.bf16.mxu0 0
        %2014 = vmatpush1.bf16.msra.mxu0 0
        %2015 = vmatprep.subr.bf16.mxu0 0
        %2016 = vmatpush1.bf16.msra.mxu0 0
        %2017 = vmatprep.subr.bf16.mxu0 0
        %2018 = vmatpush1.bf16.msra.mxu0 0
        %2019 = vmatprep.subr.bf16.mxu0 0
        %2020 = vmatpush1.bf16.msra.mxu0 %v2003
        %2021 = vmatprep.subr.bf16.mxu0 0
        %2022 = vmatpush2.bf16.msra.mxu0 0
        %2023 = vmatprep.subr.bf16.mxu0 0
        %2024 = vmatpush2.bf16.msra.mxu0 0
        %2025 = vmatprep.subr.bf16.mxu0 0
        %2026 = vmatpush2.bf16.msra.mxu0 0
        %2027 = vmatprep.subr.bf16.mxu0 0
        %2028 = vmatpush2.bf16.msra.mxu0 0
        %2029 = vmatprep.subr.bf16.mxu0 0
        %2030 = vmatpush2.bf16.msra.mxu0 0
        %2031 = vmatprep.subr.bf16.mxu0 0
        %2032 = vmatpush2.bf16.msra.mxu0 0
        %2033 = vmatprep.subr.bf16.mxu0 0
        %2034 = vmatpush2.bf16.msra.mxu0 0
        %2035 = vmatprep.subr.bf16.mxu0 0
        %2036 = vmatpush2.bf16.msra.mxu0 0
        %2037 = vmatprep.mubr.bf16.mxu0 0
        %2038 = vmatmul.mubr.bf16.gmra.mxu0 %v2000
        %v2039 = vpop.f32.mrf.mxu0
        %v2040 = vadd.f32 0.0, %v2039
        %v2041 = vpop.f32.mrf.mxu0
        %v2042 = vpop.f32.mrf.mxu0
        %v2043 = vpop.f32.mrf.mxu0
        %2044 = vdwg.mxu0
        %2045 = vrot.lane.b32.xlu0 %v1382, 32
        %v2046 = vpop.permute.xlu0 %2045
        %2047 = vrot.lane.b32.xlu0 %v1384, 32
        %v2048 = vpop.permute.xlu0 %2047
        %v2050 = vsel %vm1388, %v2046, 0
        %v2053 = vsel %vm1388, %v2048, 0
        %2055 = vmatprep.subr.bf16.mxu0 0
        %2056 = vmatpush1.bf16.xpose.msra.mxu0 0
        %2057 = vmatprep.subr.bf16.mxu0 0
        %2058 = vmatpush1.bf16.xpose.msra.mxu0 0
        %2059 = vmatprep.subr.bf16.mxu0 0
        %2060 = vmatpush1.bf16.xpose.msra.mxu0 0
        %2061 = vmatprep.subr.bf16.mxu0 0
        %2062 = vmatpush1.bf16.xpose.msra.mxu0 0
        %2063 = vmatprep.subr.bf16.mxu0 0
        %2064 = vmatpush1.bf16.xpose.msra.mxu0 0
        %2065 = vmatprep.subr.bf16.mxu0 0
        %2066 = vmatpush1.bf16.xpose.msra.mxu0 0
        %2067 = vmatprep.subr.bf16.mxu0 0
        %2068 = vmatpush1.bf16.xpose.msra.mxu0 0
        %2069 = vmatprep.subr.bf16.mxu0 0
        %2070 = vmatpush1.bf16.xpose.msra.mxu0 %v2053
        %2071 = vmatprep.subr.bf16.mxu0 0
        %2072 = vmatpush2.bf16.xpose.msra.mxu0 0
        %2073 = vmatprep.subr.bf16.mxu0 0
        %2074 = vmatpush2.bf16.xpose.msra.mxu0 0
        %2075 = vmatprep.subr.bf16.mxu0 0
        %2076 = vmatpush2.bf16.xpose.msra.mxu0 0
        %2077 = vmatprep.subr.bf16.mxu0 0
        %2078 = vmatpush2.bf16.xpose.msra.mxu0 0
        %2079 = vmatprep.subr.bf16.mxu0 0
        %2080 = vmatpush2.bf16.xpose.msra.mxu0 0
        %2081 = vmatprep.subr.bf16.mxu0 0
        %2082 = vmatpush2.bf16.xpose.msra.mxu0 0
        %2083 = vmatprep.subr.bf16.mxu0 0
        %2084 = vmatpush2.bf16.xpose.msra.mxu0 0
        %2085 = vmatprep.subr.bf16.mxu0 0
        %2086 = vmatpush2.bf16.xpose.msra.mxu0 0
        %2087 = vmatprep.mubr.bf16.mxu0 0
        %2088 = vmatmul.mubr.bf16.gmra.mxu0 %v2050
        %v2089 = vpop.f32.mrf.mxu0
        %v2090 = vadd.f32 0.0, %v2089
        %v2091 = vpop.f32.mrf.mxu0
        %v2092 = vpop.f32.mrf.mxu0
        %v2093 = vpop.f32.mrf.mxu0
        %2094 = vdwg.mxu0
        %2095 = vrot.lane.b32.xlu0 %v1383, 32
        %v2096 = vpop.permute.xlu0 %2095
        %2097 = vrot.lane.b32.xlu0 %v1385, 32
        %v2098 = vpop.permute.xlu0 %2097
        %v2100 = vsel %vm1388, %v2096, 0
        %v2103 = vsel %vm1388, %v2098, 0
        %2105 = vmatprep.subr.bf16.mxu0 0
        %2106 = vmatpush1.bf16.xpose.msra.mxu0 0
        %2107 = vmatprep.subr.bf16.mxu0 0
        %2108 = vmatpush1.bf16.xpose.msra.mxu0 0
        %2109 = vmatprep.subr.bf16.mxu0 0
        %2110 = vmatpush1.bf16.xpose.msra.mxu0 0
        %2111 = vmatprep.subr.bf16.mxu0 0
        %2112 = vmatpush1.bf16.xpose.msra.mxu0 0
        %2113 = vmatprep.subr.bf16.mxu0 0
        %2114 = vmatpush1.bf16.xpose.msra.mxu0 0
        %2115 = vmatprep.subr.bf16.mxu0 0
        %2116 = vmatpush1.bf16.xpose.msra.mxu0 0
        %2117 = vmatprep.subr.bf16.mxu0 0
        %2118 = vmatpush1.bf16.xpose.msra.mxu0 0
        %2119 = vmatprep.subr.bf16.mxu0 0
        %2120 = vmatpush1.bf16.xpose.msra.mxu0 %v2103
        %2121 = vmatprep.subr.bf16.mxu0 0
        %2122 = vmatpush2.bf16.xpose.msra.mxu0 0
        %2123 = vmatprep.subr.bf16.mxu0 0
        %2124 = vmatpush2.bf16.xpose.msra.mxu0 0
        %2125 = vmatprep.subr.bf16.mxu0 0
        %2126 = vmatpush2.bf16.xpose.msra.mxu0 0
        %2127 = vmatprep.subr.bf16.mxu0 0
        %2128 = vmatpush2.bf16.xpose.msra.mxu0 0
        %2129 = vmatprep.subr.bf16.mxu0 0
        %2130 = vmatpush2.bf16.xpose.msra.mxu0 0
        %2131 = vmatprep.subr.bf16.mxu0 0
        %2132 = vmatpush2.bf16.xpose.msra.mxu0 0
        %2133 = vmatprep.subr.bf16.mxu0 0
        %2134 = vmatpush2.bf16.xpose.msra.mxu0 0
        %2135 = vmatprep.subr.bf16.mxu0 0
        %2136 = vmatpush2.bf16.xpose.msra.mxu0 0
        %2137 = vmatprep.mubr.bf16.mxu0 0
        %2138 = vmatmul.mubr.bf16.gmra.mxu0 %v2100
        %v2139 = vpop.f32.mrf.mxu0
        %v2140 = vadd.f32 0.0, %v2139
        %v2141 = vpop.f32.mrf.mxu0
        %v2142 = vpop.f32.mrf.mxu0
        %v2143 = vpop.f32.mrf.mxu0
        %2144 = vdwg.mxu0
        %v2145 = vsel %vm1481, %v2090, -inf
        %2146 = vmax.xlane.f32.xlu0 %v2145
        %v2147 = vpop.xlane.xlu0 %2146
        %v2148 = vsel %vm1481, %v2140, -inf
        %2149 = vmax.xlane.f32.xlu0 %v2148
        %v2150 = vpop.xlane.xlu0 %2149
        %v2151 = vsub.f32 %v2090, %v2147
        %v2152 = vsub.f32 %v2140, %v2150
        %v2153 = vmul.f32 %v2151, 1.442695
        %v2154 = vpow.pop %v2153
        %v2155 = vmul.f32 %v2152, 1.442695
        %v2156 = vpow.pop %v2155
        %v2157 = vsel %vm1481, %v2154, 0.0
        %2158 = vadd.xlane.f32.xlu0 %v2157
        %v2159 = vpop.xlane.xlu0 %2158
        %v2160 = vsel %vm1481, %v2156, 0.0
        %2161 = vadd.xlane.f32.xlu0 %v2160
        %v2162 = vpop.xlane.xlu0 %2161
        %v2163 = vrcp.pop %v2159
        %v2164 = vrcp.pop %v2162
        %v2165 = vmul.f32 %v2154, %v2163
        %v2166 = vmul.f32 %v2156, %v2164
        %v2167 = vpack.c.bf16 %v2165, %v2165
        %v2168 = vpack.c.bf16 %v2166, %v2166
        %2169 = vrot.lane.b32.xlu0 %v1386, 32
        %v2170 = vpop.permute.xlu0 %2169
        %v2172 = vsel %vm1481, %v2167, 0
        %v2175 = vsel %vm1509, %v2170, 0
        %2177 = vmatprep.subr.bf16.mxu0 0
        %2178 = vmatpush1.bf16.msra.mxu0 0
        %2179 = vmatprep.subr.bf16.mxu0 0
        %2180 = vmatpush1.bf16.msra.mxu0 0
        %2181 = vmatprep.subr.bf16.mxu0 0
        %2182 = vmatpush1.bf16.msra.mxu0 0
        %2183 = vmatprep.subr.bf16.mxu0 0
        %2184 = vmatpush1.bf16.msra.mxu0 0
        %2185 = vmatprep.subr.bf16.mxu0 0
        %2186 = vmatpush1.bf16.msra.mxu0 0
        %2187 = vmatprep.subr.bf16.mxu0 0
        %2188 = vmatpush1.bf16.msra.mxu0 0
        %2189 = vmatprep.subr.bf16.mxu0 0
        %2190 = vmatpush1.bf16.msra.mxu0 0
        %2191 = vmatprep.subr.bf16.mxu0 0
        %2192 = vmatpush1.bf16.msra.mxu0 %v2175
        %2193 = vmatprep.subr.bf16.mxu0 0
        %2194 = vmatpush2.bf16.msra.mxu0 0
        %2195 = vmatprep.subr.bf16.mxu0 0
        %2196 = vmatpush2.bf16.msra.mxu0 0
        %2197 = vmatprep.subr.bf16.mxu0 0
        %2198 = vmatpush2.bf16.msra.mxu0 0
        %2199 = vmatprep.subr.bf16.mxu0 0
        %2200 = vmatpush2.bf16.msra.mxu0 0
        %2201 = vmatprep.subr.bf16.mxu0 0
        %2202 = vmatpush2.bf16.msra.mxu0 0
        %2203 = vmatprep.subr.bf16.mxu0 0
        %2204 = vmatpush2.bf16.msra.mxu0 0
        %2205 = vmatprep.subr.bf16.mxu0 0
        %2206 = vmatpush2.bf16.msra.mxu0 0
        %2207 = vmatprep.subr.bf16.mxu0 0
        %2208 = vmatpush2.bf16.msra.mxu0 0
        %2209 = vmatprep.mubr.bf16.mxu0 0
        %2210 = vmatmul.mubr.bf16.gmra.mxu0 %v2172
        %v2211 = vpop.f32.mrf.mxu0
        %v2212 = vadd.f32 0.0, %v2211
        %v2213 = vpop.f32.mrf.mxu0
        %v2214 = vpop.f32.mrf.mxu0
        %v2215 = vpop.f32.mrf.mxu0
        %2216 = vdwg.mxu0
        %2217 = vrot.lane.b32.xlu0 %v1387, 32
        %v2218 = vpop.permute.xlu0 %2217
        %v2220 = vsel %vm1481, %v2168, 0
        %v2223 = vsel %vm1509, %v2218, 0
        %2225 = vmatprep.subr.bf16.mxu0 0
        %2226 = vmatpush1.bf16.msra.mxu0 0
        %2227 = vmatprep.subr.bf16.mxu0 0
        %2228 = vmatpush1.bf16.msra.mxu0 0
        %2229 = vmatprep.subr.bf16.mxu0 0
        %2230 = vmatpush1.bf16.msra.mxu0 0
        %2231 = vmatprep.subr.bf16.mxu0 0
        %2232 = vmatpush1.bf16.msra.mxu0 0
        %2233 = vmatprep.subr.bf16.mxu0 0
        %2234 = vmatpush1.bf16.msra.mxu0 0
        %2235 = vmatprep.subr.bf16.mxu0 0
        %2236 = vmatpush1.bf16.msra.mxu0 0
        %2237 = vmatprep.subr.bf16.mxu0 0
        %2238 = vmatpush1.bf16.msra.mxu0 0
        %2239 = vmatprep.subr.bf16.mxu0 0
        %2240 = vmatpush1.bf16.msra.mxu0 %v2223
        %2241 = vmatprep.subr.bf16.mxu0 0
        %2242 = vmatpush2.bf16.msra.mxu0 0
        %2243 = vmatprep.subr.bf16.mxu0 0
        %2244 = vmatpush2.bf16.msra.mxu0 0
        %2245 = vmatprep.subr.bf16.mxu0 0
        %2246 = vmatpush2.bf16.msra.mxu0 0
        %2247 = vmatprep.subr.bf16.mxu0 0
        %2248 = vmatpush2.bf16.msra.mxu0 0
        %2249 = vmatprep.subr.bf16.mxu0 0
        %2250 = vmatpush2.bf16.msra.mxu0 0
        %2251 = vmatprep.subr.bf16.mxu0 0
        %2252 = vmatpush2.bf16.msra.mxu0 0
        %2253 = vmatprep.subr.bf16.mxu0 0
        %2254 = vmatpush2.bf16.msra.mxu0 0
        %2255 = vmatprep.subr.bf16.mxu0 0
        %2256 = vmatpush2.bf16.msra.mxu0 0
        %2257 = vmatprep.mubr.bf16.mxu0 0
        %2258 = vmatmul.mubr.bf16.gmra.mxu0 %v2220
        %v2259 = vpop.f32.mrf.mxu0
        %v2260 = vadd.f32 0.0, %v2259
        %v2261 = vpop.f32.mrf.mxu0
        %v2262 = vpop.f32.mrf.mxu0
        %v2263 = vpop.f32.mrf.mxu0
        %2264 = vdwg.mxu0
        %2267 = vrot.lane.b32.xlu0 %v1771, 32
        %v2268 = vpop.permute.xlu0 %2267
        %2269 = vrot.lane.b32.xlu0 %v1820, 32
        %v2270 = vpop.permute.xlu0 %2269
        %2275 = vrot.lane.b32.xlu0 %v1992, 64
        %v2276 = vpop.permute.xlu0 %2275
        %2277 = vrot.lane.b32.xlu0 %v2040, 64
        %v2278 = vpop.permute.xlu0 %2277
        %2283 = vrot.lane.b32.xlu0 %v2212, 96
        %v2284 = vpop.permute.xlu0 %2283
        %2285 = vrot.lane.b32.xlu0 %v2260, 96
        %v2286 = vpop.permute.xlu0 %2285
        %v2289 = vsel %vm1388, %v1548, %v2268
        %v2290 = vsel %vm1388, %v1594, %v2270
        %vm2291 = vcmask 523264
        %v2292 = vsel %vm2291, %v2289, %v2276
        %v2293 = vsel %vm2291, %v2290, %v2278
        %vm2294 = vcmask 785408
        %v2295 = vsel %vm2294, %v2292, %v2284
        %v2296 = vsel %vm2294, %v2293, %v2286
        %v2297 = vpack.c.bf16 %v2296, %v2295
        %v2298 = vld [vmem:[%s833] sm:$0xf]
        %v2299 = vld [vmem:[%s833 + $0x4] sm:$0xf]
        %v2300 = vld [vmem:[%s833 + $0x8] sm:$0xf]
        %v2301 = vld [vmem:[%s833 + $0xc] sm:$0xf]
        %v2302 = vld [vmem:[%s833 + $0x10] sm:$0xf]
        %v2303 = vld [vmem:[%s833 + $0x14] sm:$0xf]
        %v2304 = vld [vmem:[%s833 + $0x18] sm:$0xf]
        %v2305 = vld [vmem:[%s833 + $0x1c] sm:$0xf]
        %v2306 = vld [vmem:[%s833 + $0x20] sm:$0xf]
        %v2307 = vld [vmem:[%s833 + $0x24] sm:$0xf]
        %v2308 = vld [vmem:[%s833 + $0x28] sm:$0xf]
        %v2309 = vld [vmem:[%s833 + $0x2c] sm:$0xf]
        %v2310 = vld [vmem:[%s833 + $0x30] sm:$0xf]
        %v2311 = vld [vmem:[%s833 + $0x34] sm:$0xf]
        %v2312 = vld [vmem:[%s833 + $0x38] sm:$0xf]
        %v2313 = vld [vmem:[%s833 + $0x3c] sm:$0xf]
        %v2314 = vld [vmem:[%s975] sm:$0x1]
        %v2316 = vlaneseq
        %v2317 = vshrl.u32 %v2316, 7
        %v2318 = vsub.s32 0, %v2317
        %v2319 = vrot.slane %v2314, %v2318
        %v2337 = vunpack.c.l.b16 %v2298
        %v2338 = vunpack.c.l.b16 %v2299
        %v2339 = vunpack.c.l.b16 %v2300
        %v2340 = vunpack.c.l.b16 %v2301
        %v2341 = vunpack.c.l.b16 %v2302
        %v2342 = vunpack.c.l.b16 %v2303
        %v2343 = vunpack.c.l.b16 %v2304
        %v2344 = vunpack.c.l.b16 %v2305
        %v2345 = vunpack.c.l.b16 %v2306
        %v2346 = vunpack.c.l.b16 %v2307
        %v2347 = vunpack.c.l.b16 %v2308
        %v2348 = vunpack.c.l.b16 %v2309
        %v2349 = vunpack.c.l.b16 %v2310
        %v2350 = vunpack.c.l.b16 %v2311
        %v2351 = vunpack.c.l.b16 %v2312
        %v2352 = vunpack.c.l.b16 %v2313
        %v2353 = vpack.c.b16 %v2338, %v2337
        %v2354 = vpack.c.b16 %v2340, %v2339
        %v2355 = vpack.c.b16 %v2342, %v2341
        %v2356 = vpack.c.b16 %v2344, %v2343
        %v2357 = vpack.c.b16 %v2346, %v2345
        %v2358 = vpack.c.b16 %v2348, %v2347
        %v2359 = vpack.c.b16 %v2350, %v2349
        %v2360 = vpack.c.b16 %v2352, %v2351
        %2369 = vmatprep.subr.bf16.mxu0 0
        %2370 = vmatpush1.bf16.msra.mxu0 %v2360
        %2371 = vmatprep.subr.bf16.mxu0 0
        %2372 = vmatpush1.bf16.msra.mxu0 %v2359
        %2373 = vmatprep.subr.bf16.mxu0 0
        %2374 = vmatpush1.bf16.msra.mxu0 %v2358
        %2375 = vmatprep.subr.bf16.mxu0 0
        %2376 = vmatpush1.bf16.msra.mxu0 %v2357
        %2377 = vmatprep.subr.bf16.mxu0 0
        %2378 = vmatpush1.bf16.msra.mxu0 %v2356
        %2379 = vmatprep.subr.bf16.mxu0 0
        %2380 = vmatpush1.bf16.msra.mxu0 %v2355
        %2381 = vmatprep.subr.bf16.mxu0 0
        %2382 = vmatpush1.bf16.msra.mxu0 %v2354
        %2383 = vmatprep.subr.bf16.mxu0 0
        %2384 = vmatpush1.bf16.msra.mxu0 %v2353
        %2385 = vmatprep.subr.bf16.mxu0 0
        %2386 = vmatpush2.bf16.msra.mxu0 0
        %2387 = vmatprep.subr.bf16.mxu0 0
        %2388 = vmatpush2.bf16.msra.mxu0 0
        %2389 = vmatprep.subr.bf16.mxu0 0
        %2390 = vmatpush2.bf16.msra.mxu0 0
        %2391 = vmatprep.subr.bf16.mxu0 0
        %2392 = vmatpush2.bf16.msra.mxu0 0
        %2393 = vmatprep.subr.bf16.mxu0 0
        %2394 = vmatpush2.bf16.msra.mxu0 0
        %2395 = vmatprep.subr.bf16.mxu0 0
        %2396 = vmatpush2.bf16.msra.mxu0 0
        %2397 = vmatprep.subr.bf16.mxu0 0
        %2398 = vmatpush2.bf16.msra.mxu0 0
        %2399 = vmatprep.subr.bf16.mxu0 0
        %2400 = vmatpush2.bf16.msra.mxu0 0
        %2401 = vmatprep.mubr.bf16.mxu0 0
        %2402 = vmatmul.mubr.bf16.gmra.mxu0 %v2297
        %v2403 = vpop.f32.mrf.mxu0
        %v2404 = vadd.f32 %v2319, %v2403
        %v2405 = vpop.f32.mrf.mxu0
        %v2406 = vpop.f32.mrf.mxu0
        %v2407 = vadd.f32 %v2319, %v2406
        %v2408 = vpop.f32.mrf.mxu0
        %2409 = vdwg.mxu0
        %v2410 = vstv %s1000
        %v2411 = vmul.f32 %v2410, %v2404
        %v2412 = vmul.f32 %v2410, %v2407
        %v2413 = vadd.f32 %v998, %v2411
        %v2414 = vadd.f32 %v999, %v2412
        %v2415 = vld [vmem:[%s978] sm:$0x1]
        %v2416 = vld [vmem:[%s981] sm:$0x1]
        %2417 = vadd.xlane.f32.xlu0 %v2413
        %v2418 = vpop.xlane.xlu0 %2417
        %2419 = vadd.xlane.f32.xlu0 %v2414
        %v2420 = vpop.xlane.xlu0 %2419
        %v2421 = vmul.f32 %v2418, 0.03125
        %v2422 = vmul.f32 %v2420, 0.03125
        %v2423 = vmul.f32 %v2413, %v2413
        %v2424 = vmul.f32 %v2414, %v2414
        %2425 = vadd.xlane.f32.xlu0 %v2423
        %v2426 = vpop.xlane.xlu0 %2425
        %2427 = vadd.xlane.f32.xlu0 %v2424
        %v2428 = vpop.xlane.xlu0 %2427
        %v2429 = vmul.f32 %v2426, 0.03125
        %v2430 = vmul.f32 %v2428, 0.03125
        %v2431 = vmul.f32 %v2421, %v2421
        %v2432 = vmul.f32 %v2422, %v2422
        %v2433 = vsub.f32 %v2429, %v2431
        %v2434 = vsub.f32 %v2430, %v2432
        %v2435 = vsub.f32 %v2413, %v2421
        %v2436 = vsub.f32 %v2414, %v2422
        %v2437 = vadd.f32 %v2433, 1e-05
        %v2438 = vadd.f32 %v2434, 1e-05
        %v2439 = vrsqrt.pop %v2437
        %v2440 = vrsqrt.pop %v2438
        %v2441 = vmul.f32 %v2435, %v2439
        %v2442 = vmul.f32 %v2436, %v2440
        %v2444 = vlaneseq
        %v2445 = vshrl.u32 %v2444, 7
        %v2446 = vsub.s32 0, %v2445
        %v2447 = vrot.slane %v2415, %v2446
        %v2449 = vmul.f32 %v2441, %v2447
        %v2450 = vmul.f32 %v2442, %v2447
        %v2452 = vlaneseq
        %v2453 = vshrl.u32 %v2452, 7
        %v2454 = vsub.s32 0, %v2453
        %v2455 = vrot.slane %v2416, %v2454
        %v2457 = vadd.f32 %v2449, %v2455
        %v2458 = vadd.f32 %v2450, %v2455
        %v2459 = vpack.c.bf16 %v2458, %v2457
        %v2460 = vld [vmem:[%s842] sm:$0xf]
        %v2461 = vld [vmem:[%s842 + $0x4] sm:$0xf]
        %v2462 = vld [vmem:[%s842 + $0x8] sm:$0xf]
        %v2463 = vld [vmem:[%s842 + $0xc] sm:$0xf]
        %v2464 = vld [vmem:[%s842 + $0x10] sm:$0xf]
        %v2465 = vld [vmem:[%s842 + $0x14] sm:$0xf]
        %v2466 = vld [vmem:[%s842 + $0x18] sm:$0xf]
        %v2467 = vld [vmem:[%s842 + $0x1c] sm:$0xf]
        %v2468 = vld [vmem:[%s842 + $0x20] sm:$0xf]
        %v2469 = vld [vmem:[%s842 + $0x24] sm:$0xf]
        %v2470 = vld [vmem:[%s842 + $0x28] sm:$0xf]
        %v2471 = vld [vmem:[%s842 + $0x2c] sm:$0xf]
        %v2472 = vld [vmem:[%s842 + $0x30] sm:$0xf]
        %v2473 = vld [vmem:[%s842 + $0x34] sm:$0xf]
        %v2474 = vld [vmem:[%s842 + $0x38] sm:$0xf]
        %v2475 = vld [vmem:[%s842 + $0x3c] sm:$0xf]
        %v2476 = vld [vmem:[%s984] sm:$0x1]
        %v2478 = vlaneseq
        %v2479 = vshrl.u32 %v2478, 7
        %v2480 = vsub.s32 0, %v2479
        %v2481 = vrot.slane %v2476, %v2480
        %v2499 = vunpack.c.l.b16 %v2460
        %v2500 = vunpack.c.l.b16 %v2461
        %v2501 = vunpack.c.l.b16 %v2462
        %v2502 = vunpack.c.l.b16 %v2463
        %v2503 = vunpack.c.l.b16 %v2464
        %v2504 = vunpack.c.l.b16 %v2465
        %v2505 = vunpack.c.l.b16 %v2466
        %v2506 = vunpack.c.l.b16 %v2467
        %v2507 = vunpack.c.l.b16 %v2468
        %v2508 = vunpack.c.l.b16 %v2469
        %v2509 = vunpack.c.l.b16 %v2470
        %v2510 = vunpack.c.l.b16 %v2471
        %v2511 = vunpack.c.l.b16 %v2472
        %v2512 = vunpack.c.l.b16 %v2473
        %v2513 = vunpack.c.l.b16 %v2474
        %v2514 = vunpack.c.l.b16 %v2475
        %v2515 = vpack.c.b16 %v2500, %v2499
        %v2516 = vpack.c.b16 %v2502, %v2501
        %v2517 = vpack.c.b16 %v2504, %v2503
        %v2518 = vpack.c.b16 %v2506, %v2505
        %v2519 = vpack.c.b16 %v2508, %v2507
        %v2520 = vpack.c.b16 %v2510, %v2509
        %v2521 = vpack.c.b16 %v2512, %v2511
        %v2522 = vpack.c.b16 %v2514, %v2513
        %2531 = vmatprep.subr.bf16.mxu0 0
        %2532 = vmatpush1.bf16.msra.mxu0 %v2522
        %2533 = vmatprep.subr.bf16.mxu0 0
        %2534 = vmatpush1.bf16.msra.mxu0 %v2521
        %2535 = vmatprep.subr.bf16.mxu0 0
        %2536 = vmatpush1.bf16.msra.mxu0 %v2520
        %2537 = vmatprep.subr.bf16.mxu0 0
        %2538 = vmatpush1.bf16.msra.mxu0 %v2519
        %2539 = vmatprep.subr.bf16.mxu0 0
        %2540 = vmatpush1.bf16.msra.mxu0 %v2518
        %2541 = vmatprep.subr.bf16.mxu0 0
        %2542 = vmatpush1.bf16.msra.mxu0 %v2517
        %2543 = vmatprep.subr.bf16.mxu0 0
        %2544 = vmatpush1.bf16.msra.mxu0 %v2516
        %2545 = vmatprep.subr.bf16.mxu0 0
        %2546 = vmatpush1.bf16.msra.mxu0 %v2515
        %2547 = vmatprep.subr.bf16.mxu0 0
        %2548 = vmatpush2.bf16.msra.mxu0 0
        %2549 = vmatprep.subr.bf16.mxu0 0
        %2550 = vmatpush2.bf16.msra.mxu0 0
        %2551 = vmatprep.subr.bf16.mxu0 0
        %2552 = vmatpush2.bf16.msra.mxu0 0
        %2553 = vmatprep.subr.bf16.mxu0 0
        %2554 = vmatpush2.bf16.msra.mxu0 0
        %2555 = vmatprep.subr.bf16.mxu0 0
        %2556 = vmatpush2.bf16.msra.mxu0 0
        %2557 = vmatprep.subr.bf16.mxu0 0
        %2558 = vmatpush2.bf16.msra.mxu0 0
        %2559 = vmatprep.subr.bf16.mxu0 0
        %2560 = vmatpush2.bf16.msra.mxu0 0
        %2561 = vmatprep.subr.bf16.mxu0 0
        %2562 = vmatpush2.bf16.msra.mxu0 0
        %2563 = vmatprep.mubr.bf16.mxu0 0
        %2564 = vmatmul.mubr.bf16.gmra.mxu0 %v2459
        %v2565 = vpop.f32.mrf.mxu0
        %v2566 = vadd.f32 %v2481, %v2565
        %v2567 = vpop.f32.mrf.mxu0
        %v2568 = vpop.f32.mrf.mxu0
        %v2569 = vadd.f32 %v2481, %v2568
        %v2570 = vpop.f32.mrf.mxu0
        %2571 = vdwg.mxu0
        %v2572 = vmul.f32 %v2566, 0.5
        %v2573 = vmul.f32 %v2569, 0.5
        %v2574 = vmul.f32 %v2566, 0.70710677
        %v2575 = vmul.f32 %v2569, 0.70710677
        %v2576 = vand.u32 2147483647, %v2574
        %v2577 = vand.u32 2147483647, %v2575
        %v2578 = vmul.f32 %v2576, 0.3275911
        %v2579 = vmul.f32 %v2577, 0.3275911
        %v2580 = vadd.f32 %v2578, 1.0
        %v2581 = vadd.f32 %v2579, 1.0
        %v2582 = vrcp.pop %v2580
        %v2583 = vmul.f32 1.0, %v2582
        %v2584 = vrcp.pop %v2581
        %v2585 = vmul.f32 1.0, %v2584
        %v2586 = vmul.f32 %v2583, 1.0614054
        %v2587 = vmul.f32 %v2585, 1.0614054
        %v2588 = vadd.f32 %v2586, -1.4531521
        %v2589 = vadd.f32 %v2587, -1.4531521
        %v2590 = vmul.f32 %v2588, %v2583
        %v2591 = vmul.f32 %v2589, %v2585
        %v2592 = vadd.f32 %v2590, 1.4214138
        %v2593 = vadd.f32 %v2591, 1.4214138
        %v2594 = vmul.f32 %v2592, %v2583
        %v2595 = vmul.f32 %v2593, %v2585
        %v2596 = vadd.f32 %v2594, -0.28449672
        %v2597 = vadd.f32 %v2595, -0.28449672
        %v2598 = vmul.f32 %v2596, %v2583
        %v2599 = vmul.f32 %v2597, %v2585
        %v2600 = vadd.f32 %v2598, 0.2548296
        %v2601 = vadd.f32 %v2599, 0.2548296
        %v2602 = vmul.f32 %v2600, %v2583
        %v2603 = vmul.f32 %v2601, %v2585
        %v2604 = vsub.f32 0.0, %v2576
        %v2605 = vsub.f32 0.0, %v2577
        %v2606 = vmul.f32 %v2604, %v2576
        %v2607 = vmul.f32 %v2605, %v2577
        %v2608 = vmul.f32 %v2606, 1.442695
        %v2609 = vpow.pop %v2608
        %v2610 = vmul.f32 %v2607, 1.442695
        %v2611 = vpow.pop %v2610
        %v2612 = vmul.f32 %v2602, %v2609
        %v2613 = vmul.f32 %v2603, %v2611
        %v2614 = vsub.f32 1.0, %v2612
        %v2615 = vsub.f32 1.0, %v2613
        %vm2616 = vcmp.lt.f32.partialorder %v2574, 0.0
        %vm2617 = vcmp.lt.f32.partialorder %v2575, 0.0
        %v2618 = vsub.f32 0.0, %v2614
        %v2619 = vsub.f32 0.0, %v2615
        %v2620 = vsel %vm2616, %v2618, %v2614
        %v2621 = vsel %vm2617, %v2619, %v2615
        %v2622 = vadd.f32 %v2620, 1.0
        %v2623 = vadd.f32 %v2621, 1.0
        %v2624 = vmul.f32 %v2572, %v2622
        %v2625 = vmul.f32 %v2573, %v2623
        %v2626 = vpack.c.bf16 %v2625, %v2624
        %v2627 = vld [vmem:[%s851] sm:$0xf]
        %v2628 = vld [vmem:[%s851 + $0x4] sm:$0xf]
        %v2629 = vld [vmem:[%s851 + $0x8] sm:$0xf]
        %v2630 = vld [vmem:[%s851 + $0xc] sm:$0xf]
        %v2631 = vld [vmem:[%s851 + $0x10] sm:$0xf]
        %v2632 = vld [vmem:[%s851 + $0x14] sm:$0xf]
        %v2633 = vld [vmem:[%s851 + $0x18] sm:$0xf]
        %v2634 = vld [vmem:[%s851 + $0x1c] sm:$0xf]
        %v2635 = vld [vmem:[%s851 + $0x20] sm:$0xf]
        %v2636 = vld [vmem:[%s851 + $0x24] sm:$0xf]
        %v2637 = vld [vmem:[%s851 + $0x28] sm:$0xf]
        %v2638 = vld [vmem:[%s851 + $0x2c] sm:$0xf]
        %v2639 = vld [vmem:[%s851 + $0x30] sm:$0xf]
        %v2640 = vld [vmem:[%s851 + $0x34] sm:$0xf]
        %v2641 = vld [vmem:[%s851 + $0x38] sm:$0xf]
        %v2642 = vld [vmem:[%s851 + $0x3c] sm:$0xf]
        %v2643 = vld [vmem:[%s987] sm:$0x1]
        %v2645 = vlaneseq
        %v2646 = vshrl.u32 %v2645, 7
        %v2647 = vsub.s32 0, %v2646
        %v2648 = vrot.slane %v2643, %v2647
        %v2666 = vunpack.c.l.b16 %v2627
        %v2667 = vunpack.c.l.b16 %v2628
        %v2668 = vunpack.c.l.b16 %v2629
        %v2669 = vunpack.c.l.b16 %v2630
        %v2670 = vunpack.c.l.b16 %v2631
        %v2671 = vunpack.c.l.b16 %v2632
        %v2672 = vunpack.c.l.b16 %v2633
        %v2673 = vunpack.c.l.b16 %v2634
        %v2674 = vunpack.c.l.b16 %v2635
        %v2675 = vunpack.c.l.b16 %v2636
        %v2676 = vunpack.c.l.b16 %v2637
        %v2677 = vunpack.c.l.b16 %v2638
        %v2678 = vunpack.c.l.b16 %v2639
        %v2679 = vunpack.c.l.b16 %v2640
        %v2680 = vunpack.c.l.b16 %v2641
        %v2681 = vunpack.c.l.b16 %v2642
        %v2682 = vpack.c.b16 %v2667, %v2666
        %v2683 = vpack.c.b16 %v2669, %v2668
        %v2684 = vpack.c.b16 %v2671, %v2670
        %v2685 = vpack.c.b16 %v2673, %v2672
        %v2686 = vpack.c.b16 %v2675, %v2674
        %v2687 = vpack.c.b16 %v2677, %v2676
        %v2688 = vpack.c.b16 %v2679, %v2678
        %v2689 = vpack.c.b16 %v2681, %v2680
        %2698 = vmatprep.subr.bf16.mxu0 0
        %2699 = vmatpush1.bf16.msra.mxu0 %v2689
        %2700 = vmatprep.subr.bf16.mxu0 0
        %2701 = vmatpush1.bf16.msra.mxu0 %v2688
        %2702 = vmatprep.subr.bf16.mxu0 0
        %2703 = vmatpush1.bf16.msra.mxu0 %v2687
        %2704 = vmatprep.subr.bf16.mxu0 0
        %2705 = vmatpush1.bf16.msra.mxu0 %v2686
        %2706 = vmatprep.subr.bf16.mxu0 0
        %2707 = vmatpush1.bf16.msra.mxu0 %v2685
        %2708 = vmatprep.subr.bf16.mxu0 0
        %2709 = vmatpush1.bf16.msra.mxu0 %v2684
        %2710 = vmatprep.subr.bf16.mxu0 0
        %2711 = vmatpush1.bf16.msra.mxu0 %v2683
        %2712 = vmatprep.subr.bf16.mxu0 0
        %2713 = vmatpush1.bf16.msra.mxu0 %v2682
        %2714 = vmatprep.subr.bf16.mxu0 0
        %2715 = vmatpush2.bf16.msra.mxu0 0
        %2716 = vmatprep.subr.bf16.mxu0 0
        %2717 = vmatpush2.bf16.msra.mxu0 0
        %2718 = vmatprep.subr.bf16.mxu0 0
        %2719 = vmatpush2.bf16.msra.mxu0 0
        %2720 = vmatprep.subr.bf16.mxu0 0
        %2721 = vmatpush2.bf16.msra.mxu0 0
        %2722 = vmatprep.subr.bf16.mxu0 0
        %2723 = vmatpush2.bf16.msra.mxu0 0
        %2724 = vmatprep.subr.bf16.mxu0 0
        %2725 = vmatpush2.bf16.msra.mxu0 0
        %2726 = vmatprep.subr.bf16.mxu0 0
        %2727 = vmatpush2.bf16.msra.mxu0 0
        %2728 = vmatprep.subr.bf16.mxu0 0
        %2729 = vmatpush2.bf16.msra.mxu0 0
        %2730 = vmatprep.mubr.bf16.mxu0 0
        %2731 = vmatmul.mubr.bf16.gmra.mxu0 %v2626
        %v2732 = vpop.f32.mrf.mxu0
        %v2733 = vadd.f32 %v2648, %v2732
        %v2734 = vpop.f32.mrf.mxu0
        %v2735 = vpop.f32.mrf.mxu0
        %v2736 = vadd.f32 %v2648, %v2735
        %v2737 = vpop.f32.mrf.mxu0
        %2738 = vdwg.mxu0
        %v2739 = vmul.f32 %v2410, %v2733
        %v2740 = vmul.f32 %v2410, %v2736
        %v2741 = vadd.f32 %v2413, %v2739
        %v2742 = vadd.f32 %v2414, %v2740
        %2743 = vst [vmem:[#allocation2] sm:$0xff] %v2741
        %2744 = vst [vmem:[#allocation2 + $0x8] sm:$0xff] %v2742
        %p2745 = scmp.eq.s32.totalorder %s49, 1
        // Predicated region
        $region133: #{tpu_custom_call.1} parent=91 // pred_check
          %p2746 = pneg %p2745
        $region134: #{tpu_custom_call.1} parent=91 // pred_check_branch
          %2748 = sbr.rel (%p2746) target = $region136
        $region135: #{tpu_custom_call.1} parent=91 // pred_region
          %2749 = vst [vmem:[#allocation19] sm:$0xff] %v2741
          %2750 = vst [vmem:[#allocation19 + $0x8] sm:$0xff] %v2742
        $region136: #{tpu_custom_call.1} parent=91 // pred_fallthru
          _
        // Predicated region
        $region137: #{tpu_custom_call.1} parent=91 // pred_check
          %p2751 = pneg %p537
        $region138: #{tpu_custom_call.1} parent=91 // pred_check_branch
          %2753 = sbr.rel (%p2751) target = $region140
        $region139: #{tpu_custom_call.1} parent=91 // pred_region
          %s2754 = smul.u32 2, %s48
          %s2756 = ssub.s32 256, 256
          %2757 = vsyncadd [#allocation5], %s2756
          %s2758 = smul.addr %s2754, 128
          %s2759 = scalar_lea.hbm %s18, %s2758
          %s2760 = sshll.u32 [#allocation19], 4
          %s2761 = int_to_ptr.vmem [resolvable:$true] %s2760
          %2766 = dma.vmem_to_hbm [thread:$0]  %s2761, 256, %s2759, [#allocation5], 128, 128, 8
        $region140: #{tpu_custom_call.1} parent=91 // pred_fallthru
          _
        // Predicated region
        $region141: #{tpu_custom_call.1} parent=91 // pred_check
          %p2767 = pneg %p537
        $region142: #{tpu_custom_call.1} parent=91 // pred_check_branch
          %2769 = sbr.rel (%p2767) target = $region144
        $region143: #{tpu_custom_call.1} parent=91 // pred_region
          %2770 = dma.done [#allocation5], 256
        $region144: #{tpu_custom_call.1} parent=91 // pred_fallthru
          _
      $region92: #{tpu_custom_call.1} parent=5 // pred_fallthru
        _
      %p2771 = scmp.le.s32.totalorder 2, %s39
      // Predicated region
      $region145: #{tpu_custom_call.1} parent=5 // pred_check
        %p2772 = pneg %p2771
      $region146: #{tpu_custom_call.1} parent=5 // pred_check_branch
        %2774 = sbr.rel (%p2772) target = $region148
      $region147: #{tpu_custom_call.1} parent=5 // pred_region
        %s2775 = ssub.s32 %s39, 2
      $region148: #{tpu_custom_call.1} parent=5 // pred_fallthru
        _
    $region6: #{tpu_custom_call.1} parent=1 // loop_footer
      %s43 = sadd.s32 1, %s39
    $region7: #{tpu_custom_call.1} parent=1 // loop_footer_branch
      %38 = sbr.rel target = $region3
    $region8: #{tpu_custom_call.1} parent=1 // loop_exit
      _
    %2776 = vsyncpa [#allocation4], 1
    %s2777 = scalar_lea.sflag [#allocation4], 1
    %2778 = vsyncpa %s2777, 1
    %2779 = vsyncpa [#allocation8], 1
    %s2780 = scalar_lea.sflag [#allocation8], 1
    %2781 = vsyncpa %s2780, 1
    %2782 = vsyncpa [#allocation11], 1
    %s2783 = scalar_lea.sflag [#allocation11], 1
    %2784 = vsyncpa %s2783, 1
    %2785 = vsyncpa [#allocation14], 1
    %s2786 = scalar_lea.sflag [#allocation14], 1
    %2787 = vsyncpa %s2786, 1
    %2788 = vsyncpa [#allocation17], 1
    %s2789 = scalar_lea.sflag [#allocation17], 1
    %2790 = vsyncpa %s2789, 1
    %2791 = vsyncpa [#allocation5], 1
    %s2792 = scalar_lea.sflag [#allocation5], 1
    %2793 = vsyncpa %s2792, 1
    %2794 = vsyncpa [#allocation6], 1
    %s2795 = scalar_lea.sflag [#allocation6], 1
    %2796 = vsyncpa %s2795, 1

</llo_original>
